<compile_context>
chip_gen: v7x
topology: tpu7x:2x2x1
jax: 0.10.0
libtpu: 0.0.40
codegen_flags: <defaults>
</compile_context>

<pallas_src>
import functools

import jax
import jax.numpy as jnp
import numpy as np
from jax.experimental import pallas as pl
from jax.experimental.pallas import tpu as pltpu

EPS = 1e-5
_VMEM_LIMIT = 48 * 1024 * 1024   # <= v7x 64 MiB physical; ample on v5e/v6e
_TN_MAX = 2048                   # target point-tile size (multiple of 16)


def _round_up(v, m):
    return (v + m - 1) // m * m


# ---------------------------------------------------------------------------
# Fused per-point conv stack: optional intermediate emit + optional
# max-over-points reduction with a fused "max dense head".
# One pallas_call, grid = (batch, point tiles).
# ---------------------------------------------------------------------------
def _make_stack_kernel(layer_meta, dense_meta, emit_after, emit_max,
                       tn, n_valid, n_padded):
    n_layers = len(layer_meta)
    n_dense = len(dense_meta)
    needs_mask = n_valid < n_padded

    def kernel(*refs):
        pos = 0
        x_ref = refs[pos]; pos += 1
        w_refs, b_refs = [], []
        for _ in range(n_layers):
            w_refs.append(refs[pos]); b_refs.append(refs[pos + 1]); pos += 2
        dw_refs, db_refs = [], []
        for _ in range(n_dense):
            dw_refs.append(refs[pos]); db_refs.append(refs[pos + 1]); pos += 2
        emit_ref = None
        if emit_after is not None:
            emit_ref = refs[pos]; pos += 1
        max_ref = acc_ref = None
        if emit_max:
            max_ref = refs[pos]; pos += 1
            acc_ref = refs[pos]; pos += 1

        n_idx = pl.program_id(1)
        h = x_ref[0].astype(jnp.bfloat16)                 # (tn, Cin) bf16
        y = None
        for li, (per_batch_w, relu) in enumerate(layer_meta):
            w = w_refs[li][0] if per_batch_w else w_refs[li][...]
            y = jnp.dot(h, w, preferred_element_type=jnp.float32)
            # Defer the last layer's bias/ReLU past the max (applied once in
            # the finalize branch below): max_i relu(x_i+b) == relu(max_i x_i + b).
            defer = emit_max and (li == n_layers - 1)
            if not defer:
                y = y + b_refs[li][0].astype(jnp.float32)  # f32 epilogue
                if relu:
                    y = jnp.maximum(y, 0.0)
            if emit_after is not None and li == emit_after:
                emit_ref[0] = y.astype(emit_ref.dtype)
            if li + 1 < n_layers:
                h = y.astype(jnp.bfloat16)

        if emit_max:
            last_tile = pl.num_programs(1) - 1

            def update(tile_max):
                @pl.when(n_idx == 0)
                def _():
                    acc_ref[...] = tile_max

                @pl.when(n_idx > 0)
                def _():
                    acc_ref[...] = jnp.maximum(acc_ref[...], tile_max)

            if needs_mask:
                # Only the very last point tile contains padded rows; pay the
                # mask (narrow (tn,1) iota + select) only there.
                @pl.when(n_idx != last_tile)
                def _():
                    update(jnp.max(y, axis=0, keepdims=True))

                @pl.when(n_idx == last_tile)
                def _():
                    rows = (jax.lax.broadcasted_iota(jnp.int32, (y.shape[0], 1), 0)
                            + n_idx * tn)
                    ym = jnp.where(rows < n_valid, y, -jnp.inf)
                    update(jnp.max(ym, axis=0, keepdims=True))
            else:
                update(jnp.max(y, axis=0, keepdims=True))

            # Finalize: deferred bias/ReLU on the (1, C_last) accumulator,
            # then the fused dense head (TNet fc chain / seg global bias).
            @pl.when(n_idx == last_tile)
            def _():
                last_relu = layer_meta[-1][1]
                m = acc_ref[...] + b_refs[-1][0].astype(jnp.float32)
                if last_relu:
                    m = jnp.maximum(m, 0.0)
                for di in range(n_dense):
                    m = jnp.dot(m.astype(jnp.bfloat16), dw_refs[di][...],
                                preferred_element_type=jnp.float32)
                    m = m + db_refs[di][...].astype(jnp.float32)
                    if dense_meta[di]:
                        m = jnp.maximum(m, 0.0)
                max_ref[0] = m

    return kernel


def fused_pointwise_stack(x, layers, *, tn, n_valid,
                          emit_after=None, emit_max=False, max_dense=(),
                          emit_dtype=jnp.bfloat16):
    """Apply a stack of 1x1-conv layers (w, bias, relu) in one pallas_call.

    x: (B, N_pad, Cin).  Weight: (Cin, Cout) shared or (B, Cin, Cout)
    per-batch.  Bias: (Cout,) shared or (B, Cout) per-batch.  Returns the
    activation after layer `emit_after` (if set) and/or — when emit_max — the
    f32 max over valid points of the last layer, optionally pushed through the
    small dense head `max_dense` ([(W, b, relu), ...]), in that order.
    """
    B, n_padded, cin = x.shape
    assert n_padded % tn == 0
    n_tiles = n_padded // tn
    if emit_max:
        # Bias/ReLU of the last layer is deferred past the max, so the last
        # layer must not be the emitted intermediate.
        assert emit_after is None or emit_after < len(layers) - 1

    operands = [x.astype(jnp.bfloat16)]
    in_specs = [pl.BlockSpec((1, tn, cin), lambda b, n: (b, n, 0))]
    layer_meta = []
    for w, bias, relu in layers:
        per_batch_w = (w.ndim == 3)
        layer_meta.append((per_batch_w, bool(relu)))
        ci, co = w.shape[-2], w.shape[-1]
        operands.append(w.astype(jnp.bfloat16))
        if per_batch_w:
            in_specs.append(pl.BlockSpec((1, ci, co), lambda b, n: (b, 0, 0)))
        else:
            in_specs.append(pl.BlockSpec((ci, co), lambda b, n: (0, 0)))
        if bias.ndim == 2:                                # per-batch bias
            operands.append(bias.astype(jnp.float32).reshape(B, 1, co))
            in_specs.append(pl.BlockSpec((1, 1, co), lambda b, n: (b, 0, 0)))
        else:
            operands.append(bias.astype(jnp.float32).reshape(1, 1, co))
            in_specs.append(pl.BlockSpec((1, 1, co), lambda b, n: (0, 0, 0)))

    dense_meta = []
    for w, bias, relu in max_dense:
        ci, co = w.shape
        dense_meta.append(bool(relu))
        operands.append(w.astype(jnp.bfloat16))
        in_specs.append(pl.BlockSpec((ci, co), lambda b, n: (0, 0)))
        operands.append(bias.astype(jnp.float32).reshape(1, co))
        in_specs.append(pl.BlockSpec((1, co), lambda b, n: (0, 0)))

    out_shapes, out_specs, scratch_shapes = [], [], []
    if emit_after is not None:
        c_emit = layers[emit_after][0].shape[-1]
        out_shapes.append(jax.ShapeDtypeStruct((B, n_padded, c_emit), emit_dtype))
        out_specs.append(pl.BlockSpec((1, tn, c_emit), lambda b, n: (b, n, 0)))
    if emit_max:
        c_last = layers[-1][0].shape[-1]
        c_out = max_dense[-1][0].shape[-1] if len(max_dense) else c_last
        out_shapes.append(jax.ShapeDtypeStruct((B, 1, c_out), jnp.float32))
        out_specs.append(pl.BlockSpec((1, 1, c_out), lambda b, n: (b, 0, 0)))
        scratch_shapes.append(pltpu.VMEM((1, c_last), jnp.float32))

    kernel = _make_stack_kernel(tuple(layer_meta), tuple(dense_meta),
                                emit_after, emit_max, tn, n_valid, n_padded)
    semantics = ("parallel", "arbitrary") if emit_max else ("parallel", "parallel")
    single = len(out_shapes) == 1
    result = pl.pallas_call(
        kernel,
        out_shape=out_shapes[0] if single else tuple(out_shapes),
        grid=(B, n_tiles),
        in_specs=in_specs,
        out_specs=out_specs[0] if single else tuple(out_specs),
        scratch_shapes=scratch_shapes,
        compiler_params=pltpu.CompilerParams(
            dimension_semantics=semantics,
            vmem_limit_bytes=_VMEM_LIMIT),
    )(*operands)
    results = [result] if single else list(result)

    ret = []
    if emit_after is not None:
        ret.append(results.pop(0))
    if emit_max:
        ret.append(results.pop(0)[:, 0, :])               # (B, C_out) f32
    return tuple(ret) if len(ret) > 1 else ret[0]


# ---------------------------------------------------------------------------
# Deterministic parameter construction (BN folded into preceding matmul).
# ---------------------------------------------------------------------------
def _uniform_init(key, cin, cout):
    kw, kb = jax.random.split(key)
    s = 1.0 / np.sqrt(cin)
    w = jax.random.uniform(kw, (cin, cout), jnp.float32, -s, s)
    b = jax.random.uniform(kb, (cout,), jnp.float32, -s, s)
    return w, b


def _fold_bn(w, b):
    # inference-mode BN: mean=0, var=1, gamma=1, beta=0
    scale = 1.0 / np.sqrt(1.0 + EPS)
    return w * scale, b * scale


def init_params(key, output_dim=1024):
    keys = jax.random.split(key, 20)
    it = iter(keys)

    def dense(cin, cout):
        return _uniform_init(next(it), cin, cout)

    def conv_bn(cin, cout):
        return _fold_bn(*_uniform_init(next(it), cin, cout))

    p = {}
    # TNet3
    p["t3_c1"] = conv_bn(3, 64)
    p["t3_c2"] = conv_bn(64, 128)
    p["t3_c3"] = conv_bn(128, 1024)
    p["t3_fc1"] = conv_bn(1024, 128)          # fc1 + bn1
    p["t3_fc2"] = conv_bn(128, 128)           # fc2 + bn2
    p["t3_final"] = (0.01 * jax.random.normal(next(it), (128, 9), jnp.float32),
                     jnp.eye(3, dtype=jnp.float32).flatten())
    # TNetK (k = 64)
    p["tk_c1"] = conv_bn(64, 256)
    p["tk_c2"] = conv_bn(256, 1024)
    p["tk_fc1"] = conv_bn(1024, 512)
    p["tk_fc2"] = conv_bn(512, 256)
    p["tk_final"] = (0.01 * jax.random.normal(next(it), (256, 64 * 64), jnp.float32),
                     jnp.eye(64, dtype=jnp.float32).flatten())
    # Backbone
    p["c1"] = conv_bn(3, 64)
    p["c2"] = conv_bn(64, 64)
    p["c3"] = conv_bn(64, 64)
    p["c4"] = conv_bn(64, 128)
    p["c5"] = dense(128, 1024)                # conv5: no BN, no ReLU
    # Segmentation head
    p["seg1"] = conv_bn(1088, 256)
    p["seg2"] = conv_bn(256, 256)
    p["seg3"] = conv_bn(256, 128)
    p["seg4"] = dense(128, output_dim)        # no BN, no ReLU
    return p


# ---------------------------------------------------------------------------
# Forward pass (Pallas).
# ---------------------------------------------------------------------------
def pn_forward(x, p, *, use_tnet=False, out_dtype=jnp.float32):
    B, N, _ = x.shape
    # Pick the point tile: as large as possible (<= _TN_MAX) while minimizing
    # padding; multiple of 16 for bf16 sublane packing.
    n_tiles = -(-N // _TN_MAX)
    tn = _round_up(-(-N // n_tiles), 16)
    n_pad = tn * n_tiles

    # Pad points to a tile multiple, pad Cin 3 -> 8 (MXU-friendlier K), bf16.
    x8 = jnp.pad(x, ((0, 0), (0, n_pad - N), (0, 5))).astype(jnp.bfloat16)

    def pad_cin(w):                                         # (3, Co) -> (8, Co)
        return jnp.pad(w, ((0, 5), (0, 0)))

    if use_tnet:
        # ---- TNet3: conv stack + max + fc head fused in one pallas_call ----
        w9, b9 = p["t3_final"]
        t3 = fused_pointwise_stack(
            x8,
            [(pad_cin(p["t3_c1"][0]), p["t3_c1"][1], True),
             (p["t3_c2"][0], p["t3_c2"][1], True),
             (p["t3_c3"][0], p["t3_c3"][1], True)],
            tn=tn, n_valid=N, emit_max=True,
            max_dense=[(p["t3_fc1"][0], p["t3_fc1"][1], True),
                       (p["t3_fc2"][0], p["t3_fc2"][1], True),
                       (jnp.pad(w9, ((0, 0), (0, 119))),
                        jnp.pad(b9, (0, 119)), False)],
        )[:, :9].reshape(B, 3, 3)

        # Fold the 3x3 input transform into conv1 (per-batch weight) -> no bmm.
        w1 = jnp.einsum("bij,jo->bio", t3, p["c1"][0])      # (B, 3, 64)
        w1 = jnp.pad(w1, ((0, 0), (0, 5), (0, 0)))          # (B, 8, 64)

        # ---- conv1/conv2 + TNetK convs + max + fc head fused; out2 emitted ----
        wk, bk = p["tk_final"]
        out2, tk_flat = fused_pointwise_stack(
            x8,
            [(w1, p["c1"][1], True),
             (p["c2"][0], p["c2"][1], True),
             (p["tk_c1"][0], p["tk_c1"][1], True),
             (p["tk_c2"][0], p["tk_c2"][1], True)],
            tn=tn, n_valid=N, emit_after=1, emit_max=True,
            max_dense=[(p["tk_fc1"][0], p["tk_fc1"][1], True),
                       (p["tk_fc2"][0], p["tk_fc2"][1], True),
                       (wk, bk, False)],
        )
        tk = tk_flat.reshape(B, 64, 64)

        # Fold the 64x64 feature transform into conv3 and seg_conv1 -> no bmm.
        w3 = jnp.einsum("bij,jo->bio", tk, p["c3"][0])            # (B, 64, 64)
        wseg1_pt = jnp.einsum("bij,jo->bio", tk, p["seg1"][0][:64])  # (B, 64, 256)

        # ---- conv3/conv4/conv5 + global max + seg global-bias fused ----
        # seg_conv1's 1024 "global" channels collapse to a per-batch bias:
        # relu(out2 @ Wa + (g5_max @ Wb + b)) — the 1088-ch concat is never
        # built and the (B,1024) global feature never leaves the kernel.
        bias1 = fused_pointwise_stack(
            out2,
            [(w3, p["c3"][1], True),
             (p["c4"][0], p["c4"][1], True),
             (p["c5"][0], p["c5"][1], False)],
            tn=tn, n_valid=N, emit_max=True,
            max_dense=[(p["seg1"][0][64:], p["seg1"][1], False)],
        )
    else:
        wseg1_pt = p["seg1"][0][:64]
        # ---- conv1..conv5 + global max + seg global-bias fused; out2 emitted ----
        out2, bias1 = fused_pointwise_stack(
            x8,
            [(pad_cin(p["c1"][0]), p["c1"][1], True),
             (p["c2"][0], p["c2"][1], True),
             (p["c3"][0], p["c3"][1], True),
             (p["c4"][0], p["c4"][1], True),
             (p["c5"][0], p["c5"][1], False)],
            tn=tn, n_valid=N, emit_after=1, emit_max=True,
            max_dense=[(p["seg1"][0][64:], p["seg1"][1], False)],
        )

    out = fused_pointwise_stack(
        out2,
        [(wseg1_pt, bias1, True),
         (p["seg2"][0], p["seg2"][1], True),
         (p["seg3"][0], p["seg3"][1], True),
         (p["seg4"][0], p["seg4"][1], False)],
        tn=tn, n_valid=N, emit_after=3, emit_dtype=out_dtype)

    return out[:, :N, :]        # == PyTorch out.transpose(1, 2)


# ---------------------------------------------------------------------------
# Pure-JAX f32 reference (sanity check).
# ---------------------------------------------------------------------------
def pn_reference(x, p, *, use_tnet=False):
    def pw(h, wb, relu=True):
        w, b = wb
        y = jnp.einsum("bnc,co->bno", h, w) + b
        return jnp.maximum(y, 0.0) if relu else y

    def lin(h, wb, relu=True):
        w, b = wb
        y = h @ w + b
        return jnp.maximum(y, 0.0) if relu else y

    B, N, _ = x.shape
    if use_tnet:
        h = pw(x, p["t3_c1"]); h = pw(h, p["t3_c2"]); h = pw(h, p["t3_c3"])
        g = jnp.max(h, axis=1)
        g = lin(g, p["t3_fc1"]); g = lin(g, p["t3_fc2"])
        t3 = lin(g, p["t3_final"], relu=False).reshape(B, 3, 3)
        x = jnp.einsum("bnk,bkm->bnm", x, t3)
    out1 = pw(x, p["c1"]); out2 = pw(out1, p["c2"])
    if use_tnet:
        h = pw(out2, p["tk_c1"]); h = pw(h, p["tk_c2"])
        g = jnp.max(h, axis=1)
        g = lin(g, p["tk_fc1"]); g = lin(g, p["tk_fc2"])
        tk = lin(g, p["tk_final"], relu=False).reshape(B, 64, 64)
        out2 = jnp.einsum("bnk,bkm->bnm", out2, tk)
    out3 = pw(out2, p["c3"]); out4 = pw(out3, p["c4"])
    out5 = pw(out4, p["c5"], relu=False)
    out_max = jnp.max(out5, axis=1)                         # (B, 1024)
    w1seg, b1seg = p["seg1"]
    seg1 = jnp.maximum(jnp.einsum("bnc,co->bno", out2, w1seg[:64])
                       + (out_max @ w1seg[64:])[:, None, :] + b1seg, 0.0)
    seg2 = pw(seg1, p["seg2"]); seg3 = pw(seg2, p["seg3"])
    return pw(seg3, p["seg4"], relu=False)


if __name__ == "__main__":
    key = jax.random.PRNGKey(0)
    kx, kp = jax.random.split(key)

    B, N, output_dim = 2, 128, 256
    x = jax.random.normal(kx, (B, N, 3), jnp.float32)       # point cloud (B, N, 3)
    params = init_params(kp, output_dim=output_dim)

    for use_tnet in (False, True):
        fwd = jax.jit(functools.partial(pn_forward, use_tnet=use_tnet))
        out = jax.block_until_ready(fwd(x, params))
        assert out.shape == (B, N, output_dim), (use_tnet, out.shape)
        assert bool(jnp.all(jnp.isfinite(out)))
        ref = jax.block_until_ready(pn_reference(x, params, use_tnet=use_tnet))
        np.testing.assert_allclose(np.asarray(out), np.asarray(ref),
                                   rtol=5e-2, atol=5e-2)

    print("KERNEL_OK")
</pallas_src>

<mosaic_0001>
module attributes {stable_mosaic.version = 11 : i64} {
  func.func @kernel(%arg0: i32, %arg1: i32, %arg2: memref<1x128x64xbf16, #tpu.memory_space<vmem>>, %arg3: memref<64x256xbf16, #tpu.memory_space<vmem>>, %arg4: memref<1x1x256xf32, #tpu.memory_space<vmem>>, %arg5: memref<256x256xbf16, #tpu.memory_space<vmem>>, %arg6: memref<1x1x256xf32, #tpu.memory_space<vmem>>, %arg7: memref<256x128xbf16, #tpu.memory_space<vmem>>, %arg8: memref<1x1x128xf32, #tpu.memory_space<vmem>>, %arg9: memref<128x256xbf16, #tpu.memory_space<vmem>>, %arg10: memref<1x1x256xf32, #tpu.memory_space<vmem>>, %arg11: memref<1x128x256xf32, #tpu.memory_space<vmem>>) attributes {dimension_semantics = [#tpu.dimension_semantics<parallel>, #tpu.dimension_semantics<parallel>], iteration_bounds = array<i64: 2, 1>, scalar_prefetch = 0 : i64, scratch_operands = 0 : i64, tpu.core_type = #tpu.core_type<tc>, window_params = [{transform_indices = @transform_0, window_bounds = array<i64: 1, 128, 64>}, {pipeline_mode = #tpu.pipeline_mode<synchronous>, transform_indices = @transform_1, window_bounds = array<i64: 64, 256>}, {transform_indices = @transform_2, window_bounds = array<i64: 1, 1, 256>}, {pipeline_mode = #tpu.pipeline_mode<synchronous>, transform_indices = @transform_3, window_bounds = array<i64: 256, 256>}, {pipeline_mode = #tpu.pipeline_mode<synchronous>, transform_indices = @transform_4, window_bounds = array<i64: 1, 1, 256>}, {pipeline_mode = #tpu.pipeline_mode<synchronous>, transform_indices = @transform_5, window_bounds = array<i64: 256, 128>}, {pipeline_mode = #tpu.pipeline_mode<synchronous>, transform_indices = @transform_6, window_bounds = array<i64: 1, 1, 128>}, {pipeline_mode = #tpu.pipeline_mode<synchronous>, transform_indices = @transform_7, window_bounds = array<i64: 128, 256>}, {pipeline_mode = #tpu.pipeline_mode<synchronous>, transform_indices = @transform_8, window_bounds = array<i64: 1, 1, 256>}, {transform_indices = @transform_9, window_bounds = array<i64: 1, 128, 256>}]} {
    %c0 = arith.constant 0 : index
    %c0_0 = arith.constant 0 : index
    %c0_1 = arith.constant 0 : index
    %0 = vector.load %arg2[%c0, %c0_0, %c0_1] : memref<1x128x64xbf16, #tpu.memory_space<vmem>>, vector<1x128x64xbf16>
    %1 = vector.shape_cast %0 : vector<1x128x64xbf16> to vector<128x64xbf16>
    %c0_2 = arith.constant 0 : index
    %c0_3 = arith.constant 0 : index
    %2 = vector.load %arg3[%c0_2, %c0_3] : memref<64x256xbf16, #tpu.memory_space<vmem>>, vector<64x256xbf16>
    %cst = arith.constant dense<0.000000e+00> : vector<128x256xf32>
    %3 = tpu.matmul %1, %2, %cst {dimension_numbers = #tpu.dot_dimension_numbers<[1], [0], [0], [1], [0, 0, 1, 1], [], []>} : vector<128x64xbf16>, vector<64x256xbf16>, vector<128x256xf32> -> vector<128x256xf32>
    %c0_4 = arith.constant 0 : index
    %c0_5 = arith.constant 0 : index
    %c0_6 = arith.constant 0 : index
    %4 = vector.load %arg4[%c0_4, %c0_5, %c0_6] : memref<1x1x256xf32, #tpu.memory_space<vmem>>, vector<1x1x256xf32>
    %5 = vector.shape_cast %4 : vector<1x1x256xf32> to vector<1x256xf32>
    %6 = vector.broadcast %5 : vector<1x256xf32> to vector<128x256xf32>
    %7 = arith.addf %3, %6 : vector<128x256xf32>
    %cst_7 = arith.constant 0.000000e+00 : f32
    %8 = vector.broadcast %cst_7 : f32 to vector<128x256xf32>
    %9 = arith.maximumf %7, %8 : vector<128x256xf32>
    %10 = arith.truncf %9 : vector<128x256xf32> to vector<128x256xbf16>
    %c0_8 = arith.constant 0 : index
    %c0_9 = arith.constant 0 : index
    %11 = vector.load %arg5[%c0_8, %c0_9] : memref<256x256xbf16, #tpu.memory_space<vmem>>, vector<256x256xbf16>
    %cst_10 = arith.constant dense<0.000000e+00> : vector<128x256xf32>
    %12 = tpu.matmul %10, %11, %cst_10 {dimension_numbers = #tpu.dot_dimension_numbers<[1], [0], [0], [1], [0, 0, 1, 1], [], []>} : vector<128x256xbf16>, vector<256x256xbf16>, vector<128x256xf32> -> vector<128x256xf32>
    %c0_11 = arith.constant 0 : index
    %c0_12 = arith.constant 0 : index
    %c0_13 = arith.constant 0 : index
    %13 = vector.load %arg6[%c0_11, %c0_12, %c0_13] : memref<1x1x256xf32, #tpu.memory_space<vmem>>, vector<1x1x256xf32>
    %14 = vector.shape_cast %13 : vector<1x1x256xf32> to vector<1x256xf32>
    %15 = vector.broadcast %14 : vector<1x256xf32> to vector<128x256xf32>
    %16 = arith.addf %12, %15 : vector<128x256xf32>
    %cst_14 = arith.constant 0.000000e+00 : f32
    %17 = vector.broadcast %cst_14 : f32 to vector<128x256xf32>
    %18 = arith.maximumf %16, %17 : vector<128x256xf32>
    %19 = arith.truncf %18 : vector<128x256xf32> to vector<128x256xbf16>
    %c0_15 = arith.constant 0 : index
    %c0_16 = arith.constant 0 : index
    %20 = vector.load %arg7[%c0_15, %c0_16] : memref<256x128xbf16, #tpu.memory_space<vmem>>, vector<256x128xbf16>
    %cst_17 = arith.constant dense<0.000000e+00> : vector<128x128xf32>
    %21 = tpu.matmul %19, %20, %cst_17 {dimension_numbers = #tpu.dot_dimension_numbers<[1], [0], [0], [1], [0, 0, 1, 1], [], []>} : vector<128x256xbf16>, vector<256x128xbf16>, vector<128x128xf32> -> vector<128x128xf32>
    %c0_18 = arith.constant 0 : index
    %c0_19 = arith.constant 0 : index
    %c0_20 = arith.constant 0 : index
    %22 = vector.load %arg8[%c0_18, %c0_19, %c0_20] : memref<1x1x128xf32, #tpu.memory_space<vmem>>, vector<1x1x128xf32>
    %23 = vector.shape_cast %22 : vector<1x1x128xf32> to vector<1x128xf32>
    %24 = vector.broadcast %23 : vector<1x128xf32> to vector<128x128xf32>
    %25 = arith.addf %21, %24 : vector<128x128xf32>
    %cst_21 = arith.constant 0.000000e+00 : f32
    %26 = vector.broadcast %cst_21 : f32 to vector<128x128xf32>
    %27 = arith.maximumf %25, %26 : vector<128x128xf32>
    %28 = arith.truncf %27 : vector<128x128xf32> to vector<128x128xbf16>
    %c0_22 = arith.constant 0 : index
    %c0_23 = arith.constant 0 : index
    %29 = vector.load %arg9[%c0_22, %c0_23] : memref<128x256xbf16, #tpu.memory_space<vmem>>, vector<128x256xbf16>
    %cst_24 = arith.constant dense<0.000000e+00> : vector<128x256xf32>
    %30 = tpu.matmul %28, %29, %cst_24 {dimension_numbers = #tpu.dot_dimension_numbers<[1], [0], [0], [1], [0, 0, 1, 1], [], []>} : vector<128x128xbf16>, vector<128x256xbf16>, vector<128x256xf32> -> vector<128x256xf32>
    %c0_25 = arith.constant 0 : index
    %c0_26 = arith.constant 0 : index
    %c0_27 = arith.constant 0 : index
    %31 = vector.load %arg10[%c0_25, %c0_26, %c0_27] : memref<1x1x256xf32, #tpu.memory_space<vmem>>, vector<1x1x256xf32>
    %32 = vector.shape_cast %31 : vector<1x1x256xf32> to vector<1x256xf32>
    %33 = vector.broadcast %32 : vector<1x256xf32> to vector<128x256xf32>
    %34 = arith.addf %30, %33 : vector<128x256xf32>
    %c0_28 = arith.constant 0 : index
    %c0_29 = arith.constant 0 : index
    %c0_30 = arith.constant 0 : index
    %35 = vector.load %arg11[%c0_28, %c0_29, %c0_30] : memref<1x128x256xf32, #tpu.memory_space<vmem>>, vector<1x128x256xf32>
    %36 = vector.shape_cast %35 : vector<1x128x256xf32> to vector<128x256xf32>
    %37 = vector.shape_cast %34 : vector<128x256xf32> to vector<1x128x256xf32>
    tpu.vector_store %arg11[%c0_28, %c0_29, %c0_30], %37 {strides = array<i32>} : memref<1x128x256xf32, #tpu.memory_space<vmem>>, vector<1x128x256xf32>,
    return
  }
  func.func @transform_0(%arg0: i32, %arg1: i32) -> (i32, i32, i32) {
    %c0_i32 = arith.constant 0 : i32
    %c0_i32_0 = arith.constant 0 : i32
    return %arg0, %arg1, %c0_i32 : i32, i32, i32
  }
  func.func @transform_1(%arg0: i32, %arg1: i32) -> (i32, i32) {
    %c0_i32 = arith.constant 0 : i32
    %c0_i32_0 = arith.constant 0 : i32
    %c0_i32_1 = arith.constant 0 : i32
    return %c0_i32, %c0_i32_0 : i32, i32
  }
  func.func @transform_2(%arg0: i32, %arg1: i32) -> (i32, i32, i32) {
    %c0_i32 = arith.constant 0 : i32
    %c0_i32_0 = arith.constant 0 : i32
    %c0_i32_1 = arith.constant 0 : i32
    return %arg0, %c0_i32, %c0_i32_0 : i32, i32, i32
  }
  func.func @transform_3(%arg0: i32, %arg1: i32) -> (i32, i32) {
    %c0_i32 = arith.constant 0 : i32
    %c0_i32_0 = arith.constant 0 : i32
    %c0_i32_1 = arith.constant 0 : i32
    return %c0_i32, %c0_i32_0 : i32, i32
  }
  func.func @transform_4(%arg0: i32, %arg1: i32) -> (i32, i32, i32) {
    %c0_i32 = arith.constant 0 : i32
    %c0_i32_0 = arith.constant 0 : i32
    %c0_i32_1 = arith.constant 0 : i32
    %c0_i32_2 = arith.constant 0 : i32
    return %c0_i32, %c0_i32_0, %c0_i32_1 : i32, i32, i32
  }
  func.func @transform_5(%arg0: i32, %arg1: i32) -> (i32, i32) {
    %c0_i32 = arith.constant 0 : i32
    %c0_i32_0 = arith.constant 0 : i32
    %c0_i32_1 = arith.constant 0 : i32
    return %c0_i32, %c0_i32_0 : i32, i32
  }
  func.func @transform_6(%arg0: i32, %arg1: i32) -> (i32, i32, i32) {
    %c0_i32 = arith.constant 0 : i32
    %c0_i32_0 = arith.constant 0 : i32
    %c0_i32_1 = arith.constant 0 : i32
    %c0_i32_2 = arith.constant 0 : i32
    return %c0_i32, %c0_i32_0, %c0_i32_1 : i32, i32, i32
  }
  func.func @transform_7(%arg0: i32, %arg1: i32) -> (i32, i32) {
    %c0_i32 = arith.constant 0 : i32
    %c0_i32_0 = arith.constant 0 : i32
    %c0_i32_1 = arith.constant 0 : i32
    return %c0_i32, %c0_i32_0 : i32, i32
  }
  func.func @transform_8(%arg0: i32, %arg1: i32) -> (i32, i32, i32) {
    %c0_i32 = arith.constant 0 : i32
    %c0_i32_0 = arith.constant 0 : i32
    %c0_i32_1 = arith.constant 0 : i32
    %c0_i32_2 = arith.constant 0 : i32
    return %c0_i32, %c0_i32_0, %c0_i32_1 : i32, i32, i32
  }
  func.func @transform_9(%arg0: i32, %arg1: i32) -> (i32, i32, i32) {
    %c0_i32 = arith.constant 0 : i32
    %c0_i32_0 = arith.constant 0 : i32
    return %arg0, %arg1, %c0_i32 : i32, i32, i32
  }
}

module attributes {stable_mosaic.version = 11 : i64} {
  func.func @kernel(%arg0: i32, %arg1: i32, %arg2: memref<1x128x8xbf16, #tpu.memory_space<vmem>>, %arg3: memref<8x64xbf16, #tpu.memory_space<vmem>>, %arg4: memref<1x1x64xf32, #tpu.memory_space<vmem>>, %arg5: memref<64x64xbf16, #tpu.memory_space<vmem>>, %arg6: memref<1x1x64xf32, #tpu.memory_space<vmem>>, %arg7: memref<64x64xbf16, #tpu.memory_space<vmem>>, %arg8: memref<1x1x64xf32, #tpu.memory_space<vmem>>, %arg9: memref<64x128xbf16, #tpu.memory_space<vmem>>, %arg10: memref<1x1x128xf32, #tpu.memory_space<vmem>>, %arg11: memref<128x1024xbf16, #tpu.memory_space<vmem>>, %arg12: memref<1x1x1024xf32, #tpu.memory_space<vmem>>, %arg13: memref<1024x256xbf16, #tpu.memory_space<vmem>>, %arg14: memref<1x256xf32, #tpu.memory_space<vmem>>, %arg15: memref<1x128x64xbf16, #tpu.memory_space<vmem>>, %arg16: memref<1x1x256xf32, #tpu.memory_space<vmem>>, %arg17: memref<1x1024xf32, #tpu.memory_space<vmem>>) attributes {dimension_semantics = [#tpu.dimension_semantics<parallel>, #tpu.dimension_semantics<arbitrary>], iteration_bounds = array<i64: 2, 1>, scalar_prefetch = 0 : i64, scratch_operands = 1 : i64, tpu.core_type = #tpu.core_type<tc>, window_params = [{transform_indices = @transform_0, window_bounds = array<i64: 1, 128, 8>}, {pipeline_mode = #tpu.pipeline_mode<synchronous>, transform_indices = @transform_1, window_bounds = array<i64: 8, 64>}, {pipeline_mode = #tpu.pipeline_mode<synchronous>, transform_indices = @transform_2, window_bounds = array<i64: 1, 1, 64>}, {pipeline_mode = #tpu.pipeline_mode<synchronous>, transform_indices = @transform_3, window_bounds = array<i64: 64, 64>}, {pipeline_mode = #tpu.pipeline_mode<synchronous>, transform_indices = @transform_4, window_bounds = array<i64: 1, 1, 64>}, {pipeline_mode = #tpu.pipeline_mode<synchronous>, transform_indices = @transform_5, window_bounds = array<i64: 64, 64>}, {pipeline_mode = #tpu.pipeline_mode<synchronous>, transform_indices = @transform_6, window_bounds = array<i64: 1, 1, 64>}, {pipeline_mode = #tpu.pipeline_mode<synchronous>, transform_indices = @transform_7, window_bounds = array<i64: 64, 128>}, {pipeline_mode = #tpu.pipeline_mode<synchronous>, transform_indices = @transform_8, window_bounds = array<i64: 1, 1, 128>}, {pipeline_mode = #tpu.pipeline_mode<synchronous>, transform_indices = @transform_9, window_bounds = array<i64: 128, 1024>}, {pipeline_mode = #tpu.pipeline_mode<synchronous>, transform_indices = @transform_10, window_bounds = array<i64: 1, 1, 1024>}, {pipeline_mode = #tpu.pipeline_mode<synchronous>, transform_indices = @transform_11, window_bounds = array<i64: 1024, 256>}, {pipeline_mode = #tpu.pipeline_mode<synchronous>, transform_indices = @transform_12, window_bounds = array<i64: 1, 256>}, {transform_indices = @transform_13, window_bounds = array<i64: 1, 128, 64>}, {transform_indices = @transform_14, window_bounds = array<i64: 1, 1, 256>}]} {
    %c0 = arith.constant 0 : index
    %c0_0 = arith.constant 0 : index
    %c0_1 = arith.constant 0 : index
    %0 = vector.load %arg2[%c0, %c0_0, %c0_1] : memref<1x128x8xbf16, #tpu.memory_space<vmem>>, vector<1x128x8xbf16>
    %1 = vector.shape_cast %0 : vector<1x128x8xbf16> to vector<128x8xbf16>
    %c0_2 = arith.constant 0 : index
    %c0_3 = arith.constant 0 : index
    %2 = vector.load %arg3[%c0_2, %c0_3] : memref<8x64xbf16, #tpu.memory_space<vmem>>, vector<8x64xbf16>
    %cst = arith.constant dense<0.000000e+00> : vector<128x64xf32>
    %3 = tpu.matmul %1, %2, %cst {dimension_numbers = #tpu.dot_dimension_numbers<[1], [0], [0], [1], [0, 0, 1, 1], [], []>} : vector<128x8xbf16>, vector<8x64xbf16>, vector<128x64xf32> -> vector<128x64xf32>
    %c0_4 = arith.constant 0 : index
    %c0_5 = arith.constant 0 : index
    %c0_6 = arith.constant 0 : index
    %4 = vector.load %arg4[%c0_4, %c0_5, %c0_6] : memref<1x1x64xf32, #tpu.memory_space<vmem>>, vector<1x1x64xf32>
    %5 = vector.shape_cast %4 : vector<1x1x64xf32> to vector<1x64xf32>
    %6 = vector.broadcast %5 : vector<1x64xf32> to vector<128x64xf32>
    %7 = arith.addf %3, %6 : vector<128x64xf32>
    %cst_7 = arith.constant 0.000000e+00 : f32
    %8 = vector.broadcast %cst_7 : f32 to vector<128x64xf32>
    %9 = arith.maximumf %7, %8 : vector<128x64xf32>
    %10 = arith.truncf %9 : vector<128x64xf32> to vector<128x64xbf16>
    %c0_8 = arith.constant 0 : index
    %c0_9 = arith.constant 0 : index
    %11 = vector.load %arg5[%c0_8, %c0_9] : memref<64x64xbf16, #tpu.memory_space<vmem>>, vector<64x64xbf16>
    %cst_10 = arith.constant dense<0.000000e+00> : vector<128x64xf32>
    %12 = tpu.matmul %10, %11, %cst_10 {dimension_numbers = #tpu.dot_dimension_numbers<[1], [0], [0], [1], [0, 0, 1, 1], [], []>} : vector<128x64xbf16>, vector<64x64xbf16>, vector<128x64xf32> -> vector<128x64xf32>
    %c0_11 = arith.constant 0 : index
    %c0_12 = arith.constant 0 : index
    %c0_13 = arith.constant 0 : index
    %13 = vector.load %arg6[%c0_11, %c0_12, %c0_13] : memref<1x1x64xf32, #tpu.memory_space<vmem>>, vector<1x1x64xf32>
    %14 = vector.shape_cast %13 : vector<1x1x64xf32> to vector<1x64xf32>
    %15 = vector.broadcast %14 : vector<1x64xf32> to vector<128x64xf32>
    %16 = arith.addf %12, %15 : vector<128x64xf32>
    %cst_14 = arith.constant 0.000000e+00 : f32
    %17 = vector.broadcast %cst_14 : f32 to vector<128x64xf32>
    %18 = arith.maximumf %16, %17 : vector<128x64xf32>
    %19 = arith.truncf %18 : vector<128x64xf32> to vector<128x64xbf16>
    %c0_15 = arith.constant 0 : index
    %c0_16 = arith.constant 0 : index
    %c0_17 = arith.constant 0 : index
    %20 = vector.load %arg15[%c0_15, %c0_16, %c0_17] : memref<1x128x64xbf16, #tpu.memory_space<vmem>>, vector<1x128x64xbf16>
    %21 = vector.shape_cast %20 : vector<1x128x64xbf16> to vector<128x64xbf16>
    %22 = vector.shape_cast %19 : vector<128x64xbf16> to vector<1x128x64xbf16>
    tpu.vector_store %arg15[%c0_15, %c0_16, %c0_17], %22 {strides = array<i32>} : memref<1x128x64xbf16, #tpu.memory_space<vmem>>, vector<1x128x64xbf16>,
    %23 = arith.truncf %18 : vector<128x64xf32> to vector<128x64xbf16>
    %c0_18 = arith.constant 0 : index
    %c0_19 = arith.constant 0 : index
    %24 = vector.load %arg7[%c0_18, %c0_19] : memref<64x64xbf16, #tpu.memory_space<vmem>>, vector<64x64xbf16>
    %cst_20 = arith.constant dense<0.000000e+00> : vector<128x64xf32>
    %25 = tpu.matmul %23, %24, %cst_20 {dimension_numbers = #tpu.dot_dimension_numbers<[1], [0], [0], [1], [0, 0, 1, 1], [], []>} : vector<128x64xbf16>, vector<64x64xbf16>, vector<128x64xf32> -> vector<128x64xf32>
    %c0_21 = arith.constant 0 : index
    %c0_22 = arith.constant 0 : index
    %c0_23 = arith.constant 0 : index
    %26 = vector.load %arg8[%c0_21, %c0_22, %c0_23] : memref<1x1x64xf32, #tpu.memory_space<vmem>>, vector<1x1x64xf32>
    %27 = vector.shape_cast %26 : vector<1x1x64xf32> to vector<1x64xf32>
    %28 = vector.broadcast %27 : vector<1x64xf32> to vector<128x64xf32>
    %29 = arith.addf %25, %28 : vector<128x64xf32>
    %cst_24 = arith.constant 0.000000e+00 : f32
    %30 = vector.broadcast %cst_24 : f32 to vector<128x64xf32>
    %31 = arith.maximumf %29, %30 : vector<128x64xf32>
    %32 = arith.truncf %31 : vector<128x64xf32> to vector<128x64xbf16>
    %c0_25 = arith.constant 0 : index
    %c0_26 = arith.constant 0 : index
    %33 = vector.load %arg9[%c0_25, %c0_26] : memref<64x128xbf16, #tpu.memory_space<vmem>>, vector<64x128xbf16>
    %cst_27 = arith.constant dense<0.000000e+00> : vector<128x128xf32>
    %34 = tpu.matmul %32, %33, %cst_27 {dimension_numbers = #tpu.dot_dimension_numbers<[1], [0], [0], [1], [0, 0, 1, 1], [], []>} : vector<128x64xbf16>, vector<64x128xbf16>, vector<128x128xf32> -> vector<128x128xf32>
    %c0_28 = arith.constant 0 : index
    %c0_29 = arith.constant 0 : index
    %c0_30 = arith.constant 0 : index
    %35 = vector.load %arg10[%c0_28, %c0_29, %c0_30] : memref<1x1x128xf32, #tpu.memory_space<vmem>>, vector<1x1x128xf32>
    %36 = vector.shape_cast %35 : vector<1x1x128xf32> to vector<1x128xf32>
    %37 = vector.broadcast %36 : vector<1x128xf32> to vector<128x128xf32>
    %38 = arith.addf %34, %37 : vector<128x128xf32>
    %cst_31 = arith.constant 0.000000e+00 : f32
    %39 = vector.broadcast %cst_31 : f32 to vector<128x128xf32>
    %40 = arith.maximumf %38, %39 : vector<128x128xf32>
    %41 = arith.truncf %40 : vector<128x128xf32> to vector<128x128xbf16>
    %c0_32 = arith.constant 0 : index
    %c0_33 = arith.constant 0 : index
    %42 = vector.load %arg11[%c0_32, %c0_33] : memref<128x1024xbf16, #tpu.memory_space<vmem>>, vector<128x1024xbf16>
    %cst_34 = arith.constant dense<0.000000e+00> : vector<128x1024xf32>
    %43 = tpu.matmul %41, %42, %cst_34 {dimension_numbers = #tpu.dot_dimension_numbers<[1], [0], [0], [1], [0, 0, 1, 1], [], []>} : vector<128x128xbf16>, vector<128x1024xbf16>, vector<128x1024xf32> -> vector<128x1024xf32>
    %cst_35 = arith.constant dense<0xFF800000> : vector<1024xf32>
    %44 = vector.multi_reduction <maximumf>, %43, %cst_35 [0] : vector<128x1024xf32> to vector<1024xf32>
    %45 = vector.shape_cast %44 : vector<1024xf32> to vector<1x1024xf32>
    %c0_i32 = arith.constant 0 : i32
    %46 = arith.cmpi eq, %arg1, %c0_i32 : i32
    %47 = arith.extui %46 : i1 to i32
    %c0_i32_36 = arith.constant 0 : i32
    %48 = arith.cmpi ne, %47, %c0_i32_36 : i32
    scf.if %48 {
      %c0_41 = arith.constant 0 : index
      %c0_42 = arith.constant 0 : index
      %55 = vector.load %arg17[%c0_41, %c0_42] : memref<1x1024xf32, #tpu.memory_space<vmem>>, vector<1x1024xf32>
      tpu.vector_store %arg17[%c0_41, %c0_42], %45 {strides = array<i32>} : memref<1x1024xf32, #tpu.memory_space<vmem>>, vector<1x1024xf32>,
    } else {
    }
    %c0_i32_37 = arith.constant 0 : i32
    %49 = arith.cmpi sgt, %arg1, %c0_i32_37 : i32
    %50 = arith.extui %49 : i1 to i32
    %c0_i32_38 = arith.constant 0 : i32
    %51 = arith.cmpi ne, %50, %c0_i32_38 : i32
    scf.if %51 {
      %c0_41 = arith.constant 0 : index
      %c0_42 = arith.constant 0 : index
      %55 = vector.load %arg17[%c0_41, %c0_42] : memref<1x1024xf32, #tpu.memory_space<vmem>>, vector<1x1024xf32>
      %56 = arith.maximumf %55, %45 : vector<1x1024xf32>
      %c0_43 = arith.constant 0 : index
      %c0_44 = arith.constant 0 : index
      %57 = vector.load %arg17[%c0_43, %c0_44] : memref<1x1024xf32, #tpu.memory_space<vmem>>, vector<1x1024xf32>
      tpu.vector_store %arg17[%c0_43, %c0_44], %56 {strides = array<i32>} : memref<1x1024xf32, #tpu.memory_space<vmem>>, vector<1x1024xf32>,
    } else {
    }
    %c0_i32_39 = arith.constant 0 : i32
    %52 = arith.cmpi eq, %arg1, %c0_i32_39 : i32
    %53 = arith.extui %52 : i1 to i32
    %c0_i32_40 = arith.constant 0 : i32
    %54 = arith.cmpi ne, %53, %c0_i32_40 : i32
    scf.if %54 {
      %c0_41 = arith.constant 0 : index
      %c0_42 = arith.constant 0 : index
      %55 = vector.load %arg17[%c0_41, %c0_42] : memref<1x1024xf32, #tpu.memory_space<vmem>>, vector<1x1024xf32>
      %c0_43 = arith.constant 0 : index
      %c0_44 = arith.constant 0 : index
      %c0_45 = arith.constant 0 : index
      %56 = vector.load %arg12[%c0_43, %c0_44, %c0_45] : memref<1x1x1024xf32, #tpu.memory_space<vmem>>, vector<1x1x1024xf32>
      %57 = vector.shape_cast %56 : vector<1x1x1024xf32> to vector<1x1024xf32>
      %58 = arith.addf %55, %57 : vector<1x1024xf32>
      %59 = arith.truncf %58 : vector<1x1024xf32> to vector<1x1024xbf16>
      %c0_46 = arith.constant 0 : index
      %c0_47 = arith.constant 0 : index
      %60 = vector.load %arg13[%c0_46, %c0_47] : memref<1024x256xbf16, #tpu.memory_space<vmem>>, vector<1024x256xbf16>
      %cst_48 = arith.constant dense<0.000000e+00> : vector<1x256xf32>
      %61 = tpu.matmul %59, %60, %cst_48 {dimension_numbers = #tpu.dot_dimension_numbers<[1], [0], [0], [1], [0, 0, 1, 1], [], []>} : vector<1x1024xbf16>, vector<1024x256xbf16>, vector<1x256xf32> -> vector<1x256xf32>
      %c0_49 = arith.constant 0 : index
      %c0_50 = arith.constant 0 : index
      %62 = vector.load %arg14[%c0_49, %c0_50] : memref<1x256xf32, #tpu.memory_space<vmem>>, vector<1x256xf32>
      %63 = arith.addf %61, %62 : vector<1x256xf32>
      %c0_51 = arith.constant 0 : index
      %c0_52 = arith.constant 0 : index
      %c0_53 = arith.constant 0 : index
      %64 = vector.load %arg16[%c0_51, %c0_52, %c0_53] : memref<1x1x256xf32, #tpu.memory_space<vmem>>, vector<1x1x256xf32>
      %65 = vector.shape_cast %64 : vector<1x1x256xf32> to vector<1x256xf32>
      %66 = vector.shape_cast %63 : vector<1x256xf32> to vector<1x1x256xf32>
      tpu.vector_store %arg16[%c0_51, %c0_52, %c0_53], %66 {strides = array<i32>} : memref<1x1x256xf32, #tpu.memory_space<vmem>>, vector<1x1x256xf32>,
    } else {
    }
    return
  }
  func.func @transform_0(%arg0: i32, %arg1: i32) -> (i32, i32, i32) {
    %c0_i32 = arith.constant 0 : i32
    %c0_i32_0 = arith.constant 0 : i32
    return %arg0, %arg1, %c0_i32 : i32, i32, i32
  }
  func.func @transform_1(%arg0: i32, %arg1: i32) -> (i32, i32) {
    %c0_i32 = arith.constant 0 : i32
    %c0_i32_0 = arith.constant 0 : i32
    %c0_i32_1 = arith.constant 0 : i32
    return %c0_i32, %c0_i32_0 : i32, i32
  }
  func.func @transform_2(%arg0: i32, %arg1: i32) -> (i32, i32, i32) {
    %c0_i32 = arith.constant 0 : i32
    %c0_i32_0 = arith.constant 0 : i32
    %c0_i32_1 = arith.constant 0 : i32
    %c0_i32_2 = arith.constant 0 : i32
    return %c0_i32, %c0_i32_0, %c0_i32_1 : i32, i32, i32
  }
  func.func @transform_3(%arg0: i32, %arg1: i32) -> (i32, i32) {
    %c0_i32 = arith.constant 0 : i32
    %c0_i32_0 = arith.constant 0 : i32
    %c0_i32_1 = arith.constant 0 : i32
    return %c0_i32, %c0_i32_0 : i32, i32
  }
  func.func @transform_4(%arg0: i32, %arg1: i32) -> (i32, i32, i32) {
    %c0_i32 = arith.constant 0 : i32
    %c0_i32_0 = arith.constant 0 : i32
    %c0_i32_1 = arith.constant 0 : i32
    %c0_i32_2 = arith.constant 0 : i32
    return %c0_i32, %c0_i32_0, %c0_i32_1 : i32, i32, i32
  }
  func.func @transform_5(%arg0: i32, %arg1: i32) -> (i32, i32) {
    %c0_i32 = arith.constant 0 : i32
    %c0_i32_0 = arith.constant 0 : i32
    %c0_i32_1 = arith.constant 0 : i32
    return %c0_i32, %c0_i32_0 : i32, i32
  }
  func.func @transform_6(%arg0: i32, %arg1: i32) -> (i32, i32, i32) {
    %c0_i32 = arith.constant 0 : i32
    %c0_i32_0 = arith.constant 0 : i32
    %c0_i32_1 = arith.constant 0 : i32
    %c0_i32_2 = arith.constant 0 : i32
    return %c0_i32, %c0_i32_0, %c0_i32_1 : i32, i32, i32
  }
  func.func @transform_7(%arg0: i32, %arg1: i32) -> (i32, i32) {
    %c0_i32 = arith.constant 0 : i32
    %c0_i32_0 = arith.constant 0 : i32
    %c0_i32_1 = arith.constant 0 : i32
    return %c0_i32, %c0_i32_0 : i32, i32
  }
  func.func @transform_8(%arg0: i32, %arg1: i32) -> (i32, i32, i32) {
    %c0_i32 = arith.constant 0 : i32
    %c0_i32_0 = arith.constant 0 : i32
    %c0_i32_1 = arith.constant 0 : i32
    %c0_i32_2 = arith.constant 0 : i32
    return %c0_i32, %c0_i32_0, %c0_i32_1 : i32, i32, i32
  }
  func.func @transform_9(%arg0: i32, %arg1: i32) -> (i32, i32) {
    %c0_i32 = arith.constant 0 : i32
    %c0_i32_0 = arith.constant 0 : i32
    %c0_i32_1 = arith.constant 0 : i32
    return %c0_i32, %c0_i32_0 : i32, i32
  }
  func.func @transform_10(%arg0: i32, %arg1: i32) -> (i32, i32, i32) {
    %c0_i32 = arith.constant 0 : i32
    %c0_i32_0 = arith.constant 0 : i32
    %c0_i32_1 = arith.constant 0 : i32
    %c0_i32_2 = arith.constant 0 : i32
    return %c0_i32, %c0_i32_0, %c0_i32_1 : i32, i32, i32
  }
  func.func @transform_11(%arg0: i32, %arg1: i32) -> (i32, i32) {
    %c0_i32 = arith.constant 0 : i32
    %c0_i32_0 = arith.constant 0 : i32
    %c0_i32_1 = arith.constant 0 : i32
    return %c0_i32, %c0_i32_0 : i32, i32
  }
  func.func @transform_12(%arg0: i32, %arg1: i32) -> (i32, i32) {
    %c0_i32 = arith.constant 0 : i32
    %c0_i32_0 = arith.constant 0 : i32
    %c0_i32_1 = arith.constant 0 : i32
    return %c0_i32, %c0_i32_0 : i32, i32
  }
  func.func @transform_13(%arg0: i32, %arg1: i32) -> (i32, i32, i32) {
    %c0_i32 = arith.constant 0 : i32
    %c0_i32_0 = arith.constant 0 : i32
    return %arg0, %arg1, %c0_i32 : i32, i32, i32
  }
  func.func @transform_14(%arg0: i32, %arg1: i32) -> (i32, i32, i32) {
    %c0_i32 = arith.constant 0 : i32
    %c0_i32_0 = arith.constant 0 : i32
    %c0_i32_1 = arith.constant 0 : i32
    return %arg0, %c0_i32, %c0_i32_0 : i32, i32, i32
  }
}

</mosaic_0001>

<llo_original>
// kernel: pn_forward.3
$region0: #{pn_forward.3}
  #allocation0 [shape = 'u32[]', space=smem, size = 0x4, offset = 0x4, fixed_abs, tag = 'smem constant byte address 0x4 - core index']
  #allocation1 [shape = 'u32[144,128]{1,0:T(1,128)}', space=vmem, size = 0x12000, scoped, tag = 'internal scratch']
  %s0 = inlined_call_operand.vmem [shape: bf16[2,128,64], index: 0, kind: input, shape index: {}]
  %s1 = inlined_call_operand.vmem [shape: bf16[64,256], index: 1, kind: input, shape index: {}]
  %s2 = inlined_call_operand.vmem [shape: f32[2,1,256], index: 2, kind: input, shape index: {}]
  %s3 = inlined_call_operand.vmem [shape: bf16[256,256], index: 3, kind: input, shape index: {}]
  %s4 = inlined_call_operand.vmem [shape: f32[1,1,256], index: 4, kind: input, shape index: {}]
  %s5 = inlined_call_operand.vmem [shape: bf16[256,128], index: 5, kind: input, shape index: {}]
  %s6 = inlined_call_operand.vmem [shape: f32[1,1,128], index: 6, kind: input, shape index: {}]
  %s7 = inlined_call_operand.vmem [shape: bf16[128,256], index: 7, kind: input, shape index: {}]
  %s8 = inlined_call_operand.vmem [shape: f32[1,1,256], index: 8, kind: input, shape index: {}]
  %s9 = inlined_call_operand.hbm [shape: f32[2,128,256], index: 9, kind: output, shape index: {}]
  %s10 = sld [smem:[#allocation0]]
  $region69: #{pn_forward.3} parent=0
    _
  %s12 = ssub.s32 1, %s10
  %s13 = scalar_select 0, %s12, %s10
  $region1: #{pn_forward.3} parent=0
    #allocation2 [shape = 'u8[262144]{0}', space=vmem, size = 0x40000, scoped, tag = 'output window, operand 0']
    #allocation3 [shape = 's32[2]{0}', space=sflag, size = 0x8, scoped, tag = 'scoped memory for pn_forward.3']
    %14 = vsyncpa [#allocation3], 0
    %s15 = scalar_lea.sflag [#allocation3], 1
    %16 = vsyncpa %s15, 0
    loop: start=0, step=1, limit=4
    $region2: #{pn_forward.3} parent=1 // loop_pre_header
      _
    $region3: #{pn_forward.3} parent=1 // loop_header
      %s18 = sphi 0, %s22
      %p19 = scmp.ge.s32.totalorder %s18, 4
      %s25 = sphi 0, %s37
      %s26 = sphi 0, %s33
      %s27 = sphi 0, %s25
      %s28 = sphi 0, %s26
      %s29 = sphi 0, %s27
      %s30 = sphi 0, %s28
      %s42 = sphi 0, %s44
      %s45 = sphi 0, %s42
      %s46 = sphi 0, %s45
      %s62 = sphi 0, %s46
      %s66 = sphi 0, %s66
      %s68 = sphi 0, %s66
      %s69 = sphi 0, %s68
      %s83 = sphi 0, %s69
      %s89 = sphi 0, %s91
      %s92 = sphi 0, %s89
      %s93 = sphi 0, %s92
      %s109 = sphi 0, %s93
      %s113 = sphi 0, %s113
      %s115 = sphi 0, %s113
      %s116 = sphi 0, %s115
      %s130 = sphi 0, %s116
      %s134 = sphi 0, %s134
      %s136 = sphi 0, %s134
      %s137 = sphi 0, %s136
      %s151 = sphi 0, %s137
      %s155 = sphi 0, %s155
      %s157 = sphi 0, %s155
      %s158 = sphi 0, %s157
      %s172 = sphi 0, %s158
      %s176 = sphi 0, %s176
      %s178 = sphi 0, %s176
      %s179 = sphi 0, %s178
      %s193 = sphi 0, %s179
      %s197 = sphi 0, %s197
      %s199 = sphi 0, %s197
      %s200 = sphi 0, %s199
      %s214 = sphi 0, %s200
      %s218 = sphi 0, %s218
      %s220 = sphi 0, %s218
      %s221 = sphi 0, %s220
      %s235 = sphi 0, %s221
      %s243 = sphi 0, %s245
      %s246 = sphi 0, %s243
      %s247 = sphi 0, %s246
      %s263 = sphi 0, %s247
    $region4: #{pn_forward.3} parent=1 // loop_header_branch
      %21 = sbr.rel (%p19) target = $region8
    $region5: #{pn_forward.3} parent=1 // loop_body
      %s23 = ssub.s32 %s18, 1
      %s24 = ssub.s32 %s18, 2
      %s31 = sadd.s32 1, %s26
      %p32 = scmp.ge.s32.totalorder %s31, 1
      %s33 = scalar_select %p32, 0, %s31
      %s34 = sadd.s32 1, %s25
      %s35 = scalar_select %p32, %s34, %s25
      %p36 = scmp.ge.s32.totalorder %s35, 2
      %s37 = scalar_select %p36, 0, %s35
      %s38 = ssub.s32 %s25, %s37
      %s39 = ssub.s32 %s26, %s33
      %s40 = sor.u32 %s38, %s39
      %p41 = scmp.eq.s32.totalorder %s40, 0
      %s43 = sadd.s32 %s42, 1
      %s44 = scalar_select %p41, %s42, %s43
      %p47 = pneg %p41
      %p48 = scmp.eq.s32.totalorder %s18, 1
      %p49 = por %p47, %p48
      %p50 = scmp.ne.s32.totalorder %s42, %s45
      %p51 = scmp.eq.s32.totalorder %s18, 0
      %p52 = por %p50, %p51
      %p53 = scmp.ne.s32.totalorder %s42, %s45
      %p54 = scmp.eq.s32.totalorder %s23, 1
      %p55 = por %p53, %p54
      %p56 = scmp.ne.s32.totalorder %s45, %s46
      %p57 = scmp.eq.s32.totalorder %s23, 0
      %p58 = por %p56, %p57
      %p59 = scmp.ne.s32.totalorder %s45, %s46
      %p60 = scmp.eq.s32.totalorder %s24, 1
      %p61 = por %p59, %p60
      %p63 = scmp.ne.s32.totalorder %s46, %s62
      %p64 = scmp.eq.s32.totalorder %s24, 0
      %p65 = por %p63, %p64
      %s67 = sadd.s32 %s66, 1
      %p70 = scmp.eq.s32.totalorder %s18, 1
      %p71 = scmp.ne.s32.totalorder %s66, %s68
      %p72 = scmp.eq.s32.totalorder %s18, 0
      %p73 = por %p71, %p72
      %p74 = scmp.ne.s32.totalorder %s66, %s68
      %p75 = scmp.eq.s32.totalorder %s23, 1
      %p76 = por %p74, %p75
      %p77 = scmp.ne.s32.totalorder %s68, %s69
      %p78 = scmp.eq.s32.totalorder %s23, 0
      %p79 = por %p77, %p78
      %p80 = scmp.ne.s32.totalorder %s68, %s69
      %p81 = scmp.eq.s32.totalorder %s24, 1
      %p82 = por %p80, %p81
      %p84 = scmp.ne.s32.totalorder %s69, %s83
      %p85 = scmp.eq.s32.totalorder %s24, 0
      %p86 = por %p84, %p85
      %s87 = ssub.s32 %s25, %s37
      %p88 = scmp.eq.s32.totalorder %s87, 0
      %s90 = sadd.s32 %s89, 1
      %s91 = scalar_select %p88, %s89, %s90
      %p94 = pneg %p88
      %p95 = scmp.eq.s32.totalorder %s18, 1
      %p96 = por %p94, %p95
      %p97 = scmp.ne.s32.totalorder %s89, %s92
      %p98 = scmp.eq.s32.totalorder %s18, 0
      %p99 = por %p97, %p98
      %p100 = scmp.ne.s32.totalorder %s89, %s92
      %p101 = scmp.eq.s32.totalorder %s23, 1
      %p102 = por %p100, %p101
      %p103 = scmp.ne.s32.totalorder %s92, %s93
      %p104 = scmp.eq.s32.totalorder %s23, 0
      %p105 = por %p103, %p104
      %p106 = scmp.ne.s32.totalorder %s92, %s93
      %p107 = scmp.eq.s32.totalorder %s24, 1
      %p108 = por %p106, %p107
      %p110 = scmp.ne.s32.totalorder %s93, %s109
      %p111 = scmp.eq.s32.totalorder %s24, 0
      %p112 = por %p110, %p111
      %s114 = sadd.s32 %s113, 1
      %p117 = scmp.eq.s32.totalorder %s18, 1
      %p118 = scmp.ne.s32.totalorder %s113, %s115
      %p119 = scmp.eq.s32.totalorder %s18, 0
      %p120 = por %p118, %p119
      %p121 = scmp.ne.s32.totalorder %s113, %s115
      %p122 = scmp.eq.s32.totalorder %s23, 1
      %p123 = por %p121, %p122
      %p124 = scmp.ne.s32.totalorder %s115, %s116
      %p125 = scmp.eq.s32.totalorder %s23, 0
      %p126 = por %p124, %p125
      %p127 = scmp.ne.s32.totalorder %s115, %s116
      %p128 = scmp.eq.s32.totalorder %s24, 1
      %p129 = por %p127, %p128
      %p131 = scmp.ne.s32.totalorder %s116, %s130
      %p132 = scmp.eq.s32.totalorder %s24, 0
      %p133 = por %p131, %p132
      %s135 = sadd.s32 %s134, 1
      %p138 = scmp.eq.s32.totalorder %s18, 1
      %p139 = scmp.ne.s32.totalorder %s134, %s136
      %p140 = scmp.eq.s32.totalorder %s18, 0
      %p141 = por %p139, %p140
      %p142 = scmp.ne.s32.totalorder %s134, %s136
      %p143 = scmp.eq.s32.totalorder %s23, 1
      %p144 = por %p142, %p143
      %p145 = scmp.ne.s32.totalorder %s136, %s137
      %p146 = scmp.eq.s32.totalorder %s23, 0
      %p147 = por %p145, %p146
      %p148 = scmp.ne.s32.totalorder %s136, %s137
      %p149 = scmp.eq.s32.totalorder %s24, 1
      %p150 = por %p148, %p149
      %p152 = scmp.ne.s32.totalorder %s137, %s151
      %p153 = scmp.eq.s32.totalorder %s24, 0
      %p154 = por %p152, %p153
      %s156 = sadd.s32 %s155, 1
      %p159 = scmp.eq.s32.totalorder %s18, 1
      %p160 = scmp.ne.s32.totalorder %s155, %s157
      %p161 = scmp.eq.s32.totalorder %s18, 0
      %p162 = por %p160, %p161
      %p163 = scmp.ne.s32.totalorder %s155, %s157
      %p164 = scmp.eq.s32.totalorder %s23, 1
      %p165 = por %p163, %p164
      %p166 = scmp.ne.s32.totalorder %s157, %s158
      %p167 = scmp.eq.s32.totalorder %s23, 0
      %p168 = por %p166, %p167
      %p169 = scmp.ne.s32.totalorder %s157, %s158
      %p170 = scmp.eq.s32.totalorder %s24, 1
      %p171 = por %p169, %p170
      %p173 = scmp.ne.s32.totalorder %s158, %s172
      %p174 = scmp.eq.s32.totalorder %s24, 0
      %p175 = por %p173, %p174
      %s177 = sadd.s32 %s176, 1
      %p180 = scmp.eq.s32.totalorder %s18, 1
      %p181 = scmp.ne.s32.totalorder %s176, %s178
      %p182 = scmp.eq.s32.totalorder %s18, 0
      %p183 = por %p181, %p182
      %p184 = scmp.ne.s32.totalorder %s176, %s178
      %p185 = scmp.eq.s32.totalorder %s23, 1
      %p186 = por %p184, %p185
      %p187 = scmp.ne.s32.totalorder %s178, %s179
      %p188 = scmp.eq.s32.totalorder %s23, 0
      %p189 = por %p187, %p188
      %p190 = scmp.ne.s32.totalorder %s178, %s179
      %p191 = scmp.eq.s32.totalorder %s24, 1
      %p192 = por %p190, %p191
      %p194 = scmp.ne.s32.totalorder %s179, %s193
      %p195 = scmp.eq.s32.totalorder %s24, 0
      %p196 = por %p194, %p195
      %s198 = sadd.s32 %s197, 1
      %p201 = scmp.eq.s32.totalorder %s18, 1
      %p202 = scmp.ne.s32.totalorder %s197, %s199
      %p203 = scmp.eq.s32.totalorder %s18, 0
      %p204 = por %p202, %p203
      %p205 = scmp.ne.s32.totalorder %s197, %s199
      %p206 = scmp.eq.s32.totalorder %s23, 1
      %p207 = por %p205, %p206
      %p208 = scmp.ne.s32.totalorder %s199, %s200
      %p209 = scmp.eq.s32.totalorder %s23, 0
      %p210 = por %p208, %p209
      %p211 = scmp.ne.s32.totalorder %s199, %s200
      %p212 = scmp.eq.s32.totalorder %s24, 1
      %p213 = por %p211, %p212
      %p215 = scmp.ne.s32.totalorder %s200, %s214
      %p216 = scmp.eq.s32.totalorder %s24, 0
      %p217 = por %p215, %p216
      %s219 = sadd.s32 %s218, 1
      %p222 = scmp.eq.s32.totalorder %s18, 1
      %p223 = scmp.ne.s32.totalorder %s218, %s220
      %p224 = scmp.eq.s32.totalorder %s18, 0
      %p225 = por %p223, %p224
      %p226 = scmp.ne.s32.totalorder %s218, %s220
      %p227 = scmp.eq.s32.totalorder %s23, 1
      %p228 = por %p226, %p227
      %p229 = scmp.ne.s32.totalorder %s220, %s221
      %p230 = scmp.eq.s32.totalorder %s23, 0
      %p231 = por %p229, %p230
      %p232 = scmp.ne.s32.totalorder %s220, %s221
      %p233 = scmp.eq.s32.totalorder %s24, 1
      %p234 = por %p232, %p233
      %p236 = scmp.ne.s32.totalorder %s221, %s235
      %p237 = scmp.eq.s32.totalorder %s24, 0
      %p238 = por %p236, %p237
      %s239 = ssub.s32 %s25, %s37
      %s240 = ssub.s32 %s26, %s33
      %s241 = sor.u32 %s239, %s240
      %p242 = scmp.eq.s32.totalorder %s241, 0
      %s244 = sadd.s32 %s243, 1
      %s245 = scalar_select %p242, %s243, %s244
      %p248 = pneg %p242
      %p249 = scmp.eq.s32.totalorder %s18, 1
      %p250 = por %p248, %p249
      %p251 = scmp.ne.s32.totalorder %s243, %s246
      %p252 = scmp.eq.s32.totalorder %s18, 0
      %p253 = por %p251, %p252
      %p254 = scmp.ne.s32.totalorder %s243, %s246
      %p255 = scmp.eq.s32.totalorder %s23, 1
      %p256 = por %p254, %p255
      %p257 = scmp.ne.s32.totalorder %s246, %s247
      %p258 = scmp.eq.s32.totalorder %s23, 0
      %p259 = por %p257, %p258
      %p260 = scmp.ne.s32.totalorder %s246, %s247
      %p261 = scmp.eq.s32.totalorder %s24, 1
      %p262 = por %p260, %p261
      %p264 = scmp.ne.s32.totalorder %s247, %s263
      %p265 = scmp.eq.s32.totalorder %s24, 0
      %p266 = por %p264, %p265
      %p267 = scmp.le.s32.totalorder 1, %s18
      %p268 = scmp.lt.s32.totalorder %s18, 3
      %p269 = pnand %p267, %p268
      %p270 = pneg %p269
      // Predicated region
      $region9: #{pn_forward.3} parent=5 // pred_check
        _
      $region10: #{pn_forward.3} parent=5 // pred_check_branch
        %272 = sbr.rel (%p269) target = $region12
      $region11: #{pn_forward.3} parent=5 // pred_region
        %s273 = ssub.s32 %s18, 1
        // Predicated region
        $region13: #{pn_forward.3} parent=11 // pred_check
          %p274 = pneg %p79
        $region14: #{pn_forward.3} parent=11 // pred_check_branch
          %276 = sbr.rel (%p274) target = $region16
        $region15: #{pn_forward.3} parent=11 // pred_region
          _
        $region16: #{pn_forward.3} parent=11 // pred_fallthru
          _
        // Predicated region
        $region17: #{pn_forward.3} parent=11 // pred_check
          %p277 = pneg %p126
        $region18: #{pn_forward.3} parent=11 // pred_check_branch
          %279 = sbr.rel (%p277) target = $region20
        $region19: #{pn_forward.3} parent=11 // pred_region
          _
        $region20: #{pn_forward.3} parent=11 // pred_fallthru
          _
        // Predicated region
        $region21: #{pn_forward.3} parent=11 // pred_check
          %p280 = pneg %p147
        $region22: #{pn_forward.3} parent=11 // pred_check_branch
          %282 = sbr.rel (%p280) target = $region24
        $region23: #{pn_forward.3} parent=11 // pred_region
          _
        $region24: #{pn_forward.3} parent=11 // pred_fallthru
          _
        // Predicated region
        $region25: #{pn_forward.3} parent=11 // pred_check
          %p283 = pneg %p168
        $region26: #{pn_forward.3} parent=11 // pred_check_branch
          %285 = sbr.rel (%p283) target = $region28
        $region27: #{pn_forward.3} parent=11 // pred_region
          _
        $region28: #{pn_forward.3} parent=11 // pred_fallthru
          _
        // Predicated region
        $region29: #{pn_forward.3} parent=11 // pred_check
          %p286 = pneg %p189
        $region30: #{pn_forward.3} parent=11 // pred_check_branch
          %288 = sbr.rel (%p286) target = $region32
        $region31: #{pn_forward.3} parent=11 // pred_region
          _
        $region32: #{pn_forward.3} parent=11 // pred_fallthru
          _
        // Predicated region
        $region33: #{pn_forward.3} parent=11 // pred_check
          %p289 = pneg %p210
        $region34: #{pn_forward.3} parent=11 // pred_check_branch
          %291 = sbr.rel (%p289) target = $region36
        $region35: #{pn_forward.3} parent=11 // pred_region
          _
        $region36: #{pn_forward.3} parent=11 // pred_fallthru
          _
        // Predicated region
        $region37: #{pn_forward.3} parent=11 // pred_check
          %p292 = pneg %p231
        $region38: #{pn_forward.3} parent=11 // pred_check_branch
          %294 = sbr.rel (%p292) target = $region40
        $region39: #{pn_forward.3} parent=11 // pred_region
          _
        $region40: #{pn_forward.3} parent=11 // pred_fallthru
          _
      $region12: #{pn_forward.3} parent=5 // pred_fallthru
        _
      %p295 = scmp.lt.s32.totalorder %s18, 2
      // Predicated region
      $region41: #{pn_forward.3} parent=5 // pred_check
        %p296 = pneg %p295
      $region42: #{pn_forward.3} parent=5 // pred_check_branch
        %298 = sbr.rel (%p296) target = $region44
      $region43: #{pn_forward.3} parent=5 // pred_region
        // Predicated region
        $region45: #{pn_forward.3} parent=43 // pred_check
          %p299 = pneg %p52
        $region46: #{pn_forward.3} parent=43 // pred_check_branch
          %301 = sbr.rel (%p299) target = $region48
        $region47: #{pn_forward.3} parent=43 // pred_region
          %s302 = smul.u32 16, %s26
          %p303 = scmp.lt.s32.totalorder %s25, 1
          %s304 = scalar_select %p303, %s25, 1
          %p305 = scmp.lt.s32.totalorder %s302, 15
          %s306 = scalar_select %p305, %s302, 15
          %s307 = smul.addr %s304, 16
          %s308 = sadd.s32 %s306, %s307
          %s309 = smul.addr %s308, 4
          %s310 = scalar_lea.vmem %s0, %s309
          %s311 = smul.u32 16, %s26
        $region48: #{pn_forward.3} parent=43 // pred_fallthru
          _
        // Predicated region
        $region49: #{pn_forward.3} parent=43 // pred_check
          %p312 = pneg %p99
        $region50: #{pn_forward.3} parent=43 // pred_check_branch
          %314 = sbr.rel (%p312) target = $region52
        $region51: #{pn_forward.3} parent=43 // pred_region
          %p315 = scmp.lt.s32.totalorder %s25, 1
          %s316 = scalar_select %p315, %s25, 1
          %s317 = smul.addr %s316, 2
          %s318 = scalar_lea.vmem %s2, %s317
        $region52: #{pn_forward.3} parent=43 // pred_fallthru
          _
      $region44: #{pn_forward.3} parent=5 // pred_fallthru
        _
      %p319 = scmp.le.s32.totalorder 1, %s18
      %p320 = scmp.lt.s32.totalorder %s18, 3
      %p321 = pnand %p319, %p320
      %p322 = pneg %p321
      // Predicated region
      $region53: #{pn_forward.3} parent=5 // pred_check
        _
      $region54: #{pn_forward.3} parent=5 // pred_check_branch
        %324 = sbr.rel (%p321) target = $region56
      $region55: #{pn_forward.3} parent=5 // pred_region
        %s325 = ssub.s32 %s18, 1
        %s326 = smul.u32 16, %s28
        %p327 = scmp.lt.s32.totalorder %s27, 1
        %s328 = scalar_select %p327, %s27, 1
        %p329 = scmp.lt.s32.totalorder %s326, 15
        %s330 = scalar_select %p329, %s326, 15
        %s331 = smul.addr %s328, 16
        %s332 = sadd.s32 %s330, %s331
        %s333 = smul.addr %s332, 4
        %s334 = scalar_lea.vmem %s0, %s333
        %p335 = pneg %p58
        %p336 = pneg %p55
        %p337 = pneg %p79
        %p338 = pneg %p76
        %p339 = scmp.lt.s32.totalorder %s27, 1
        %s340 = scalar_select %p339, %s27, 1
        %s341 = smul.addr %s340, 2
        %s342 = scalar_lea.vmem %s2, %s341
        %p343 = pneg %p105
        %p344 = pneg %p102
        %p345 = pneg %p126
        %p346 = pneg %p123
        %p347 = pneg %p147
        %p348 = pneg %p144
        %p349 = pneg %p168
        %p350 = pneg %p165
        %p351 = pneg %p189
        %p352 = pneg %p186
        %p353 = pneg %p210
        %p354 = pneg %p207
        %p355 = pneg %p231
        %p356 = pneg %p228
        %p357 = pneg %p259
        %p358 = pneg %p256
        %s359 = sand.u32 %s246, 1
        %s360 = scalar_lea.sflag [#allocation3], %s359
        %s361 = sand.u32 %s246, 1
        %s362 = smul.addr %s361, 256
        %s363 = scalar_lea.vmem [#allocation2], %s362
        %s364 = smul.u32 16, %s28
        %p365 = scmp.lt.s32.totalorder %s27, 1
        %s366 = scalar_select %p365, %s27, 1
        %p367 = scmp.lt.s32.totalorder %s364, 15
        %s368 = scalar_select %p367, %s364, 15
        %s369 = smul.addr %s366, 16
        %s370 = sadd.s32 %s368, %s369
        %s371 = smul.addr %s370, 4
        %s372 = scalar_lea.vmem %s0, %s371
        %s373 = smul.u32 16, %s28
        %p374 = scmp.lt.s32.totalorder %s27, 1
        %s375 = scalar_select %p374, %s27, 1
        %s376 = smul.addr %s375, 2
        %s377 = scalar_lea.vmem %s2, %s376
        %s378 = smul.u32 16, %s28
        %v380 = vld [vmem:[%s372] sm:$0xf]
        %v381 = vld [vmem:[%s372 + $0x4] sm:$0xf]
        %v382 = vld [vmem:[%s372 + $0x8] sm:$0xf]
        %v383 = vld [vmem:[%s372 + $0xc] sm:$0xf]
        %v384 = vld [vmem:[%s372 + $0x10] sm:$0xf]
        %v385 = vld [vmem:[%s372 + $0x14] sm:$0xf]
        %v386 = vld [vmem:[%s372 + $0x18] sm:$0xf]
        %v387 = vld [vmem:[%s372 + $0x1c] sm:$0xf]
        %v388 = vld [vmem:[%s372 + $0x20] sm:$0xf]
        %v389 = vld [vmem:[%s372 + $0x24] sm:$0xf]
        %v390 = vld [vmem:[%s372 + $0x28] sm:$0xf]
        %v391 = vld [vmem:[%s372 + $0x2c] sm:$0xf]
        %v392 = vld [vmem:[%s372 + $0x30] sm:$0xf]
        %v393 = vld [vmem:[%s372 + $0x34] sm:$0xf]
        %v394 = vld [vmem:[%s372 + $0x38] sm:$0xf]
        %v395 = vld [vmem:[%s372 + $0x3c] sm:$0xf]
        %v396 = vld [vmem:[%s1] sm:$0xff]
        %v397 = vld [vmem:[%s1 + $0x8] sm:$0xff]
        %v398 = vld [vmem:[%s1 + $0x10] sm:$0xff]
        %v399 = vld [vmem:[%s1 + $0x18] sm:$0xff]
        %v400 = vld [vmem:[%s1 + $0x20] sm:$0xff]
        %v401 = vld [vmem:[%s1 + $0x28] sm:$0xff]
        %v402 = vld [vmem:[%s1 + $0x30] sm:$0xff]
        %v403 = vld [vmem:[%s1 + $0x38] sm:$0xff]
        %v404 = vld [vmem:[%s377] sm:$0x3]
        %v406 = vlaneseq
        %v407 = vshrl.u32 %v406, 7
        %v408 = vsub.s32 0, %v407
        %v409 = vrot.slane %v404, %v408
        %v410 = vlaneseq
        %v411 = vshrl.u32 %v410, 7
        %v412 = vsub.s32 1, %v411
        %v413 = vrot.slane %v404, %v412
        %v432 = vunpack.c.l.b16 %v380
        %v433 = vunpack.c.l.b16 %v381
        %v434 = vunpack.c.l.b16 %v382
        %v435 = vunpack.c.l.b16 %v383
        %v436 = vunpack.c.l.b16 %v384
        %v437 = vunpack.c.l.b16 %v385
        %v438 = vunpack.c.l.b16 %v386
        %v439 = vunpack.c.l.b16 %v387
        %v440 = vunpack.c.l.b16 %v388
        %v441 = vunpack.c.l.b16 %v389
        %v442 = vunpack.c.l.b16 %v390
        %v443 = vunpack.c.l.b16 %v391
        %v444 = vunpack.c.l.b16 %v392
        %v445 = vunpack.c.l.b16 %v393
        %v446 = vunpack.c.l.b16 %v394
        %v447 = vunpack.c.l.b16 %v395
        %v448 = vpack.c.b16 %v433, %v432
        %v449 = vpack.c.b16 %v435, %v434
        %v450 = vpack.c.b16 %v437, %v436
        %v451 = vpack.c.b16 %v439, %v438
        %v452 = vpack.c.b16 %v441, %v440
        %v453 = vpack.c.b16 %v443, %v442
        %v454 = vpack.c.b16 %v445, %v444
        %v455 = vpack.c.b16 %v447, %v446
        %v464 = vunpack.c.l.b16 %v396
        %v465 = vunpack.c.h.b16 %v396
        %v466 = vunpack.c.l.b16 %v397
        %v467 = vunpack.c.h.b16 %v397
        %v468 = vunpack.c.l.b16 %v398
        %v469 = vunpack.c.h.b16 %v398
        %v470 = vunpack.c.l.b16 %v399
        %v471 = vunpack.c.h.b16 %v399
        %v472 = vunpack.c.l.b16 %v400
        %v473 = vunpack.c.h.b16 %v400
        %v474 = vunpack.c.l.b16 %v401
        %v475 = vunpack.c.h.b16 %v401
        %v476 = vunpack.c.l.b16 %v402
        %v477 = vunpack.c.h.b16 %v402
        %v478 = vunpack.c.l.b16 %v403
        %v479 = vunpack.c.h.b16 %v403
        %v480 = vpack.c.b16 %v466, %v464
        %v481 = vpack.c.b16 %v467, %v465
        %v482 = vpack.c.b16 %v470, %v468
        %v483 = vpack.c.b16 %v471, %v469
        %v484 = vpack.c.b16 %v474, %v472
        %v485 = vpack.c.b16 %v475, %v473
        %v486 = vpack.c.b16 %v478, %v476
        %v487 = vpack.c.b16 %v479, %v477
        %vm496 = vcmask 523264
        %v498 = vsel %vm496, %v448, 0
        %v501 = vsel %vm496, %v449, 0
        %v504 = vsel %vm496, %v450, 0
        %v507 = vsel %vm496, %v451, 0
        %v510 = vsel %vm496, %v452, 0
        %v513 = vsel %vm496, %v453, 0
        %v516 = vsel %vm496, %v454, 0
        %v519 = vsel %vm496, %v455, 0
        %521 = vmatprep.subr.bf16.mxu0 %v481
        %522 = vmatpush1.bf16.msra.mxu0 %v480
        %523 = vmatprep.subr.bf16.mxu0 %v483
        %524 = vmatpush1.bf16.msra.mxu0 %v482
        %525 = vmatprep.subr.bf16.mxu0 %v485
        %526 = vmatpush1.bf16.msra.mxu0 %v484
        %527 = vmatprep.subr.bf16.mxu0 %v487
        %528 = vmatpush1.bf16.msra.mxu0 %v486
        %529 = vmatprep.subr.bf16.mxu0 0
        %530 = vmatpush1.bf16.msra.mxu0 0
        %531 = vmatprep.subr.bf16.mxu0 0
        %532 = vmatpush1.bf16.msra.mxu0 0
        %533 = vmatprep.subr.bf16.mxu0 0
        %534 = vmatpush1.bf16.msra.mxu0 0
        %535 = vmatprep.subr.bf16.mxu0 0
        %536 = vmatpush1.bf16.msra.mxu0 0
        %537 = vmatprep.subr.bf16.mxu0 0
        %538 = vmatpush1.bf16.msra.mxu0 0
        %539 = vmatprep.subr.bf16.mxu0 0
        %540 = vmatpush1.bf16.msra.mxu0 0
        %541 = vmatprep.subr.bf16.mxu0 0
        %542 = vmatpush1.bf16.msra.mxu0 0
        %543 = vmatprep.subr.bf16.mxu0 0
        %544 = vmatpush1.bf16.msra.mxu0 0
        %545 = vmatprep.subr.bf16.mxu0 0
        %546 = vmatpush1.bf16.msra.mxu0 0
        %547 = vmatprep.subr.bf16.mxu0 0
        %548 = vmatpush1.bf16.msra.mxu0 0
        %549 = vmatprep.subr.bf16.mxu0 0
        %550 = vmatpush1.bf16.msra.mxu0 0
        %551 = vmatprep.subr.bf16.mxu0 0
        %552 = vmatpush1.bf16.msra.mxu0 0
        %553 = vmatprep.mubr.bf16.mxu0 0
        %554 = vmatmul.mubr.bf16.gmra.mrb[0].mxu0 %v498
        %v555 = vpop.f32.mrb[0].mxu0
        %v556 = vadd.f32 %v409, %v555
        %v557 = vpop.f32.mrb[0].mxu0
        %v558 = vadd.f32 %v413, %v557
        %v559 = vpop.f32.mrb[0].mxu0
        %v560 = vadd.f32 %v409, %v559
        %v561 = vpop.f32.mrb[0].mxu0
        %v562 = vadd.f32 %v413, %v561
        %563 = vmatprep.mubr.bf16.mxu0 0
        %564 = vmatmul.mubr.bf16.gmra.mrb[0].mxu0 %v501
        %v565 = vpop.f32.mrb[0].mxu0
        %v566 = vadd.f32 %v409, %v565
        %v567 = vpop.f32.mrb[0].mxu0
        %v568 = vadd.f32 %v413, %v567
        %v569 = vpop.f32.mrb[0].mxu0
        %v570 = vadd.f32 %v409, %v569
        %v571 = vpop.f32.mrb[0].mxu0
        %v572 = vadd.f32 %v413, %v571
        %573 = vmatprep.mubr.bf16.mxu0 0
        %574 = vmatmul.mubr.bf16.gmra.mrb[0].mxu0 %v504
        %v575 = vpop.f32.mrb[0].mxu0
        %v576 = vadd.f32 %v409, %v575
        %v577 = vpop.f32.mrb[0].mxu0
        %v578 = vadd.f32 %v413, %v577
        %v579 = vpop.f32.mrb[0].mxu0
        %v580 = vadd.f32 %v409, %v579
        %v581 = vpop.f32.mrb[0].mxu0
        %v582 = vadd.f32 %v413, %v581
        %583 = vmatprep.mubr.bf16.mxu0 0
        %584 = vmatmul.mubr.bf16.gmra.mrb[0].mxu0 %v507
        %v585 = vpop.f32.mrb[0].mxu0
        %v586 = vadd.f32 %v409, %v585
        %v587 = vpop.f32.mrb[0].mxu0
        %v588 = vadd.f32 %v413, %v587
        %v589 = vpop.f32.mrb[0].mxu0
        %v590 = vadd.f32 %v409, %v589
        %v591 = vpop.f32.mrb[0].mxu0
        %v592 = vadd.f32 %v413, %v591
        %593 = vmatprep.mubr.bf16.mxu0 0
        %594 = vmatmul.mubr.bf16.gmra.mrb[0].mxu0 %v510
        %v595 = vpop.f32.mrb[0].mxu0
        %v596 = vadd.f32 %v409, %v595
        %v597 = vpop.f32.mrb[0].mxu0
        %v598 = vadd.f32 %v413, %v597
        %v599 = vpop.f32.mrb[0].mxu0
        %v600 = vadd.f32 %v409, %v599
        %v601 = vpop.f32.mrb[0].mxu0
        %v602 = vadd.f32 %v413, %v601
        %603 = vmatprep.mubr.bf16.mxu0 0
        %604 = vmatmul.mubr.bf16.gmra.mrb[0].mxu0 %v513
        %v605 = vpop.f32.mrb[0].mxu0
        %v606 = vadd.f32 %v409, %v605
        %v607 = vpop.f32.mrb[0].mxu0
        %v608 = vadd.f32 %v413, %v607
        %v609 = vpop.f32.mrb[0].mxu0
        %v610 = vadd.f32 %v409, %v609
        %v611 = vpop.f32.mrb[0].mxu0
        %v612 = vadd.f32 %v413, %v611
        %613 = vmatprep.mubr.bf16.mxu0 0
        %614 = vmatmul.mubr.bf16.gmra.mrb[0].mxu0 %v516
        %v615 = vpop.f32.mrb[0].mxu0
        %v616 = vadd.f32 %v409, %v615
        %v617 = vpop.f32.mrb[0].mxu0
        %v618 = vadd.f32 %v413, %v617
        %v619 = vpop.f32.mrb[0].mxu0
        %v620 = vadd.f32 %v409, %v619
        %v621 = vpop.f32.mrb[0].mxu0
        %v622 = vadd.f32 %v413, %v621
        %623 = vmatprep.mubr.bf16.mxu0 0
        %624 = vmatmul.mubr.bf16.gmra.mrb[0].mxu0 %v519
        %v625 = vpop.f32.mrb[0].mxu0
        %v626 = vadd.f32 %v409, %v625
        %v627 = vpop.f32.mrb[0].mxu0
        %v628 = vadd.f32 %v413, %v627
        %v629 = vpop.f32.mrb[0].mxu0
        %v630 = vadd.f32 %v409, %v629
        %v631 = vpop.f32.mrb[0].mxu0
        %v632 = vadd.f32 %v413, %v631
        %633 = vdwg.mxu0
        %v634 = vmax.f32 %v556, 0.0
        %v635 = vmax.f32 %v558, 0.0
        %v636 = vmax.f32 %v560, 0.0
        %v637 = vmax.f32 %v562, 0.0
        %v638 = vmax.f32 %v566, 0.0
        %v639 = vmax.f32 %v568, 0.0
        %v640 = vmax.f32 %v570, 0.0
        %v641 = vmax.f32 %v572, 0.0
        %v642 = vmax.f32 %v576, 0.0
        %v643 = vmax.f32 %v578, 0.0
        %v644 = vmax.f32 %v580, 0.0
        %v645 = vmax.f32 %v582, 0.0
        %v646 = vmax.f32 %v586, 0.0
        %v647 = vmax.f32 %v588, 0.0
        %v648 = vmax.f32 %v590, 0.0
        %v649 = vmax.f32 %v592, 0.0
        %v650 = vmax.f32 %v596, 0.0
        %v651 = vmax.f32 %v598, 0.0
        %v652 = vmax.f32 %v600, 0.0
        %v653 = vmax.f32 %v602, 0.0
        %v654 = vmax.f32 %v606, 0.0
        %v655 = vmax.f32 %v608, 0.0
        %v656 = vmax.f32 %v610, 0.0
        %v657 = vmax.f32 %v612, 0.0
        %v658 = vmax.f32 %v616, 0.0
        %v659 = vmax.f32 %v618, 0.0
        %v660 = vmax.f32 %v620, 0.0
        %v661 = vmax.f32 %v622, 0.0
        %v662 = vmax.f32 %v626, 0.0
        %v663 = vmax.f32 %v628, 0.0
        %v664 = vmax.f32 %v630, 0.0
        %v665 = vmax.f32 %v632, 0.0
        %v666 = vpack.c.bf16 %v636, %v634
        %v667 = vpack.c.bf16 %v637, %v635
        %v668 = vpack.c.bf16 %v640, %v638
        %v669 = vpack.c.bf16 %v641, %v639
        %v670 = vpack.c.bf16 %v644, %v642
        %v671 = vpack.c.bf16 %v645, %v643
        %v672 = vpack.c.bf16 %v648, %v646
        %v673 = vpack.c.bf16 %v649, %v647
        %v674 = vpack.c.bf16 %v652, %v650
        %v675 = vpack.c.bf16 %v653, %v651
        %v676 = vpack.c.bf16 %v656, %v654
        %v677 = vpack.c.bf16 %v657, %v655
        %v678 = vpack.c.bf16 %v660, %v658
        %v679 = vpack.c.bf16 %v661, %v659
        %v680 = vpack.c.bf16 %v664, %v662
        %v681 = vpack.c.bf16 %v665, %v663
        %v682 = vld [vmem:[%s3] sm:$0xff]
        %v683 = vld [vmem:[%s3 + $0x8] sm:$0xff]
        %v684 = vld [vmem:[%s3 + $0x10] sm:$0xff]
        %v685 = vld [vmem:[%s3 + $0x18] sm:$0xff]
        %v686 = vld [vmem:[%s3 + $0x20] sm:$0xff]
        %v687 = vld [vmem:[%s3 + $0x28] sm:$0xff]
        %v688 = vld [vmem:[%s3 + $0x30] sm:$0xff]
        %v689 = vld [vmem:[%s3 + $0x38] sm:$0xff]
        %v690 = vld [vmem:[%s3 + $0x40] sm:$0xff]
        %v691 = vld [vmem:[%s3 + $0x48] sm:$0xff]
        %v692 = vld [vmem:[%s3 + $0x50] sm:$0xff]
        %v693 = vld [vmem:[%s3 + $0x58] sm:$0xff]
        %v694 = vld [vmem:[%s3 + $0x60] sm:$0xff]
        %v695 = vld [vmem:[%s3 + $0x68] sm:$0xff]
        %v696 = vld [vmem:[%s3 + $0x70] sm:$0xff]
        %v697 = vld [vmem:[%s3 + $0x78] sm:$0xff]
        %v698 = vld [vmem:[%s3 + $0x80] sm:$0xff]
        %v699 = vld [vmem:[%s3 + $0x88] sm:$0xff]
        %v700 = vld [vmem:[%s3 + $0x90] sm:$0xff]
        %v701 = vld [vmem:[%s3 + $0x98] sm:$0xff]
        %v702 = vld [vmem:[%s3 + $0xa0] sm:$0xff]
        %v703 = vld [vmem:[%s3 + $0xa8] sm:$0xff]
        %v704 = vld [vmem:[%s3 + $0xb0] sm:$0xff]
        %v705 = vld [vmem:[%s3 + $0xb8] sm:$0xff]
        %v706 = vld [vmem:[%s3 + $0xc0] sm:$0xff]
        %v707 = vld [vmem:[%s3 + $0xc8] sm:$0xff]
        %v708 = vld [vmem:[%s3 + $0xd0] sm:$0xff]
        %v709 = vld [vmem:[%s3 + $0xd8] sm:$0xff]
        %v710 = vld [vmem:[%s3 + $0xe0] sm:$0xff]
        %v711 = vld [vmem:[%s3 + $0xe8] sm:$0xff]
        %v712 = vld [vmem:[%s3 + $0xf0] sm:$0xff]
        %v713 = vld [vmem:[%s3 + $0xf8] sm:$0xff]
        %v714 = vld [vmem:[%s4] sm:$0x3]
        %v716 = vlaneseq
        %v717 = vshrl.u32 %v716, 7
        %v718 = vsub.s32 0, %v717
        %v719 = vrot.slane %v714, %v718
        %v720 = vlaneseq
        %v721 = vshrl.u32 %v720, 7
        %v722 = vsub.s32 1, %v721
        %v723 = vrot.slane %v714, %v722
        %v758 = vunpack.c.l.b16 %v682
        %v759 = vunpack.c.h.b16 %v682
        %v760 = vunpack.c.l.b16 %v683
        %v761 = vunpack.c.h.b16 %v683
        %v762 = vunpack.c.l.b16 %v684
        %v763 = vunpack.c.h.b16 %v684
        %v764 = vunpack.c.l.b16 %v685
        %v765 = vunpack.c.h.b16 %v685
        %v766 = vunpack.c.l.b16 %v686
        %v767 = vunpack.c.h.b16 %v686
        %v768 = vunpack.c.l.b16 %v687
        %v769 = vunpack.c.h.b16 %v687
        %v770 = vunpack.c.l.b16 %v688
        %v771 = vunpack.c.h.b16 %v688
        %v772 = vunpack.c.l.b16 %v689
        %v773 = vunpack.c.h.b16 %v689
        %v774 = vunpack.c.l.b16 %v690
        %v775 = vunpack.c.h.b16 %v690
        %v776 = vunpack.c.l.b16 %v691
        %v777 = vunpack.c.h.b16 %v691
        %v778 = vunpack.c.l.b16 %v692
        %v779 = vunpack.c.h.b16 %v692
        %v780 = vunpack.c.l.b16 %v693
        %v781 = vunpack.c.h.b16 %v693
        %v782 = vunpack.c.l.b16 %v694
        %v783 = vunpack.c.h.b16 %v694
        %v784 = vunpack.c.l.b16 %v695
        %v785 = vunpack.c.h.b16 %v695
        %v786 = vunpack.c.l.b16 %v696
        %v787 = vunpack.c.h.b16 %v696
        %v788 = vunpack.c.l.b16 %v697
        %v789 = vunpack.c.h.b16 %v697
        %v790 = vunpack.c.l.b16 %v698
        %v791 = vunpack.c.h.b16 %v698
        %v792 = vunpack.c.l.b16 %v699
        %v793 = vunpack.c.h.b16 %v699
        %v794 = vunpack.c.l.b16 %v700
        %v795 = vunpack.c.h.b16 %v700
        %v796 = vunpack.c.l.b16 %v701
        %v797 = vunpack.c.h.b16 %v701
        %v798 = vunpack.c.l.b16 %v702
        %v799 = vunpack.c.h.b16 %v702
        %v800 = vunpack.c.l.b16 %v703
        %v801 = vunpack.c.h.b16 %v703
        %v802 = vunpack.c.l.b16 %v704
        %v803 = vunpack.c.h.b16 %v704
        %v804 = vunpack.c.l.b16 %v705
        %v805 = vunpack.c.h.b16 %v705
        %v806 = vunpack.c.l.b16 %v706
        %v807 = vunpack.c.h.b16 %v706
        %v808 = vunpack.c.l.b16 %v707
        %v809 = vunpack.c.h.b16 %v707
        %v810 = vunpack.c.l.b16 %v708
        %v811 = vunpack.c.h.b16 %v708
        %v812 = vunpack.c.l.b16 %v709
        %v813 = vunpack.c.h.b16 %v709
        %v814 = vunpack.c.l.b16 %v710
        %v815 = vunpack.c.h.b16 %v710
        %v816 = vunpack.c.l.b16 %v711
        %v817 = vunpack.c.h.b16 %v711
        %v818 = vunpack.c.l.b16 %v712
        %v819 = vunpack.c.h.b16 %v712
        %v820 = vunpack.c.l.b16 %v713
        %v821 = vunpack.c.h.b16 %v713
        %v822 = vpack.c.b16 %v760, %v758
        %v823 = vpack.c.b16 %v761, %v759
        %v824 = vpack.c.b16 %v764, %v762
        %v825 = vpack.c.b16 %v765, %v763
        %v826 = vpack.c.b16 %v768, %v766
        %v827 = vpack.c.b16 %v769, %v767
        %v828 = vpack.c.b16 %v772, %v770
        %v829 = vpack.c.b16 %v773, %v771
        %v830 = vpack.c.b16 %v776, %v774
        %v831 = vpack.c.b16 %v777, %v775
        %v832 = vpack.c.b16 %v780, %v778
        %v833 = vpack.c.b16 %v781, %v779
        %v834 = vpack.c.b16 %v784, %v782
        %v835 = vpack.c.b16 %v785, %v783
        %v836 = vpack.c.b16 %v788, %v786
        %v837 = vpack.c.b16 %v789, %v787
        %v838 = vpack.c.b16 %v792, %v790
        %v839 = vpack.c.b16 %v793, %v791
        %v840 = vpack.c.b16 %v796, %v794
        %v841 = vpack.c.b16 %v797, %v795
        %v842 = vpack.c.b16 %v800, %v798
        %v843 = vpack.c.b16 %v801, %v799
        %v844 = vpack.c.b16 %v804, %v802
        %v845 = vpack.c.b16 %v805, %v803
        %v846 = vpack.c.b16 %v808, %v806
        %v847 = vpack.c.b16 %v809, %v807
        %v848 = vpack.c.b16 %v812, %v810
        %v849 = vpack.c.b16 %v813, %v811
        %v850 = vpack.c.b16 %v816, %v814
        %v851 = vpack.c.b16 %v817, %v815
        %v852 = vpack.c.b16 %v820, %v818
        %v853 = vpack.c.b16 %v821, %v819
        %886 = vmatprep.subr.bf16.mxu0 %v823
        %887 = vmatpush1.bf16.msra.mxu0 %v822
        %888 = vmatprep.subr.bf16.mxu0 %v825
        %889 = vmatpush1.bf16.msra.mxu0 %v824
        %890 = vmatprep.subr.bf16.mxu0 %v827
        %891 = vmatpush1.bf16.msra.mxu0 %v826
        %892 = vmatprep.subr.bf16.mxu0 %v829
        %893 = vmatpush1.bf16.msra.mxu0 %v828
        %894 = vmatprep.subr.bf16.mxu0 %v831
        %895 = vmatpush1.bf16.msra.mxu0 %v830
        %896 = vmatprep.subr.bf16.mxu0 %v833
        %897 = vmatpush1.bf16.msra.mxu0 %v832
        %898 = vmatprep.subr.bf16.mxu0 %v835
        %899 = vmatpush1.bf16.msra.mxu0 %v834
        %900 = vmatprep.subr.bf16.mxu0 %v837
        %901 = vmatpush1.bf16.msra.mxu0 %v836
        %902 = vmatprep.subr.bf16.mxu0 %v839
        %903 = vmatpush1.bf16.msra.mxu0 %v838
        %904 = vmatprep.subr.bf16.mxu0 %v841
        %905 = vmatpush1.bf16.msra.mxu0 %v840
        %906 = vmatprep.subr.bf16.mxu0 %v843
        %907 = vmatpush1.bf16.msra.mxu0 %v842
        %908 = vmatprep.subr.bf16.mxu0 %v845
        %909 = vmatpush1.bf16.msra.mxu0 %v844
        %910 = vmatprep.subr.bf16.mxu0 %v847
        %911 = vmatpush1.bf16.msra.mxu0 %v846
        %912 = vmatprep.subr.bf16.mxu0 %v849
        %913 = vmatpush1.bf16.msra.mxu0 %v848
        %914 = vmatprep.subr.bf16.mxu0 %v851
        %915 = vmatpush1.bf16.msra.mxu0 %v850
        %916 = vmatprep.subr.bf16.mxu0 %v853
        %917 = vmatpush1.bf16.msra.mxu0 %v852
        %918 = vmatprep.mubr.bf16.mxu0 %v667
        %919 = vmatmul.mubr.bf16.gmra.mrb[0].mxu0 %v666
        %v920 = vpop.f32.mrb[0].mxu0
        %v921 = vadd.f32 %v719, %v920
        %v922 = vpop.f32.mrb[0].mxu0
        %v923 = vadd.f32 %v723, %v922
        %v924 = vpop.f32.mrb[0].mxu0
        %v925 = vadd.f32 %v719, %v924
        %v926 = vpop.f32.mrb[0].mxu0
        %v927 = vadd.f32 %v723, %v926
        %928 = vmatprep.mubr.bf16.mxu0 %v669
        %929 = vmatmul.mubr.bf16.gmra.mrb[0].mxu0 %v668
        %v930 = vpop.f32.mrb[0].mxu0
        %v931 = vadd.f32 %v719, %v930
        %v932 = vpop.f32.mrb[0].mxu0
        %v933 = vadd.f32 %v723, %v932
        %v934 = vpop.f32.mrb[0].mxu0
        %v935 = vadd.f32 %v719, %v934
        %v936 = vpop.f32.mrb[0].mxu0
        %v937 = vadd.f32 %v723, %v936
        %938 = vmatprep.mubr.bf16.mxu0 %v671
        %939 = vmatmul.mubr.bf16.gmra.mrb[0].mxu0 %v670
        %v940 = vpop.f32.mrb[0].mxu0
        %v941 = vadd.f32 %v719, %v940
        %v942 = vpop.f32.mrb[0].mxu0
        %v943 = vadd.f32 %v723, %v942
        %v944 = vpop.f32.mrb[0].mxu0
        %v945 = vadd.f32 %v719, %v944
        %v946 = vpop.f32.mrb[0].mxu0
        %v947 = vadd.f32 %v723, %v946
        %948 = vmatprep.mubr.bf16.mxu0 %v673
        %949 = vmatmul.mubr.bf16.gmra.mrb[0].mxu0 %v672
        %v950 = vpop.f32.mrb[0].mxu0
        %v951 = vadd.f32 %v719, %v950
        %v952 = vpop.f32.mrb[0].mxu0
        %v953 = vadd.f32 %v723, %v952
        %v954 = vpop.f32.mrb[0].mxu0
        %v955 = vadd.f32 %v719, %v954
        %v956 = vpop.f32.mrb[0].mxu0
        %v957 = vadd.f32 %v723, %v956
        %958 = vmatprep.mubr.bf16.mxu0 %v675
        %959 = vmatmul.mubr.bf16.gmra.mrb[0].mxu0 %v674
        %v960 = vpop.f32.mrb[0].mxu0
        %v961 = vadd.f32 %v719, %v960
        %v962 = vpop.f32.mrb[0].mxu0
        %v963 = vadd.f32 %v723, %v962
        %v964 = vpop.f32.mrb[0].mxu0
        %v965 = vadd.f32 %v719, %v964
        %v966 = vpop.f32.mrb[0].mxu0
        %v967 = vadd.f32 %v723, %v966
        %968 = vmatprep.mubr.bf16.mxu0 %v677
        %969 = vmatmul.mubr.bf16.gmra.mrb[0].mxu0 %v676
        %v970 = vpop.f32.mrb[0].mxu0
        %v971 = vadd.f32 %v719, %v970
        %v972 = vpop.f32.mrb[0].mxu0
        %v973 = vadd.f32 %v723, %v972
        %v974 = vpop.f32.mrb[0].mxu0
        %v975 = vadd.f32 %v719, %v974
        %v976 = vpop.f32.mrb[0].mxu0
        %v977 = vadd.f32 %v723, %v976
        %978 = vmatprep.mubr.bf16.mxu0 %v679
        %979 = vmatmul.mubr.bf16.gmra.mrb[0].mxu0 %v678
        %v980 = vpop.f32.mrb[0].mxu0
        %v981 = vadd.f32 %v719, %v980
        %v982 = vpop.f32.mrb[0].mxu0
        %v983 = vadd.f32 %v723, %v982
        %v984 = vpop.f32.mrb[0].mxu0
        %v985 = vadd.f32 %v719, %v984
        %v986 = vpop.f32.mrb[0].mxu0
        %v987 = vadd.f32 %v723, %v986
        %988 = vmatprep.mubr.bf16.mxu0 %v681
        %989 = vmatmul.mubr.bf16.gmra.mrb[0].mxu0 %v680
        %v990 = vpop.f32.mrb[0].mxu0
        %v991 = vadd.f32 %v719, %v990
        %v992 = vpop.f32.mrb[0].mxu0
        %v993 = vadd.f32 %v723, %v992
        %v994 = vpop.f32.mrb[0].mxu0
        %v995 = vadd.f32 %v719, %v994
        %v996 = vpop.f32.mrb[0].mxu0
        %v997 = vadd.f32 %v723, %v996
        %998 = vdwg.mxu0
        %v999 = vmax.f32 %v921, 0.0
        %v1000 = vmax.f32 %v923, 0.0
        %v1001 = vmax.f32 %v925, 0.0
        %v1002 = vmax.f32 %v927, 0.0
        %v1003 = vmax.f32 %v931, 0.0
        %v1004 = vmax.f32 %v933, 0.0
        %v1005 = vmax.f32 %v935, 0.0
        %v1006 = vmax.f32 %v937, 0.0
        %v1007 = vmax.f32 %v941, 0.0
        %v1008 = vmax.f32 %v943, 0.0
        %v1009 = vmax.f32 %v945, 0.0
        %v1010 = vmax.f32 %v947, 0.0
        %v1011 = vmax.f32 %v951, 0.0
        %v1012 = vmax.f32 %v953, 0.0
        %v1013 = vmax.f32 %v955, 0.0
        %v1014 = vmax.f32 %v957, 0.0
        %v1015 = vmax.f32 %v961, 0.0
        %v1016 = vmax.f32 %v963, 0.0
        %v1017 = vmax.f32 %v965, 0.0
        %v1018 = vmax.f32 %v967, 0.0
        %v1019 = vmax.f32 %v971, 0.0
        %v1020 = vmax.f32 %v973, 0.0
        %v1021 = vmax.f32 %v975, 0.0
        %v1022 = vmax.f32 %v977, 0.0
        %v1023 = vmax.f32 %v981, 0.0
        %v1024 = vmax.f32 %v983, 0.0
        %v1025 = vmax.f32 %v985, 0.0
        %v1026 = vmax.f32 %v987, 0.0
        %v1027 = vmax.f32 %v991, 0.0
        %v1028 = vmax.f32 %v993, 0.0
        %v1029 = vmax.f32 %v995, 0.0
        %v1030 = vmax.f32 %v997, 0.0
        %v1031 = vpack.c.bf16 %v1001, %v999
        %v1032 = vpack.c.bf16 %v1002, %v1000
        %v1033 = vpack.c.bf16 %v1005, %v1003
        %v1034 = vpack.c.bf16 %v1006, %v1004
        %v1035 = vpack.c.bf16 %v1009, %v1007
        %v1036 = vpack.c.bf16 %v1010, %v1008
        %v1037 = vpack.c.bf16 %v1013, %v1011
        %v1038 = vpack.c.bf16 %v1014, %v1012
        %v1039 = vpack.c.bf16 %v1017, %v1015
        %v1040 = vpack.c.bf16 %v1018, %v1016
        %v1041 = vpack.c.bf16 %v1021, %v1019
        %v1042 = vpack.c.bf16 %v1022, %v1020
        %v1043 = vpack.c.bf16 %v1025, %v1023
        %v1044 = vpack.c.bf16 %v1026, %v1024
        %v1045 = vpack.c.bf16 %v1029, %v1027
        %v1046 = vpack.c.bf16 %v1030, %v1028
        %v1047 = vld [vmem:[%s5] sm:$0xf]
        %v1048 = vld [vmem:[%s5 + $0x4] sm:$0xf]
        %v1049 = vld [vmem:[%s5 + $0x8] sm:$0xf]
        %v1050 = vld [vmem:[%s5 + $0xc] sm:$0xf]
        %v1051 = vld [vmem:[%s5 + $0x10] sm:$0xf]
        %v1052 = vld [vmem:[%s5 + $0x14] sm:$0xf]
        %v1053 = vld [vmem:[%s5 + $0x18] sm:$0xf]
        %v1054 = vld [vmem:[%s5 + $0x1c] sm:$0xf]
        %v1055 = vld [vmem:[%s5 + $0x20] sm:$0xf]
        %v1056 = vld [vmem:[%s5 + $0x24] sm:$0xf]
        %v1057 = vld [vmem:[%s5 + $0x28] sm:$0xf]
        %v1058 = vld [vmem:[%s5 + $0x2c] sm:$0xf]
        %v1059 = vld [vmem:[%s5 + $0x30] sm:$0xf]
        %v1060 = vld [vmem:[%s5 + $0x34] sm:$0xf]
        %v1061 = vld [vmem:[%s5 + $0x38] sm:$0xf]
        %v1062 = vld [vmem:[%s5 + $0x3c] sm:$0xf]
        %v1063 = vld [vmem:[%s5 + $0x40] sm:$0xf]
        %v1064 = vld [vmem:[%s5 + $0x44] sm:$0xf]
        %v1065 = vld [vmem:[%s5 + $0x48] sm:$0xf]
        %v1066 = vld [vmem:[%s5 + $0x4c] sm:$0xf]
        %v1067 = vld [vmem:[%s5 + $0x50] sm:$0xf]
        %v1068 = vld [vmem:[%s5 + $0x54] sm:$0xf]
        %v1069 = vld [vmem:[%s5 + $0x58] sm:$0xf]
        %v1070 = vld [vmem:[%s5 + $0x5c] sm:$0xf]
        %v1071 = vld [vmem:[%s5 + $0x60] sm:$0xf]
        %v1072 = vld [vmem:[%s5 + $0x64] sm:$0xf]
        %v1073 = vld [vmem:[%s5 + $0x68] sm:$0xf]
        %v1074 = vld [vmem:[%s5 + $0x6c] sm:$0xf]
        %v1075 = vld [vmem:[%s5 + $0x70] sm:$0xf]
        %v1076 = vld [vmem:[%s5 + $0x74] sm:$0xf]
        %v1077 = vld [vmem:[%s5 + $0x78] sm:$0xf]
        %v1078 = vld [vmem:[%s5 + $0x7c] sm:$0xf]
        %v1079 = vld [vmem:[%s6] sm:$0x1]
        %v1081 = vlaneseq
        %v1082 = vshrl.u32 %v1081, 7
        %v1083 = vsub.s32 0, %v1082
        %v1084 = vrot.slane %v1079, %v1083
        %v1118 = vunpack.c.l.b16 %v1047
        %v1119 = vunpack.c.l.b16 %v1048
        %v1120 = vunpack.c.l.b16 %v1049
        %v1121 = vunpack.c.l.b16 %v1050
        %v1122 = vunpack.c.l.b16 %v1051
        %v1123 = vunpack.c.l.b16 %v1052
        %v1124 = vunpack.c.l.b16 %v1053
        %v1125 = vunpack.c.l.b16 %v1054
        %v1126 = vunpack.c.l.b16 %v1055
        %v1127 = vunpack.c.l.b16 %v1056
        %v1128 = vunpack.c.l.b16 %v1057
        %v1129 = vunpack.c.l.b16 %v1058
        %v1130 = vunpack.c.l.b16 %v1059
        %v1131 = vunpack.c.l.b16 %v1060
        %v1132 = vunpack.c.l.b16 %v1061
        %v1133 = vunpack.c.l.b16 %v1062
        %v1134 = vunpack.c.l.b16 %v1063
        %v1135 = vunpack.c.l.b16 %v1064
        %v1136 = vunpack.c.l.b16 %v1065
        %v1137 = vunpack.c.l.b16 %v1066
        %v1138 = vunpack.c.l.b16 %v1067
        %v1139 = vunpack.c.l.b16 %v1068
        %v1140 = vunpack.c.l.b16 %v1069
        %v1141 = vunpack.c.l.b16 %v1070
        %v1142 = vunpack.c.l.b16 %v1071
        %v1143 = vunpack.c.l.b16 %v1072
        %v1144 = vunpack.c.l.b16 %v1073
        %v1145 = vunpack.c.l.b16 %v1074
        %v1146 = vunpack.c.l.b16 %v1075
        %v1147 = vunpack.c.l.b16 %v1076
        %v1148 = vunpack.c.l.b16 %v1077
        %v1149 = vunpack.c.l.b16 %v1078
        %v1150 = vpack.c.b16 %v1119, %v1118
        %v1151 = vpack.c.b16 %v1121, %v1120
        %v1152 = vpack.c.b16 %v1123, %v1122
        %v1153 = vpack.c.b16 %v1125, %v1124
        %v1154 = vpack.c.b16 %v1127, %v1126
        %v1155 = vpack.c.b16 %v1129, %v1128
        %v1156 = vpack.c.b16 %v1131, %v1130
        %v1157 = vpack.c.b16 %v1133, %v1132
        %v1158 = vpack.c.b16 %v1135, %v1134
        %v1159 = vpack.c.b16 %v1137, %v1136
        %v1160 = vpack.c.b16 %v1139, %v1138
        %v1161 = vpack.c.b16 %v1141, %v1140
        %v1162 = vpack.c.b16 %v1143, %v1142
        %v1163 = vpack.c.b16 %v1145, %v1144
        %v1164 = vpack.c.b16 %v1147, %v1146
        %v1165 = vpack.c.b16 %v1149, %v1148
        %1182 = vmatprep.subr.bf16.mxu0 0
        %1183 = vmatpush1.bf16.msra.mxu0 %v1150
        %1184 = vmatprep.subr.bf16.mxu0 0
        %1185 = vmatpush1.bf16.msra.mxu0 %v1151
        %1186 = vmatprep.subr.bf16.mxu0 0
        %1187 = vmatpush1.bf16.msra.mxu0 %v1152
        %1188 = vmatprep.subr.bf16.mxu0 0
        %1189 = vmatpush1.bf16.msra.mxu0 %v1153
        %1190 = vmatprep.subr.bf16.mxu0 0
        %1191 = vmatpush1.bf16.msra.mxu0 %v1154
        %1192 = vmatprep.subr.bf16.mxu0 0
        %1193 = vmatpush1.bf16.msra.mxu0 %v1155
        %1194 = vmatprep.subr.bf16.mxu0 0
        %1195 = vmatpush1.bf16.msra.mxu0 %v1156
        %1196 = vmatprep.subr.bf16.mxu0 0
        %1197 = vmatpush1.bf16.msra.mxu0 %v1157
        %1198 = vmatprep.subr.bf16.mxu0 0
        %1199 = vmatpush1.bf16.msra.mxu0 %v1158
        %1200 = vmatprep.subr.bf16.mxu0 0
        %1201 = vmatpush1.bf16.msra.mxu0 %v1159
        %1202 = vmatprep.subr.bf16.mxu0 0
        %1203 = vmatpush1.bf16.msra.mxu0 %v1160
        %1204 = vmatprep.subr.bf16.mxu0 0
        %1205 = vmatpush1.bf16.msra.mxu0 %v1161
        %1206 = vmatprep.subr.bf16.mxu0 0
        %1207 = vmatpush1.bf16.msra.mxu0 %v1162
        %1208 = vmatprep.subr.bf16.mxu0 0
        %1209 = vmatpush1.bf16.msra.mxu0 %v1163
        %1210 = vmatprep.subr.bf16.mxu0 0
        %1211 = vmatpush1.bf16.msra.mxu0 %v1164
        %1212 = vmatprep.subr.bf16.mxu0 0
        %1213 = vmatpush1.bf16.msra.mxu0 %v1165
        %1214 = vmatprep.mubr.bf16.mxu0 %v1032
        %1215 = vmatmul.mubr.bf16.gmra.mrb[0].mxu0 %v1031
        %v1216 = vpop.f32.mrb[0].mxu0
        %v1217 = vadd.f32 %v1084, %v1216
        %v1218 = vpop.f32.mrb[0].mxu0
        %v1219 = vpop.f32.mrb[0].mxu0
        %v1220 = vadd.f32 %v1084, %v1219
        %v1221 = vpop.f32.mrb[0].mxu0
        %1222 = vmatprep.mubr.bf16.mxu0 %v1034
        %1223 = vmatmul.mubr.bf16.gmra.mrb[0].mxu0 %v1033
        %v1224 = vpop.f32.mrb[0].mxu0
        %v1225 = vadd.f32 %v1084, %v1224
        %v1226 = vpop.f32.mrb[0].mxu0
        %v1227 = vpop.f32.mrb[0].mxu0
        %v1228 = vadd.f32 %v1084, %v1227
        %v1229 = vpop.f32.mrb[0].mxu0
        %1230 = vmatprep.mubr.bf16.mxu0 %v1036
        %1231 = vmatmul.mubr.bf16.gmra.mrb[0].mxu0 %v1035
        %v1232 = vpop.f32.mrb[0].mxu0
        %v1233 = vadd.f32 %v1084, %v1232
        %v1234 = vpop.f32.mrb[0].mxu0
        %v1235 = vpop.f32.mrb[0].mxu0
        %v1236 = vadd.f32 %v1084, %v1235
        %v1237 = vpop.f32.mrb[0].mxu0
        %1238 = vmatprep.mubr.bf16.mxu0 %v1038
        %1239 = vmatmul.mubr.bf16.gmra.mrb[0].mxu0 %v1037
        %v1240 = vpop.f32.mrb[0].mxu0
        %v1241 = vadd.f32 %v1084, %v1240
        %v1242 = vpop.f32.mrb[0].mxu0
        %v1243 = vpop.f32.mrb[0].mxu0
        %v1244 = vadd.f32 %v1084, %v1243
        %v1245 = vpop.f32.mrb[0].mxu0
        %1246 = vmatprep.mubr.bf16.mxu0 %v1040
        %1247 = vmatmul.mubr.bf16.gmra.mrb[0].mxu0 %v1039
        %v1248 = vpop.f32.mrb[0].mxu0
        %v1249 = vadd.f32 %v1084, %v1248
        %v1250 = vpop.f32.mrb[0].mxu0
        %v1251 = vpop.f32.mrb[0].mxu0
        %v1252 = vadd.f32 %v1084, %v1251
        %v1253 = vpop.f32.mrb[0].mxu0
        %1254 = vmatprep.mubr.bf16.mxu0 %v1042
        %1255 = vmatmul.mubr.bf16.gmra.mrb[0].mxu0 %v1041
        %v1256 = vpop.f32.mrb[0].mxu0
        %v1257 = vadd.f32 %v1084, %v1256
        %v1258 = vpop.f32.mrb[0].mxu0
        %v1259 = vpop.f32.mrb[0].mxu0
        %v1260 = vadd.f32 %v1084, %v1259
        %v1261 = vpop.f32.mrb[0].mxu0
        %1262 = vmatprep.mubr.bf16.mxu0 %v1044
        %1263 = vmatmul.mubr.bf16.gmra.mrb[0].mxu0 %v1043
        %v1264 = vpop.f32.mrb[0].mxu0
        %v1265 = vadd.f32 %v1084, %v1264
        %v1266 = vpop.f32.mrb[0].mxu0
        %v1267 = vpop.f32.mrb[0].mxu0
        %v1268 = vadd.f32 %v1084, %v1267
        %v1269 = vpop.f32.mrb[0].mxu0
        %1270 = vmatprep.mubr.bf16.mxu0 %v1046
        %1271 = vmatmul.mubr.bf16.gmra.mrb[0].mxu0 %v1045
        %v1272 = vpop.f32.mrb[0].mxu0
        %v1273 = vadd.f32 %v1084, %v1272
        %v1274 = vpop.f32.mrb[0].mxu0
        %v1275 = vpop.f32.mrb[0].mxu0
        %v1276 = vadd.f32 %v1084, %v1275
        %v1277 = vpop.f32.mrb[0].mxu0
        %1278 = vdwg.mxu0
        %v1279 = vmax.f32 %v1217, 0.0
        %v1280 = vmax.f32 %v1220, 0.0
        %v1281 = vmax.f32 %v1225, 0.0
        %v1282 = vmax.f32 %v1228, 0.0
        %v1283 = vmax.f32 %v1233, 0.0
        %v1284 = vmax.f32 %v1236, 0.0
        %v1285 = vmax.f32 %v1241, 0.0
        %v1286 = vmax.f32 %v1244, 0.0
        %v1287 = vmax.f32 %v1249, 0.0
        %v1288 = vmax.f32 %v1252, 0.0
        %v1289 = vmax.f32 %v1257, 0.0
        %v1290 = vmax.f32 %v1260, 0.0
        %v1291 = vmax.f32 %v1265, 0.0
        %v1292 = vmax.f32 %v1268, 0.0
        %v1293 = vmax.f32 %v1273, 0.0
        %v1294 = vmax.f32 %v1276, 0.0
        %v1295 = vpack.c.bf16 %v1280, %v1279
        %v1296 = vpack.c.bf16 %v1282, %v1281
        %v1297 = vpack.c.bf16 %v1284, %v1283
        %v1298 = vpack.c.bf16 %v1286, %v1285
        %v1299 = vpack.c.bf16 %v1288, %v1287
        %v1300 = vpack.c.bf16 %v1290, %v1289
        %v1301 = vpack.c.bf16 %v1292, %v1291
        %v1302 = vpack.c.bf16 %v1294, %v1293
        %v1303 = vld [vmem:[%s7] sm:$0xff]
        %v1304 = vld [vmem:[%s7 + $0x8] sm:$0xff]
        %v1305 = vld [vmem:[%s7 + $0x10] sm:$0xff]
        %v1306 = vld [vmem:[%s7 + $0x18] sm:$0xff]
        %v1307 = vld [vmem:[%s7 + $0x20] sm:$0xff]
        %v1308 = vld [vmem:[%s7 + $0x28] sm:$0xff]
        %v1309 = vld [vmem:[%s7 + $0x30] sm:$0xff]
        %v1310 = vld [vmem:[%s7 + $0x38] sm:$0xff]
        %v1311 = vld [vmem:[%s7 + $0x40] sm:$0xff]
        %v1312 = vld [vmem:[%s7 + $0x48] sm:$0xff]
        %v1313 = vld [vmem:[%s7 + $0x50] sm:$0xff]
        %v1314 = vld [vmem:[%s7 + $0x58] sm:$0xff]
        %v1315 = vld [vmem:[%s7 + $0x60] sm:$0xff]
        %v1316 = vld [vmem:[%s7 + $0x68] sm:$0xff]
        %v1317 = vld [vmem:[%s7 + $0x70] sm:$0xff]
        %v1318 = vld [vmem:[%s7 + $0x78] sm:$0xff]
        %v1319 = vld [vmem:[%s8] sm:$0x3]
        %v1321 = vlaneseq
        %v1322 = vshrl.u32 %v1321, 7
        %v1323 = vsub.s32 0, %v1322
        %v1324 = vrot.slane %v1319, %v1323
        %v1325 = vlaneseq
        %v1326 = vshrl.u32 %v1325, 7
        %v1327 = vsub.s32 1, %v1326
        %v1328 = vrot.slane %v1319, %v1327
        %v1347 = vunpack.c.l.b16 %v1303
        %v1348 = vunpack.c.h.b16 %v1303
        %v1349 = vunpack.c.l.b16 %v1304
        %v1350 = vunpack.c.h.b16 %v1304
        %v1351 = vunpack.c.l.b16 %v1305
        %v1352 = vunpack.c.h.b16 %v1305
        %v1353 = vunpack.c.l.b16 %v1306
        %v1354 = vunpack.c.h.b16 %v1306
        %v1355 = vunpack.c.l.b16 %v1307
        %v1356 = vunpack.c.h.b16 %v1307
        %v1357 = vunpack.c.l.b16 %v1308
        %v1358 = vunpack.c.h.b16 %v1308
        %v1359 = vunpack.c.l.b16 %v1309
        %v1360 = vunpack.c.h.b16 %v1309
        %v1361 = vunpack.c.l.b16 %v1310
        %v1362 = vunpack.c.h.b16 %v1310
        %v1363 = vunpack.c.l.b16 %v1311
        %v1364 = vunpack.c.h.b16 %v1311
        %v1365 = vunpack.c.l.b16 %v1312
        %v1366 = vunpack.c.h.b16 %v1312
        %v1367 = vunpack.c.l.b16 %v1313
        %v1368 = vunpack.c.h.b16 %v1313
        %v1369 = vunpack.c.l.b16 %v1314
        %v1370 = vunpack.c.h.b16 %v1314
        %v1371 = vunpack.c.l.b16 %v1315
        %v1372 = vunpack.c.h.b16 %v1315
        %v1373 = vunpack.c.l.b16 %v1316
        %v1374 = vunpack.c.h.b16 %v1316
        %v1375 = vunpack.c.l.b16 %v1317
        %v1376 = vunpack.c.h.b16 %v1317
        %v1377 = vunpack.c.l.b16 %v1318
        %v1378 = vunpack.c.h.b16 %v1318
        %v1379 = vpack.c.b16 %v1349, %v1347
        %v1380 = vpack.c.b16 %v1350, %v1348
        %v1381 = vpack.c.b16 %v1353, %v1351
        %v1382 = vpack.c.b16 %v1354, %v1352
        %v1383 = vpack.c.b16 %v1357, %v1355
        %v1384 = vpack.c.b16 %v1358, %v1356
        %v1385 = vpack.c.b16 %v1361, %v1359
        %v1386 = vpack.c.b16 %v1362, %v1360
        %v1387 = vpack.c.b16 %v1365, %v1363
        %v1388 = vpack.c.b16 %v1366, %v1364
        %v1389 = vpack.c.b16 %v1369, %v1367
        %v1390 = vpack.c.b16 %v1370, %v1368
        %v1391 = vpack.c.b16 %v1373, %v1371
        %v1392 = vpack.c.b16 %v1374, %v1372
        %v1393 = vpack.c.b16 %v1377, %v1375
        %v1394 = vpack.c.b16 %v1378, %v1376
        %1411 = vmatprep.subr.bf16.mxu0 %v1380
        %1412 = vmatpush1.bf16.msra.mxu0 %v1379
        %1413 = vmatprep.subr.bf16.mxu0 %v1382
        %1414 = vmatpush1.bf16.msra.mxu0 %v1381
        %1415 = vmatprep.subr.bf16.mxu0 %v1384
        %1416 = vmatpush1.bf16.msra.mxu0 %v1383
        %1417 = vmatprep.subr.bf16.mxu0 %v1386
        %1418 = vmatpush1.bf16.msra.mxu0 %v1385
        %1419 = vmatprep.subr.bf16.mxu0 %v1388
        %1420 = vmatpush1.bf16.msra.mxu0 %v1387
        %1421 = vmatprep.subr.bf16.mxu0 %v1390
        %1422 = vmatpush1.bf16.msra.mxu0 %v1389
        %1423 = vmatprep.subr.bf16.mxu0 %v1392
        %1424 = vmatpush1.bf16.msra.mxu0 %v1391
        %1425 = vmatprep.subr.bf16.mxu0 %v1394
        %1426 = vmatpush1.bf16.msra.mxu0 %v1393
        %1427 = vmatprep.subr.bf16.mxu0 0
        %1428 = vmatpush1.bf16.msra.mxu0 0
        %1429 = vmatprep.subr.bf16.mxu0 0
        %1430 = vmatpush1.bf16.msra.mxu0 0
        %1431 = vmatprep.subr.bf16.mxu0 0
        %1432 = vmatpush1.bf16.msra.mxu0 0
        %1433 = vmatprep.subr.bf16.mxu0 0
        %1434 = vmatpush1.bf16.msra.mxu0 0
        %1435 = vmatprep.subr.bf16.mxu0 0
        %1436 = vmatpush1.bf16.msra.mxu0 0
        %1437 = vmatprep.subr.bf16.mxu0 0
        %1438 = vmatpush1.bf16.msra.mxu0 0
        %1439 = vmatprep.subr.bf16.mxu0 0
        %1440 = vmatpush1.bf16.msra.mxu0 0
        %1441 = vmatprep.subr.bf16.mxu0 0
        %1442 = vmatpush1.bf16.msra.mxu0 0
        %1443 = vmatprep.mubr.bf16.mxu0 0
        %1444 = vmatmul.mubr.bf16.gmra.mrb[0].mxu0 %v1295
        %v1445 = vpop.f32.mrb[0].mxu0
        %v1446 = vadd.f32 %v1324, %v1445
        %v1447 = vpop.f32.mrb[0].mxu0
        %v1448 = vadd.f32 %v1328, %v1447
        %v1449 = vpop.f32.mrb[0].mxu0
        %v1450 = vadd.f32 %v1324, %v1449
        %v1451 = vpop.f32.mrb[0].mxu0
        %v1452 = vadd.f32 %v1328, %v1451
        %1453 = vmatprep.mubr.bf16.mxu0 0
        %1454 = vmatmul.mubr.bf16.gmra.mrb[0].mxu0 %v1296
        %v1455 = vpop.f32.mrb[0].mxu0
        %v1456 = vadd.f32 %v1324, %v1455
        %v1457 = vpop.f32.mrb[0].mxu0
        %v1458 = vadd.f32 %v1328, %v1457
        %v1459 = vpop.f32.mrb[0].mxu0
        %v1460 = vadd.f32 %v1324, %v1459
        %v1461 = vpop.f32.mrb[0].mxu0
        %v1462 = vadd.f32 %v1328, %v1461
        %1463 = vmatprep.mubr.bf16.mxu0 0
        %1464 = vmatmul.mubr.bf16.gmra.mrb[0].mxu0 %v1297
        %v1465 = vpop.f32.mrb[0].mxu0
        %v1466 = vadd.f32 %v1324, %v1465
        %v1467 = vpop.f32.mrb[0].mxu0
        %v1468 = vadd.f32 %v1328, %v1467
        %v1469 = vpop.f32.mrb[0].mxu0
        %v1470 = vadd.f32 %v1324, %v1469
        %v1471 = vpop.f32.mrb[0].mxu0
        %v1472 = vadd.f32 %v1328, %v1471
        %1473 = vmatprep.mubr.bf16.mxu0 0
        %1474 = vmatmul.mubr.bf16.gmra.mrb[0].mxu0 %v1298
        %v1475 = vpop.f32.mrb[0].mxu0
        %v1476 = vadd.f32 %v1324, %v1475
        %v1477 = vpop.f32.mrb[0].mxu0
        %v1478 = vadd.f32 %v1328, %v1477
        %v1479 = vpop.f32.mrb[0].mxu0
        %v1480 = vadd.f32 %v1324, %v1479
        %v1481 = vpop.f32.mrb[0].mxu0
        %v1482 = vadd.f32 %v1328, %v1481
        %1483 = vmatprep.mubr.bf16.mxu0 0
        %1484 = vmatmul.mubr.bf16.gmra.mrb[0].mxu0 %v1299
        %v1485 = vpop.f32.mrb[0].mxu0
        %v1486 = vadd.f32 %v1324, %v1485
        %v1487 = vpop.f32.mrb[0].mxu0
        %v1488 = vadd.f32 %v1328, %v1487
        %v1489 = vpop.f32.mrb[0].mxu0
        %v1490 = vadd.f32 %v1324, %v1489
        %v1491 = vpop.f32.mrb[0].mxu0
        %v1492 = vadd.f32 %v1328, %v1491
        %1493 = vmatprep.mubr.bf16.mxu0 0
        %1494 = vmatmul.mubr.bf16.gmra.mrb[0].mxu0 %v1300
        %v1495 = vpop.f32.mrb[0].mxu0
        %v1496 = vadd.f32 %v1324, %v1495
        %v1497 = vpop.f32.mrb[0].mxu0
        %v1498 = vadd.f32 %v1328, %v1497
        %v1499 = vpop.f32.mrb[0].mxu0
        %v1500 = vadd.f32 %v1324, %v1499
        %v1501 = vpop.f32.mrb[0].mxu0
        %v1502 = vadd.f32 %v1328, %v1501
        %1503 = vmatprep.mubr.bf16.mxu0 0
        %1504 = vmatmul.mubr.bf16.gmra.mrb[0].mxu0 %v1301
        %v1505 = vpop.f32.mrb[0].mxu0
        %v1506 = vadd.f32 %v1324, %v1505
        %v1507 = vpop.f32.mrb[0].mxu0
        %v1508 = vadd.f32 %v1328, %v1507
        %v1509 = vpop.f32.mrb[0].mxu0
        %v1510 = vadd.f32 %v1324, %v1509
        %v1511 = vpop.f32.mrb[0].mxu0
        %v1512 = vadd.f32 %v1328, %v1511
        %1513 = vmatprep.mubr.bf16.mxu0 0
        %1514 = vmatmul.mubr.bf16.gmra.mrb[0].mxu0 %v1302
        %v1515 = vpop.f32.mrb[0].mxu0
        %v1516 = vadd.f32 %v1324, %v1515
        %v1517 = vpop.f32.mrb[0].mxu0
        %v1518 = vadd.f32 %v1328, %v1517
        %v1519 = vpop.f32.mrb[0].mxu0
        %v1520 = vadd.f32 %v1324, %v1519
        %v1521 = vpop.f32.mrb[0].mxu0
        %v1522 = vadd.f32 %v1328, %v1521
        %1523 = vdwg.mxu0
        %1524 = vst [vmem:[%s363] sm:$0xff] %v1446
        %1525 = vst [vmem:[%s363 + $0x8] sm:$0xff] %v1448
        %1526 = vst [vmem:[%s363 + $0x10] sm:$0xff] %v1450
        %1527 = vst [vmem:[%s363 + $0x18] sm:$0xff] %v1452
        %1528 = vst [vmem:[%s363 + $0x20] sm:$0xff] %v1456
        %1529 = vst [vmem:[%s363 + $0x28] sm:$0xff] %v1458
        %1530 = vst [vmem:[%s363 + $0x30] sm:$0xff] %v1460
        %1531 = vst [vmem:[%s363 + $0x38] sm:$0xff] %v1462
        %1532 = vst [vmem:[%s363 + $0x40] sm:$0xff] %v1466
        %1533 = vst [vmem:[%s363 + $0x48] sm:$0xff] %v1468
        %1534 = vst [vmem:[%s363 + $0x50] sm:$0xff] %v1470
        %1535 = vst [vmem:[%s363 + $0x58] sm:$0xff] %v1472
        %1536 = vst [vmem:[%s363 + $0x60] sm:$0xff] %v1476
        %1537 = vst [vmem:[%s363 + $0x68] sm:$0xff] %v1478
        %1538 = vst [vmem:[%s363 + $0x70] sm:$0xff] %v1480
        %1539 = vst [vmem:[%s363 + $0x78] sm:$0xff] %v1482
        %1540 = vst [vmem:[%s363 + $0x80] sm:$0xff] %v1486
        %1541 = vst [vmem:[%s363 + $0x88] sm:$0xff] %v1488
        %1542 = vst [vmem:[%s363 + $0x90] sm:$0xff] %v1490
        %1543 = vst [vmem:[%s363 + $0x98] sm:$0xff] %v1492
        %1544 = vst [vmem:[%s363 + $0xa0] sm:$0xff] %v1496
        %1545 = vst [vmem:[%s363 + $0xa8] sm:$0xff] %v1498
        %1546 = vst [vmem:[%s363 + $0xb0] sm:$0xff] %v1500
        %1547 = vst [vmem:[%s363 + $0xb8] sm:$0xff] %v1502
        %1548 = vst [vmem:[%s363 + $0xc0] sm:$0xff] %v1506
        %1549 = vst [vmem:[%s363 + $0xc8] sm:$0xff] %v1508
        %1550 = vst [vmem:[%s363 + $0xd0] sm:$0xff] %v1510
        %1551 = vst [vmem:[%s363 + $0xd8] sm:$0xff] %v1512
        %1552 = vst [vmem:[%s363 + $0xe0] sm:$0xff] %v1516
        %1553 = vst [vmem:[%s363 + $0xe8] sm:$0xff] %v1518
        %1554 = vst [vmem:[%s363 + $0xf0] sm:$0xff] %v1520
        %1555 = vst [vmem:[%s363 + $0xf8] sm:$0xff] %v1522
        %s1556 = sand.u32 %s246, 1
        %s1557 = scalar_lea.sflag [#allocation3], %s1556
        %s1558 = sand.u32 %s246, 1
        %s1559 = smul.addr %s1558, 256
        %s1560 = scalar_lea.vmem [#allocation2], %s1559
        // Predicated region
        $region57: #{pn_forward.3} parent=55 // pred_check
          %p1561 = pneg %p256
        $region58: #{pn_forward.3} parent=55 // pred_check_branch
          %1563 = sbr.rel (%p1561) target = $region60
        $region59: #{pn_forward.3} parent=55 // pred_region
          %s1564 = smul.u32 16, %s28
          %s1566 = ssub.s32 4096, 4096
          %1567 = vsyncadd %s1557, %s1566
          %s1568 = smul.addr %s1564, 2
          %s1569 = smul.addr %s27, 32
          %s1570 = sadd.s32 %s1568, %s1569
          %s1571 = smul.addr %s1570, 128
          %s1572 = scalar_lea.hbm %s9, %s1571
          %s1573 = sshll.u32 %s1560, 4
          %s1574 = int_to_ptr.vmem [resolvable:$true] %s1573
          %1579 = dma.vmem_to_hbm [thread:$0]  %s1574, 4096, %s1572, %s1557, 256, 256, 16
        $region60: #{pn_forward.3} parent=55 // pred_fallthru
          _
      $region56: #{pn_forward.3} parent=5 // pred_fallthru
        _
      %p1580 = scmp.le.s32.totalorder 2, %s18
      // Predicated region
      $region61: #{pn_forward.3} parent=5 // pred_check
        %p1581 = pneg %p1580
      $region62: #{pn_forward.3} parent=5 // pred_check_branch
        %1583 = sbr.rel (%p1581) target = $region64
      $region63: #{pn_forward.3} parent=5 // pred_region
        %s1584 = ssub.s32 %s18, 2
        // Predicated region
        $region65: #{pn_forward.3} parent=63 // pred_check
          %p1585 = pneg %p262
        $region66: #{pn_forward.3} parent=63 // pred_check_branch
          %1587 = sbr.rel (%p1585) target = $region68
        $region67: #{pn_forward.3} parent=63 // pred_region
          %s1588 = sand.u32 %s247, 1
          %s1589 = scalar_lea.sflag [#allocation3], %s1588
          %s1590 = sand.u32 %s247, 1
          %s1591 = smul.addr %s1590, 256
          %s1592 = scalar_lea.vmem [#allocation2], %s1591
          %1593 = dma.done %s1589, 4096
        $region68: #{pn_forward.3} parent=63 // pred_fallthru
          _
      $region64: #{pn_forward.3} parent=5 // pred_fallthru
        _
    $region6: #{pn_forward.3} parent=1 // loop_footer
      %s22 = sadd.s32 1, %s18
    $region7: #{pn_forward.3} parent=1 // loop_footer_branch
      %17 = sbr.rel target = $region3
    $region8: #{pn_forward.3} parent=1 // loop_exit
      _
    %1594 = vsyncpa [#allocation3], 1
    %s1595 = scalar_lea.sflag [#allocation3], 1
    %1596 = vsyncpa %s1595, 1

// kernel: pn_forward.2
$region0: #{pn_forward.2}
  #allocation0 [shape = 'u32[]', space=smem, size = 0x4, offset = 0x4, fixed_abs, tag = 'smem constant byte address 0x4 - core index']
  #allocation1 [shape = 'u32[144,128]{1,0:T(1,128)}', space=vmem, size = 0x12000, scoped, tag = 'internal scratch']
  #allocation2 [shape = 'f32[1,1024]{1,0:T(1,128)}', space=vmem, size = 0x1000, scoped, tag = 'scratch operand']
  %s0 = inlined_call_operand.vmem [shape: bf16[2,128,8], index: 0, kind: input, shape index: {}]
  %s1 = inlined_call_operand.vmem [shape: bf16[8,64], index: 1, kind: input, shape index: {}]
  %s2 = inlined_call_operand.vmem [shape: f32[1,1,64], index: 2, kind: input, shape index: {}]
  %s3 = inlined_call_operand.vmem [shape: bf16[64,64], index: 3, kind: input, shape index: {}]
  %s4 = inlined_call_operand.vmem [shape: f32[1,1,64], index: 4, kind: input, shape index: {}]
  %s5 = inlined_call_operand.vmem [shape: bf16[64,64], index: 5, kind: input, shape index: {}]
  %s6 = inlined_call_operand.vmem [shape: f32[1,1,64], index: 6, kind: input, shape index: {}]
  %s7 = inlined_call_operand.vmem [shape: bf16[64,128], index: 7, kind: input, shape index: {}]
  %s8 = inlined_call_operand.vmem [shape: f32[1,1,128], index: 8, kind: input, shape index: {}]
  %s9 = inlined_call_operand.vmem [shape: bf16[128,1024], index: 9, kind: input, shape index: {}]
  %s10 = inlined_call_operand.vmem [shape: f32[1,1,1024], index: 10, kind: input, shape index: {}]
  %s11 = inlined_call_operand.vmem [shape: bf16[1024,256], index: 11, kind: input, shape index: {}]
  %s12 = inlined_call_operand.vmem [shape: f32[1,256], index: 12, kind: input, shape index: {}]
  %s13 = inlined_call_operand.vmem [shape: bf16[2,128,64], index: 13, kind: output, shape index: {0}]
  %s14 = inlined_call_operand.vmem [shape: f32[2,1,256], index: 14, kind: output, shape index: {1}]
  %15 = xla_tuple %s13, %s14
  %s16 = sld [smem:[#allocation0]]
  $region105: #{pn_forward.2} parent=0
    _
  %s18 = ssub.s32 1, %s16
  %s19 = scalar_select 0, %s18, %s16
  loop: start=0, step=1, limit=4
  $region2: #{pn_forward.2} parent=0 // loop_pre_header
    _
  $region3: #{pn_forward.2} parent=0 // loop_header
    %s21 = sphi 0, %s25
    %p22 = scmp.ge.s32.totalorder %s21, 4
    %s28 = sphi 0, %s40
    %s29 = sphi 0, %s36
    %s30 = sphi 0, %s28
    %s31 = sphi 0, %s29
    %s32 = sphi 0, %s30
    %s33 = sphi 0, %s31
    %s45 = sphi 0, %s47
    %s48 = sphi 0, %s45
    %s49 = sphi 0, %s48
    %s65 = sphi 0, %s49
    %s69 = sphi 0, %s69
    %s71 = sphi 0, %s69
    %s72 = sphi 0, %s71
    %s86 = sphi 0, %s72
    %s90 = sphi 0, %s90
    %s92 = sphi 0, %s90
    %s93 = sphi 0, %s92
    %s107 = sphi 0, %s93
    %s111 = sphi 0, %s111
    %s113 = sphi 0, %s111
    %s114 = sphi 0, %s113
    %s128 = sphi 0, %s114
    %s132 = sphi 0, %s132
    %s134 = sphi 0, %s132
    %s135 = sphi 0, %s134
    %s149 = sphi 0, %s135
    %s153 = sphi 0, %s153
    %s155 = sphi 0, %s153
    %s156 = sphi 0, %s155
    %s170 = sphi 0, %s156
    %s174 = sphi 0, %s174
    %s176 = sphi 0, %s174
    %s177 = sphi 0, %s176
    %s191 = sphi 0, %s177
    %s195 = sphi 0, %s195
    %s197 = sphi 0, %s195
    %s198 = sphi 0, %s197
    %s212 = sphi 0, %s198
    %s216 = sphi 0, %s216
    %s218 = sphi 0, %s216
    %s219 = sphi 0, %s218
    %s233 = sphi 0, %s219
    %s237 = sphi 0, %s237
    %s239 = sphi 0, %s237
    %s240 = sphi 0, %s239
    %s254 = sphi 0, %s240
    %s258 = sphi 0, %s258
    %s260 = sphi 0, %s258
    %s261 = sphi 0, %s260
    %s275 = sphi 0, %s261
    %s279 = sphi 0, %s279
    %s281 = sphi 0, %s279
    %s282 = sphi 0, %s281
    %s296 = sphi 0, %s282
    %s300 = sphi 0, %s300
    %s302 = sphi 0, %s300
    %s303 = sphi 0, %s302
    %s317 = sphi 0, %s303
    %s325 = sphi 0, %s327
    %s328 = sphi 0, %s325
    %s329 = sphi 0, %s328
    %s345 = sphi 0, %s329
    %s351 = sphi 0, %s353
    %s354 = sphi 0, %s351
    %s355 = sphi 0, %s354
    %s371 = sphi 0, %s355
  $region4: #{pn_forward.2} parent=0 // loop_header_branch
    %24 = sbr.rel (%p22) target = $region8
  $region5: #{pn_forward.2} parent=0 // loop_body
    %s26 = ssub.s32 %s21, 1
    %s27 = ssub.s32 %s21, 2
    %s34 = sadd.s32 1, %s29
    %p35 = scmp.ge.s32.totalorder %s34, 1
    %s36 = scalar_select %p35, 0, %s34
    %s37 = sadd.s32 1, %s28
    %s38 = scalar_select %p35, %s37, %s28
    %p39 = scmp.ge.s32.totalorder %s38, 2
    %s40 = scalar_select %p39, 0, %s38
    %s41 = ssub.s32 %s28, %s40
    %s42 = ssub.s32 %s29, %s36
    %s43 = sor.u32 %s41, %s42
    %p44 = scmp.eq.s32.totalorder %s43, 0
    %s46 = sadd.s32 %s45, 1
    %s47 = scalar_select %p44, %s45, %s46
    %p50 = pneg %p44
    %p51 = scmp.eq.s32.totalorder %s21, 1
    %p52 = por %p50, %p51
    %p53 = scmp.ne.s32.totalorder %s45, %s48
    %p54 = scmp.eq.s32.totalorder %s21, 0
    %p55 = por %p53, %p54
    %p56 = scmp.ne.s32.totalorder %s45, %s48
    %p57 = scmp.eq.s32.totalorder %s26, 1
    %p58 = por %p56, %p57
    %p59 = scmp.ne.s32.totalorder %s48, %s49
    %p60 = scmp.eq.s32.totalorder %s26, 0
    %p61 = por %p59, %p60
    %p62 = scmp.ne.s32.totalorder %s48, %s49
    %p63 = scmp.eq.s32.totalorder %s27, 1
    %p64 = por %p62, %p63
    %p66 = scmp.ne.s32.totalorder %s49, %s65
    %p67 = scmp.eq.s32.totalorder %s27, 0
    %p68 = por %p66, %p67
    %s70 = sadd.s32 %s69, 1
    %p73 = scmp.eq.s32.totalorder %s21, 1
    %p74 = scmp.ne.s32.totalorder %s69, %s71
    %p75 = scmp.eq.s32.totalorder %s21, 0
    %p76 = por %p74, %p75
    %p77 = scmp.ne.s32.totalorder %s69, %s71
    %p78 = scmp.eq.s32.totalorder %s26, 1
    %p79 = por %p77, %p78
    %p80 = scmp.ne.s32.totalorder %s71, %s72
    %p81 = scmp.eq.s32.totalorder %s26, 0
    %p82 = por %p80, %p81
    %p83 = scmp.ne.s32.totalorder %s71, %s72
    %p84 = scmp.eq.s32.totalorder %s27, 1
    %p85 = por %p83, %p84
    %p87 = scmp.ne.s32.totalorder %s72, %s86
    %p88 = scmp.eq.s32.totalorder %s27, 0
    %p89 = por %p87, %p88
    %s91 = sadd.s32 %s90, 1
    %p94 = scmp.eq.s32.totalorder %s21, 1
    %p95 = scmp.ne.s32.totalorder %s90, %s92
    %p96 = scmp.eq.s32.totalorder %s21, 0
    %p97 = por %p95, %p96
    %p98 = scmp.ne.s32.totalorder %s90, %s92
    %p99 = scmp.eq.s32.totalorder %s26, 1
    %p100 = por %p98, %p99
    %p101 = scmp.ne.s32.totalorder %s92, %s93
    %p102 = scmp.eq.s32.totalorder %s26, 0
    %p103 = por %p101, %p102
    %p104 = scmp.ne.s32.totalorder %s92, %s93
    %p105 = scmp.eq.s32.totalorder %s27, 1
    %p106 = por %p104, %p105
    %p108 = scmp.ne.s32.totalorder %s93, %s107
    %p109 = scmp.eq.s32.totalorder %s27, 0
    %p110 = por %p108, %p109
    %s112 = sadd.s32 %s111, 1
    %p115 = scmp.eq.s32.totalorder %s21, 1
    %p116 = scmp.ne.s32.totalorder %s111, %s113
    %p117 = scmp.eq.s32.totalorder %s21, 0
    %p118 = por %p116, %p117
    %p119 = scmp.ne.s32.totalorder %s111, %s113
    %p120 = scmp.eq.s32.totalorder %s26, 1
    %p121 = por %p119, %p120
    %p122 = scmp.ne.s32.totalorder %s113, %s114
    %p123 = scmp.eq.s32.totalorder %s26, 0
    %p124 = por %p122, %p123
    %p125 = scmp.ne.s32.totalorder %s113, %s114
    %p126 = scmp.eq.s32.totalorder %s27, 1
    %p127 = por %p125, %p126
    %p129 = scmp.ne.s32.totalorder %s114, %s128
    %p130 = scmp.eq.s32.totalorder %s27, 0
    %p131 = por %p129, %p130
    %s133 = sadd.s32 %s132, 1
    %p136 = scmp.eq.s32.totalorder %s21, 1
    %p137 = scmp.ne.s32.totalorder %s132, %s134
    %p138 = scmp.eq.s32.totalorder %s21, 0
    %p139 = por %p137, %p138
    %p140 = scmp.ne.s32.totalorder %s132, %s134
    %p141 = scmp.eq.s32.totalorder %s26, 1
    %p142 = por %p140, %p141
    %p143 = scmp.ne.s32.totalorder %s134, %s135
    %p144 = scmp.eq.s32.totalorder %s26, 0
    %p145 = por %p143, %p144
    %p146 = scmp.ne.s32.totalorder %s134, %s135
    %p147 = scmp.eq.s32.totalorder %s27, 1
    %p148 = por %p146, %p147
    %p150 = scmp.ne.s32.totalorder %s135, %s149
    %p151 = scmp.eq.s32.totalorder %s27, 0
    %p152 = por %p150, %p151
    %s154 = sadd.s32 %s153, 1
    %p157 = scmp.eq.s32.totalorder %s21, 1
    %p158 = scmp.ne.s32.totalorder %s153, %s155
    %p159 = scmp.eq.s32.totalorder %s21, 0
    %p160 = por %p158, %p159
    %p161 = scmp.ne.s32.totalorder %s153, %s155
    %p162 = scmp.eq.s32.totalorder %s26, 1
    %p163 = por %p161, %p162
    %p164 = scmp.ne.s32.totalorder %s155, %s156
    %p165 = scmp.eq.s32.totalorder %s26, 0
    %p166 = por %p164, %p165
    %p167 = scmp.ne.s32.totalorder %s155, %s156
    %p168 = scmp.eq.s32.totalorder %s27, 1
    %p169 = por %p167, %p168
    %p171 = scmp.ne.s32.totalorder %s156, %s170
    %p172 = scmp.eq.s32.totalorder %s27, 0
    %p173 = por %p171, %p172
    %s175 = sadd.s32 %s174, 1
    %p178 = scmp.eq.s32.totalorder %s21, 1
    %p179 = scmp.ne.s32.totalorder %s174, %s176
    %p180 = scmp.eq.s32.totalorder %s21, 0
    %p181 = por %p179, %p180
    %p182 = scmp.ne.s32.totalorder %s174, %s176
    %p183 = scmp.eq.s32.totalorder %s26, 1
    %p184 = por %p182, %p183
    %p185 = scmp.ne.s32.totalorder %s176, %s177
    %p186 = scmp.eq.s32.totalorder %s26, 0
    %p187 = por %p185, %p186
    %p188 = scmp.ne.s32.totalorder %s176, %s177
    %p189 = scmp.eq.s32.totalorder %s27, 1
    %p190 = por %p188, %p189
    %p192 = scmp.ne.s32.totalorder %s177, %s191
    %p193 = scmp.eq.s32.totalorder %s27, 0
    %p194 = por %p192, %p193
    %s196 = sadd.s32 %s195, 1
    %p199 = scmp.eq.s32.totalorder %s21, 1
    %p200 = scmp.ne.s32.totalorder %s195, %s197
    %p201 = scmp.eq.s32.totalorder %s21, 0
    %p202 = por %p200, %p201
    %p203 = scmp.ne.s32.totalorder %s195, %s197
    %p204 = scmp.eq.s32.totalorder %s26, 1
    %p205 = por %p203, %p204
    %p206 = scmp.ne.s32.totalorder %s197, %s198
    %p207 = scmp.eq.s32.totalorder %s26, 0
    %p208 = por %p206, %p207
    %p209 = scmp.ne.s32.totalorder %s197, %s198
    %p210 = scmp.eq.s32.totalorder %s27, 1
    %p211 = por %p209, %p210
    %p213 = scmp.ne.s32.totalorder %s198, %s212
    %p214 = scmp.eq.s32.totalorder %s27, 0
    %p215 = por %p213, %p214
    %s217 = sadd.s32 %s216, 1
    %p220 = scmp.eq.s32.totalorder %s21, 1
    %p221 = scmp.ne.s32.totalorder %s216, %s218
    %p222 = scmp.eq.s32.totalorder %s21, 0
    %p223 = por %p221, %p222
    %p224 = scmp.ne.s32.totalorder %s216, %s218
    %p225 = scmp.eq.s32.totalorder %s26, 1
    %p226 = por %p224, %p225
    %p227 = scmp.ne.s32.totalorder %s218, %s219
    %p228 = scmp.eq.s32.totalorder %s26, 0
    %p229 = por %p227, %p228
    %p230 = scmp.ne.s32.totalorder %s218, %s219
    %p231 = scmp.eq.s32.totalorder %s27, 1
    %p232 = por %p230, %p231
    %p234 = scmp.ne.s32.totalorder %s219, %s233
    %p235 = scmp.eq.s32.totalorder %s27, 0
    %p236 = por %p234, %p235
    %s238 = sadd.s32 %s237, 1
    %p241 = scmp.eq.s32.totalorder %s21, 1
    %p242 = scmp.ne.s32.totalorder %s237, %s239
    %p243 = scmp.eq.s32.totalorder %s21, 0
    %p244 = por %p242, %p243
    %p245 = scmp.ne.s32.totalorder %s237, %s239
    %p246 = scmp.eq.s32.totalorder %s26, 1
    %p247 = por %p245, %p246
    %p248 = scmp.ne.s32.totalorder %s239, %s240
    %p249 = scmp.eq.s32.totalorder %s26, 0
    %p250 = por %p248, %p249
    %p251 = scmp.ne.s32.totalorder %s239, %s240
    %p252 = scmp.eq.s32.totalorder %s27, 1
    %p253 = por %p251, %p252
    %p255 = scmp.ne.s32.totalorder %s240, %s254
    %p256 = scmp.eq.s32.totalorder %s27, 0
    %p257 = por %p255, %p256
    %s259 = sadd.s32 %s258, 1
    %p262 = scmp.eq.s32.totalorder %s21, 1
    %p263 = scmp.ne.s32.totalorder %s258, %s260
    %p264 = scmp.eq.s32.totalorder %s21, 0
    %p265 = por %p263, %p264
    %p266 = scmp.ne.s32.totalorder %s258, %s260
    %p267 = scmp.eq.s32.totalorder %s26, 1
    %p268 = por %p266, %p267
    %p269 = scmp.ne.s32.totalorder %s260, %s261
    %p270 = scmp.eq.s32.totalorder %s26, 0
    %p271 = por %p269, %p270
    %p272 = scmp.ne.s32.totalorder %s260, %s261
    %p273 = scmp.eq.s32.totalorder %s27, 1
    %p274 = por %p272, %p273
    %p276 = scmp.ne.s32.totalorder %s261, %s275
    %p277 = scmp.eq.s32.totalorder %s27, 0
    %p278 = por %p276, %p277
    %s280 = sadd.s32 %s279, 1
    %p283 = scmp.eq.s32.totalorder %s21, 1
    %p284 = scmp.ne.s32.totalorder %s279, %s281
    %p285 = scmp.eq.s32.totalorder %s21, 0
    %p286 = por %p284, %p285
    %p287 = scmp.ne.s32.totalorder %s279, %s281
    %p288 = scmp.eq.s32.totalorder %s26, 1
    %p289 = por %p287, %p288
    %p290 = scmp.ne.s32.totalorder %s281, %s282
    %p291 = scmp.eq.s32.totalorder %s26, 0
    %p292 = por %p290, %p291
    %p293 = scmp.ne.s32.totalorder %s281, %s282
    %p294 = scmp.eq.s32.totalorder %s27, 1
    %p295 = por %p293, %p294
    %p297 = scmp.ne.s32.totalorder %s282, %s296
    %p298 = scmp.eq.s32.totalorder %s27, 0
    %p299 = por %p297, %p298
    %s301 = sadd.s32 %s300, 1
    %p304 = scmp.eq.s32.totalorder %s21, 1
    %p305 = scmp.ne.s32.totalorder %s300, %s302
    %p306 = scmp.eq.s32.totalorder %s21, 0
    %p307 = por %p305, %p306
    %p308 = scmp.ne.s32.totalorder %s300, %s302
    %p309 = scmp.eq.s32.totalorder %s26, 1
    %p310 = por %p308, %p309
    %p311 = scmp.ne.s32.totalorder %s302, %s303
    %p312 = scmp.eq.s32.totalorder %s26, 0
    %p313 = por %p311, %p312
    %p314 = scmp.ne.s32.totalorder %s302, %s303
    %p315 = scmp.eq.s32.totalorder %s27, 1
    %p316 = por %p314, %p315
    %p318 = scmp.ne.s32.totalorder %s303, %s317
    %p319 = scmp.eq.s32.totalorder %s27, 0
    %p320 = por %p318, %p319
    %s321 = ssub.s32 %s28, %s40
    %s322 = ssub.s32 %s29, %s36
    %s323 = sor.u32 %s321, %s322
    %p324 = scmp.eq.s32.totalorder %s323, 0
    %s326 = sadd.s32 %s325, 1
    %s327 = scalar_select %p324, %s325, %s326
    %p330 = pneg %p324
    %p331 = scmp.eq.s32.totalorder %s21, 1
    %p332 = por %p330, %p331
    %p333 = scmp.ne.s32.totalorder %s325, %s328
    %p334 = scmp.eq.s32.totalorder %s21, 0
    %p335 = por %p333, %p334
    %p336 = scmp.ne.s32.totalorder %s325, %s328
    %p337 = scmp.eq.s32.totalorder %s26, 1
    %p338 = por %p336, %p337
    %p339 = scmp.ne.s32.totalorder %s328, %s329
    %p340 = scmp.eq.s32.totalorder %s26, 0
    %p341 = por %p339, %p340
    %p342 = scmp.ne.s32.totalorder %s328, %s329
    %p343 = scmp.eq.s32.totalorder %s27, 1
    %p344 = por %p342, %p343
    %p346 = scmp.ne.s32.totalorder %s329, %s345
    %p347 = scmp.eq.s32.totalorder %s27, 0
    %p348 = por %p346, %p347
    %s349 = ssub.s32 %s28, %s40
    %p350 = scmp.eq.s32.totalorder %s349, 0
    %s352 = sadd.s32 %s351, 1
    %s353 = scalar_select %p350, %s351, %s352
    %p356 = pneg %p350
    %p357 = scmp.eq.s32.totalorder %s21, 1
    %p358 = por %p356, %p357
    %p359 = scmp.ne.s32.totalorder %s351, %s354
    %p360 = scmp.eq.s32.totalorder %s21, 0
    %p361 = por %p359, %p360
    %p362 = scmp.ne.s32.totalorder %s351, %s354
    %p363 = scmp.eq.s32.totalorder %s26, 1
    %p364 = por %p362, %p363
    %p365 = scmp.ne.s32.totalorder %s354, %s355
    %p366 = scmp.eq.s32.totalorder %s26, 0
    %p367 = por %p365, %p366
    %p368 = scmp.ne.s32.totalorder %s354, %s355
    %p369 = scmp.eq.s32.totalorder %s27, 1
    %p370 = por %p368, %p369
    %p372 = scmp.ne.s32.totalorder %s355, %s371
    %p373 = scmp.eq.s32.totalorder %s27, 0
    %p374 = por %p372, %p373
    %p375 = scmp.le.s32.totalorder 1, %s21
    %p376 = scmp.lt.s32.totalorder %s21, 3
    %p377 = pnand %p375, %p376
    %p378 = pneg %p377
    // Predicated region
    $region9: #{pn_forward.2} parent=5 // pred_check
      _
    $region10: #{pn_forward.2} parent=5 // pred_check_branch
      %380 = sbr.rel (%p377) target = $region12
    $region11: #{pn_forward.2} parent=5 // pred_region
      %s381 = ssub.s32 %s21, 1
      // Predicated region
      $region13: #{pn_forward.2} parent=11 // pred_check
        %p382 = pneg %p82
      $region14: #{pn_forward.2} parent=11 // pred_check_branch
        %384 = sbr.rel (%p382) target = $region16
      $region15: #{pn_forward.2} parent=11 // pred_region
        _
      $region16: #{pn_forward.2} parent=11 // pred_fallthru
        _
      // Predicated region
      $region17: #{pn_forward.2} parent=11 // pred_check
        %p385 = pneg %p103
      $region18: #{pn_forward.2} parent=11 // pred_check_branch
        %387 = sbr.rel (%p385) target = $region20
      $region19: #{pn_forward.2} parent=11 // pred_region
        _
      $region20: #{pn_forward.2} parent=11 // pred_fallthru
        _
      // Predicated region
      $region21: #{pn_forward.2} parent=11 // pred_check
        %p388 = pneg %p124
      $region22: #{pn_forward.2} parent=11 // pred_check_branch
        %390 = sbr.rel (%p388) target = $region24
      $region23: #{pn_forward.2} parent=11 // pred_region
        _
      $region24: #{pn_forward.2} parent=11 // pred_fallthru
        _
      // Predicated region
      $region25: #{pn_forward.2} parent=11 // pred_check
        %p391 = pneg %p145
      $region26: #{pn_forward.2} parent=11 // pred_check_branch
        %393 = sbr.rel (%p391) target = $region28
      $region27: #{pn_forward.2} parent=11 // pred_region
        _
      $region28: #{pn_forward.2} parent=11 // pred_fallthru
        _
      // Predicated region
      $region29: #{pn_forward.2} parent=11 // pred_check
        %p394 = pneg %p166
      $region30: #{pn_forward.2} parent=11 // pred_check_branch
        %396 = sbr.rel (%p394) target = $region32
      $region31: #{pn_forward.2} parent=11 // pred_region
        _
      $region32: #{pn_forward.2} parent=11 // pred_fallthru
        _
      // Predicated region
      $region33: #{pn_forward.2} parent=11 // pred_check
        %p397 = pneg %p187
      $region34: #{pn_forward.2} parent=11 // pred_check_branch
        %399 = sbr.rel (%p397) target = $region36
      $region35: #{pn_forward.2} parent=11 // pred_region
        _
      $region36: #{pn_forward.2} parent=11 // pred_fallthru
        _
      // Predicated region
      $region37: #{pn_forward.2} parent=11 // pred_check
        %p400 = pneg %p208
      $region38: #{pn_forward.2} parent=11 // pred_check_branch
        %402 = sbr.rel (%p400) target = $region40
      $region39: #{pn_forward.2} parent=11 // pred_region
        _
      $region40: #{pn_forward.2} parent=11 // pred_fallthru
        _
      // Predicated region
      $region41: #{pn_forward.2} parent=11 // pred_check
        %p403 = pneg %p229
      $region42: #{pn_forward.2} parent=11 // pred_check_branch
        %405 = sbr.rel (%p403) target = $region44
      $region43: #{pn_forward.2} parent=11 // pred_region
        _
      $region44: #{pn_forward.2} parent=11 // pred_fallthru
        _
      // Predicated region
      $region45: #{pn_forward.2} parent=11 // pred_check
        %p406 = pneg %p250
      $region46: #{pn_forward.2} parent=11 // pred_check_branch
        %408 = sbr.rel (%p406) target = $region48
      $region47: #{pn_forward.2} parent=11 // pred_region
        _
      $region48: #{pn_forward.2} parent=11 // pred_fallthru
        _
      // Predicated region
      $region49: #{pn_forward.2} parent=11 // pred_check
        %p409 = pneg %p271
      $region50: #{pn_forward.2} parent=11 // pred_check_branch
        %411 = sbr.rel (%p409) target = $region52
      $region51: #{pn_forward.2} parent=11 // pred_region
        _
      $region52: #{pn_forward.2} parent=11 // pred_fallthru
        _
      // Predicated region
      $region53: #{pn_forward.2} parent=11 // pred_check
        %p412 = pneg %p292
      $region54: #{pn_forward.2} parent=11 // pred_check_branch
        %414 = sbr.rel (%p412) target = $region56
      $region55: #{pn_forward.2} parent=11 // pred_region
        _
      $region56: #{pn_forward.2} parent=11 // pred_fallthru
        _
      // Predicated region
      $region57: #{pn_forward.2} parent=11 // pred_check
        %p415 = pneg %p313
      $region58: #{pn_forward.2} parent=11 // pred_check_branch
        %417 = sbr.rel (%p415) target = $region60
      $region59: #{pn_forward.2} parent=11 // pred_region
        _
      $region60: #{pn_forward.2} parent=11 // pred_fallthru
        _
    $region12: #{pn_forward.2} parent=5 // pred_fallthru
      _
    %p418 = scmp.lt.s32.totalorder %s21, 2
    // Predicated region
    $region61: #{pn_forward.2} parent=5 // pred_check
      %p419 = pneg %p418
    $region62: #{pn_forward.2} parent=5 // pred_check_branch
      %421 = sbr.rel (%p419) target = $region64
    $region63: #{pn_forward.2} parent=5 // pred_region
      // Predicated region
      $region65: #{pn_forward.2} parent=63 // pred_check
        %p422 = pneg %p55
      $region66: #{pn_forward.2} parent=63 // pred_check_branch
        %424 = sbr.rel (%p422) target = $region68
      $region67: #{pn_forward.2} parent=63 // pred_region
        %s425 = smul.u32 16, %s29
        %p426 = scmp.lt.s32.totalorder %s28, 1
        %s427 = scalar_select %p426, %s28, 1
        %p428 = scmp.lt.s32.totalorder %s425, 15
        %s429 = scalar_select %p428, %s425, 15
        %s430 = smul.addr %s427, 16
        %s431 = sadd.s32 %s429, %s430
        %s432 = smul.addr %s431, 4
        %s433 = scalar_lea.vmem %s0, %s432
        %s434 = smul.u32 16, %s29
      $region68: #{pn_forward.2} parent=63 // pred_fallthru
        _
    $region64: #{pn_forward.2} parent=5 // pred_fallthru
      _
    %p435 = scmp.le.s32.totalorder 1, %s21
    %p436 = scmp.lt.s32.totalorder %s21, 3
    %p437 = pnand %p435, %p436
    %p438 = pneg %p437
    // Predicated region
    $region69: #{pn_forward.2} parent=5 // pred_check
      _
    $region70: #{pn_forward.2} parent=5 // pred_check_branch
      %440 = sbr.rel (%p437) target = $region72
    $region71: #{pn_forward.2} parent=5 // pred_region
      %s441 = ssub.s32 %s21, 1
      %s442 = smul.u32 16, %s31
      %p443 = scmp.lt.s32.totalorder %s30, 1
      %s444 = scalar_select %p443, %s30, 1
      %p445 = scmp.lt.s32.totalorder %s442, 15
      %s446 = scalar_select %p445, %s442, 15
      %s447 = smul.addr %s444, 16
      %s448 = sadd.s32 %s446, %s447
      %s449 = smul.addr %s448, 4
      %s450 = scalar_lea.vmem %s0, %s449
      %p451 = pneg %p61
      %p452 = pneg %p58
      %p453 = pneg %p82
      %p454 = pneg %p79
      %p455 = pneg %p103
      %p456 = pneg %p100
      %p457 = pneg %p124
      %p458 = pneg %p121
      %p459 = pneg %p145
      %p460 = pneg %p142
      %p461 = pneg %p166
      %p462 = pneg %p163
      %p463 = pneg %p187
      %p464 = pneg %p184
      %p465 = pneg %p208
      %p466 = pneg %p205
      %p467 = pneg %p229
      %p468 = pneg %p226
      %p469 = pneg %p250
      %p470 = pneg %p247
      %p471 = pneg %p271
      %p472 = pneg %p268
      %p473 = pneg %p292
      %p474 = pneg %p289
      %p475 = pneg %p313
      %p476 = pneg %p310
      %p477 = pneg %p341
      %p478 = pneg %p338
      %s479 = smul.u32 16, %s31
      %p480 = scmp.lt.s32.totalorder %s30, 1
      %s481 = scalar_select %p480, %s30, 1
      %p482 = scmp.lt.s32.totalorder %s479, 15
      %s483 = scalar_select %p482, %s479, 15
      %s484 = smul.addr %s481, 16
      %s485 = sadd.s32 %s483, %s484
      %s486 = smul.addr %s485, 4
      %s487 = scalar_lea.vmem %s13, %s486
      %p488 = pneg %p367
      %p489 = pneg %p364
      %p490 = scmp.lt.s32.totalorder %s30, 1
      %s491 = scalar_select %p490, %s30, 1
      %s492 = smul.addr %s491, 2
      %s493 = scalar_lea.vmem %s14, %s492
      %s494 = smul.u32 16, %s31
      %p495 = scmp.lt.s32.totalorder %s30, 1
      %s496 = scalar_select %p495, %s30, 1
      %p497 = scmp.lt.s32.totalorder %s494, 15
      %s498 = scalar_select %p497, %s494, 15
      %s499 = smul.addr %s496, 16
      %s500 = sadd.s32 %s498, %s499
      %s501 = smul.addr %s500, 4
      %s502 = scalar_lea.vmem %s0, %s501
      %s503 = smul.u32 16, %s31
      %s504 = smul.u32 16, %s31
      %p505 = scmp.lt.s32.totalorder %s30, 1
      %s506 = scalar_select %p505, %s30, 1
      %p507 = scmp.lt.s32.totalorder %s504, 15
      %s508 = scalar_select %p507, %s504, 15
      %s509 = smul.addr %s506, 16
      %s510 = sadd.s32 %s508, %s509
      %s511 = smul.addr %s510, 4
      %s512 = scalar_lea.vmem %s13, %s511
      %s513 = smul.u32 16, %s31
      %p514 = scmp.lt.s32.totalorder %s30, 1
      %s515 = scalar_select %p514, %s30, 1
      %s516 = smul.addr %s515, 2
      %s517 = scalar_lea.vmem %s14, %s516
      %v519 = vld [vmem:[%s502] sm:$0xf]
      %v520 = vld [vmem:[%s502 + $0x4] sm:$0xf]
      %v521 = vld [vmem:[%s502 + $0x8] sm:$0xf]
      %v522 = vld [vmem:[%s502 + $0xc] sm:$0xf]
      %v523 = vld [vmem:[%s502 + $0x10] sm:$0xf]
      %v524 = vld [vmem:[%s502 + $0x14] sm:$0xf]
      %v525 = vld [vmem:[%s502 + $0x18] sm:$0xf]
      %v526 = vld [vmem:[%s502 + $0x1c] sm:$0xf]
      %v527 = vld [vmem:[%s502 + $0x20] sm:$0xf]
      %v528 = vld [vmem:[%s502 + $0x24] sm:$0xf]
      %v529 = vld [vmem:[%s502 + $0x28] sm:$0xf]
      %v530 = vld [vmem:[%s502 + $0x2c] sm:$0xf]
      %v531 = vld [vmem:[%s502 + $0x30] sm:$0xf]
      %v532 = vld [vmem:[%s502 + $0x34] sm:$0xf]
      %v533 = vld [vmem:[%s502 + $0x38] sm:$0xf]
      %v534 = vld [vmem:[%s502 + $0x3c] sm:$0xf]
      %v535 = vld [vmem:[%s1] sm:$0xf]
      %v536 = vld [vmem:[%s2] sm:$0x1]
      %v538 = vlaneseq
      %v539 = vshrl.u32 %v538, 7
      %v540 = vsub.s32 0, %v539
      %v541 = vrot.slane %v536, %v540
      %v559 = vunpack.c.l.b16 %v519
      %v560 = vunpack.c.l.b16 %v520
      %v561 = vunpack.c.l.b16 %v521
      %v562 = vunpack.c.l.b16 %v522
      %v563 = vunpack.c.l.b16 %v523
      %v564 = vunpack.c.l.b16 %v524
      %v565 = vunpack.c.l.b16 %v525
      %v566 = vunpack.c.l.b16 %v526
      %v567 = vunpack.c.l.b16 %v527
      %v568 = vunpack.c.l.b16 %v528
      %v569 = vunpack.c.l.b16 %v529
      %v570 = vunpack.c.l.b16 %v530
      %v571 = vunpack.c.l.b16 %v531
      %v572 = vunpack.c.l.b16 %v532
      %v573 = vunpack.c.l.b16 %v533
      %v574 = vunpack.c.l.b16 %v534
      %v575 = vpack.c.b16 %v560, %v559
      %v576 = vpack.c.b16 %v562, %v561
      %v577 = vpack.c.b16 %v564, %v563
      %v578 = vpack.c.b16 %v566, %v565
      %v579 = vpack.c.b16 %v568, %v567
      %v580 = vpack.c.b16 %v570, %v569
      %v581 = vpack.c.b16 %v572, %v571
      %v582 = vpack.c.b16 %v574, %v573
      %vm583 = vcmask 64512
      %v585 = vsel %vm583, %v575, 0
      %v588 = vsel %vm583, %v576, 0
      %v591 = vsel %vm583, %v577, 0
      %v594 = vsel %vm583, %v578, 0
      %v597 = vsel %vm583, %v579, 0
      %v600 = vsel %vm583, %v580, 0
      %v603 = vsel %vm583, %v581, 0
      %v606 = vsel %vm583, %v582, 0
      %vm608 = vcmask 1043456
      %v610 = vsel %vm608, %v535, 0
      %612 = vmatprep.subr.bf16.mxu0 0
      %613 = vmatpush1.bf16.msra.mxu0 %v610
      %614 = vmatprep.subr.bf16.mxu0 0
      %615 = vmatpush1.bf16.msra.mxu0 0
      %616 = vmatprep.subr.bf16.mxu0 0
      %617 = vmatpush1.bf16.msra.mxu0 0
      %618 = vmatprep.subr.bf16.mxu0 0
      %619 = vmatpush1.bf16.msra.mxu0 0
      %620 = vmatprep.subr.bf16.mxu0 0
      %621 = vmatpush1.bf16.msra.mxu0 0
      %622 = vmatprep.subr.bf16.mxu0 0
      %623 = vmatpush1.bf16.msra.mxu0 0
      %624 = vmatprep.subr.bf16.mxu0 0
      %625 = vmatpush1.bf16.msra.mxu0 0
      %626 = vmatprep.subr.bf16.mxu0 0
      %627 = vmatpush1.bf16.msra.mxu0 0
      %628 = vmatprep.subr.bf16.mxu0 0
      %629 = vmatpush1.bf16.msra.mxu0 0
      %630 = vmatprep.subr.bf16.mxu0 0
      %631 = vmatpush1.bf16.msra.mxu0 0
      %632 = vmatprep.subr.bf16.mxu0 0
      %633 = vmatpush1.bf16.msra.mxu0 0
      %634 = vmatprep.subr.bf16.mxu0 0
      %635 = vmatpush1.bf16.msra.mxu0 0
      %636 = vmatprep.subr.bf16.mxu0 0
      %637 = vmatpush1.bf16.msra.mxu0 0
      %638 = vmatprep.subr.bf16.mxu0 0
      %639 = vmatpush1.bf16.msra.mxu0 0
      %640 = vmatprep.subr.bf16.mxu0 0
      %641 = vmatpush1.bf16.msra.mxu0 0
      %642 = vmatprep.subr.bf16.mxu0 0
      %643 = vmatpush1.bf16.msra.mxu0 0
      %644 = vmatprep.mubr.bf16.mxu0 0
      %645 = vmatmul.mubr.bf16.gmra.mrb[0].mxu0 %v585
      %v646 = vpop.f32.mrb[0].mxu0
      %v647 = vadd.f32 %v541, %v646
      %v648 = vpop.f32.mrb[0].mxu0
      %v649 = vpop.f32.mrb[0].mxu0
      %v650 = vadd.f32 %v541, %v649
      %v651 = vpop.f32.mrb[0].mxu0
      %652 = vmatprep.mubr.bf16.mxu0 0
      %653 = vmatmul.mubr.bf16.gmra.mrb[0].mxu0 %v588
      %v654 = vpop.f32.mrb[0].mxu0
      %v655 = vadd.f32 %v541, %v654
      %v656 = vpop.f32.mrb[0].mxu0
      %v657 = vpop.f32.mrb[0].mxu0
      %v658 = vadd.f32 %v541, %v657
      %v659 = vpop.f32.mrb[0].mxu0
      %660 = vmatprep.mubr.bf16.mxu0 0
      %661 = vmatmul.mubr.bf16.gmra.mrb[0].mxu0 %v591
      %v662 = vpop.f32.mrb[0].mxu0
      %v663 = vadd.f32 %v541, %v662
      %v664 = vpop.f32.mrb[0].mxu0
      %v665 = vpop.f32.mrb[0].mxu0
      %v666 = vadd.f32 %v541, %v665
      %v667 = vpop.f32.mrb[0].mxu0
      %668 = vmatprep.mubr.bf16.mxu0 0
      %669 = vmatmul.mubr.bf16.gmra.mrb[0].mxu0 %v594
      %v670 = vpop.f32.mrb[0].mxu0
      %v671 = vadd.f32 %v541, %v670
      %v672 = vpop.f32.mrb[0].mxu0
      %v673 = vpop.f32.mrb[0].mxu0
      %v674 = vadd.f32 %v541, %v673
      %v675 = vpop.f32.mrb[0].mxu0
      %676 = vmatprep.mubr.bf16.mxu0 0
      %677 = vmatmul.mubr.bf16.gmra.mrb[0].mxu0 %v597
      %v678 = vpop.f32.mrb[0].mxu0
      %v679 = vadd.f32 %v541, %v678
      %v680 = vpop.f32.mrb[0].mxu0
      %v681 = vpop.f32.mrb[0].mxu0
      %v682 = vadd.f32 %v541, %v681
      %v683 = vpop.f32.mrb[0].mxu0
      %684 = vmatprep.mubr.bf16.mxu0 0
      %685 = vmatmul.mubr.bf16.gmra.mrb[0].mxu0 %v600
      %v686 = vpop.f32.mrb[0].mxu0
      %v687 = vadd.f32 %v541, %v686
      %v688 = vpop.f32.mrb[0].mxu0
      %v689 = vpop.f32.mrb[0].mxu0
      %v690 = vadd.f32 %v541, %v689
      %v691 = vpop.f32.mrb[0].mxu0
      %692 = vmatprep.mubr.bf16.mxu0 0
      %693 = vmatmul.mubr.bf16.gmra.mrb[0].mxu0 %v603
      %v694 = vpop.f32.mrb[0].mxu0
      %v695 = vadd.f32 %v541, %v694
      %v696 = vpop.f32.mrb[0].mxu0
      %v697 = vpop.f32.mrb[0].mxu0
      %v698 = vadd.f32 %v541, %v697
      %v699 = vpop.f32.mrb[0].mxu0
      %700 = vmatprep.mubr.bf16.mxu0 0
      %701 = vmatmul.mubr.bf16.gmra.mrb[0].mxu0 %v606
      %v702 = vpop.f32.mrb[0].mxu0
      %v703 = vadd.f32 %v541, %v702
      %v704 = vpop.f32.mrb[0].mxu0
      %v705 = vpop.f32.mrb[0].mxu0
      %v706 = vadd.f32 %v541, %v705
      %v707 = vpop.f32.mrb[0].mxu0
      %708 = vdwg.mxu0
      %v709 = vmax.f32 %v647, 0.0
      %v710 = vmax.f32 %v650, 0.0
      %v711 = vmax.f32 %v655, 0.0
      %v712 = vmax.f32 %v658, 0.0
      %v713 = vmax.f32 %v663, 0.0
      %v714 = vmax.f32 %v666, 0.0
      %v715 = vmax.f32 %v671, 0.0
      %v716 = vmax.f32 %v674, 0.0
      %v717 = vmax.f32 %v679, 0.0
      %v718 = vmax.f32 %v682, 0.0
      %v719 = vmax.f32 %v687, 0.0
      %v720 = vmax.f32 %v690, 0.0
      %v721 = vmax.f32 %v695, 0.0
      %v722 = vmax.f32 %v698, 0.0
      %v723 = vmax.f32 %v703, 0.0
      %v724 = vmax.f32 %v706, 0.0
      %v725 = vpack.c.bf16 %v710, %v709
      %v726 = vpack.c.bf16 %v712, %v711
      %v727 = vpack.c.bf16 %v714, %v713
      %v728 = vpack.c.bf16 %v716, %v715
      %v729 = vpack.c.bf16 %v718, %v717
      %v730 = vpack.c.bf16 %v720, %v719
      %v731 = vpack.c.bf16 %v722, %v721
      %v732 = vpack.c.bf16 %v724, %v723
      %v733 = vld [vmem:[%s3] sm:$0xf]
      %v734 = vld [vmem:[%s3 + $0x4] sm:$0xf]
      %v735 = vld [vmem:[%s3 + $0x8] sm:$0xf]
      %v736 = vld [vmem:[%s3 + $0xc] sm:$0xf]
      %v737 = vld [vmem:[%s3 + $0x10] sm:$0xf]
      %v738 = vld [vmem:[%s3 + $0x14] sm:$0xf]
      %v739 = vld [vmem:[%s3 + $0x18] sm:$0xf]
      %v740 = vld [vmem:[%s3 + $0x1c] sm:$0xf]
      %v741 = vld [vmem:[%s4] sm:$0x1]
      %v743 = vlaneseq
      %v744 = vshrl.u32 %v743, 7
      %v745 = vsub.s32 0, %v744
      %v746 = vrot.slane %v741, %v745
      %v756 = vunpack.c.l.b16 %v733
      %v757 = vunpack.c.l.b16 %v734
      %v758 = vunpack.c.l.b16 %v735
      %v759 = vunpack.c.l.b16 %v736
      %v760 = vunpack.c.l.b16 %v737
      %v761 = vunpack.c.l.b16 %v738
      %v762 = vunpack.c.l.b16 %v739
      %v763 = vunpack.c.l.b16 %v740
      %v764 = vpack.c.b16 %v757, %v756
      %v765 = vpack.c.b16 %v759, %v758
      %v766 = vpack.c.b16 %v761, %v760
      %v767 = vpack.c.b16 %v763, %v762
      %vm772 = vcmask 523264
      %v774 = vsel %vm772, %v725, 0
      %v777 = vsel %vm772, %v726, 0
      %v780 = vsel %vm772, %v727, 0
      %v783 = vsel %vm772, %v728, 0
      %v786 = vsel %vm772, %v729, 0
      %v789 = vsel %vm772, %v730, 0
      %v792 = vsel %vm772, %v731, 0
      %v795 = vsel %vm772, %v732, 0
      %797 = vmatprep.subr.bf16.mxu0 0
      %798 = vmatpush1.bf16.msra.mxu0 %v764
      %799 = vmatprep.subr.bf16.mxu0 0
      %800 = vmatpush1.bf16.msra.mxu0 %v765
      %801 = vmatprep.subr.bf16.mxu0 0
      %802 = vmatpush1.bf16.msra.mxu0 %v766
      %803 = vmatprep.subr.bf16.mxu0 0
      %804 = vmatpush1.bf16.msra.mxu0 %v767
      %805 = vmatprep.subr.bf16.mxu0 0
      %806 = vmatpush1.bf16.msra.mxu0 0
      %807 = vmatprep.subr.bf16.mxu0 0
      %808 = vmatpush1.bf16.msra.mxu0 0
      %809 = vmatprep.subr.bf16.mxu0 0
      %810 = vmatpush1.bf16.msra.mxu0 0
      %811 = vmatprep.subr.bf16.mxu0 0
      %812 = vmatpush1.bf16.msra.mxu0 0
      %813 = vmatprep.subr.bf16.mxu0 0
      %814 = vmatpush1.bf16.msra.mxu0 0
      %815 = vmatprep.subr.bf16.mxu0 0
      %816 = vmatpush1.bf16.msra.mxu0 0
      %817 = vmatprep.subr.bf16.mxu0 0
      %818 = vmatpush1.bf16.msra.mxu0 0
      %819 = vmatprep.subr.bf16.mxu0 0
      %820 = vmatpush1.bf16.msra.mxu0 0
      %821 = vmatprep.subr.bf16.mxu0 0
      %822 = vmatpush1.bf16.msra.mxu0 0
      %823 = vmatprep.subr.bf16.mxu0 0
      %824 = vmatpush1.bf16.msra.mxu0 0
      %825 = vmatprep.subr.bf16.mxu0 0
      %826 = vmatpush1.bf16.msra.mxu0 0
      %827 = vmatprep.subr.bf16.mxu0 0
      %828 = vmatpush1.bf16.msra.mxu0 0
      %829 = vmatprep.mubr.bf16.mxu0 0
      %830 = vmatmul.mubr.bf16.gmra.mrb[0].mxu0 %v774
      %v831 = vpop.f32.mrb[0].mxu0
      %v832 = vadd.f32 %v746, %v831
      %v833 = vpop.f32.mrb[0].mxu0
      %v834 = vpop.f32.mrb[0].mxu0
      %v835 = vadd.f32 %v746, %v834
      %v836 = vpop.f32.mrb[0].mxu0
      %837 = vmatprep.mubr.bf16.mxu0 0
      %838 = vmatmul.mubr.bf16.gmra.mrb[0].mxu0 %v777
      %v839 = vpop.f32.mrb[0].mxu0
      %v840 = vadd.f32 %v746, %v839
      %v841 = vpop.f32.mrb[0].mxu0
      %v842 = vpop.f32.mrb[0].mxu0
      %v843 = vadd.f32 %v746, %v842
      %v844 = vpop.f32.mrb[0].mxu0
      %845 = vmatprep.mubr.bf16.mxu0 0
      %846 = vmatmul.mubr.bf16.gmra.mrb[0].mxu0 %v780
      %v847 = vpop.f32.mrb[0].mxu0
      %v848 = vadd.f32 %v746, %v847
      %v849 = vpop.f32.mrb[0].mxu0
      %v850 = vpop.f32.mrb[0].mxu0
      %v851 = vadd.f32 %v746, %v850
      %v852 = vpop.f32.mrb[0].mxu0
      %853 = vmatprep.mubr.bf16.mxu0 0
      %854 = vmatmul.mubr.bf16.gmra.mrb[0].mxu0 %v783
      %v855 = vpop.f32.mrb[0].mxu0
      %v856 = vadd.f32 %v746, %v855
      %v857 = vpop.f32.mrb[0].mxu0
      %v858 = vpop.f32.mrb[0].mxu0
      %v859 = vadd.f32 %v746, %v858
      %v860 = vpop.f32.mrb[0].mxu0
      %861 = vmatprep.mubr.bf16.mxu0 0
      %862 = vmatmul.mubr.bf16.gmra.mrb[0].mxu0 %v786
      %v863 = vpop.f32.mrb[0].mxu0
      %v864 = vadd.f32 %v746, %v863
      %v865 = vpop.f32.mrb[0].mxu0
      %v866 = vpop.f32.mrb[0].mxu0
      %v867 = vadd.f32 %v746, %v866
      %v868 = vpop.f32.mrb[0].mxu0
      %869 = vmatprep.mubr.bf16.mxu0 0
      %870 = vmatmul.mubr.bf16.gmra.mrb[0].mxu0 %v789
      %v871 = vpop.f32.mrb[0].mxu0
      %v872 = vadd.f32 %v746, %v871
      %v873 = vpop.f32.mrb[0].mxu0
      %v874 = vpop.f32.mrb[0].mxu0
      %v875 = vadd.f32 %v746, %v874
      %v876 = vpop.f32.mrb[0].mxu0
      %877 = vmatprep.mubr.bf16.mxu0 0
      %878 = vmatmul.mubr.bf16.gmra.mrb[0].mxu0 %v792
      %v879 = vpop.f32.mrb[0].mxu0
      %v880 = vadd.f32 %v746, %v879
      %v881 = vpop.f32.mrb[0].mxu0
      %v882 = vpop.f32.mrb[0].mxu0
      %v883 = vadd.f32 %v746, %v882
      %v884 = vpop.f32.mrb[0].mxu0
      %885 = vmatprep.mubr.bf16.mxu0 0
      %886 = vmatmul.mubr.bf16.gmra.mrb[0].mxu0 %v795
      %v887 = vpop.f32.mrb[0].mxu0
      %v888 = vadd.f32 %v746, %v887
      %v889 = vpop.f32.mrb[0].mxu0
      %v890 = vpop.f32.mrb[0].mxu0
      %v891 = vadd.f32 %v746, %v890
      %v892 = vpop.f32.mrb[0].mxu0
      %893 = vdwg.mxu0
      %v894 = vmax.f32 %v832, 0.0
      %v895 = vmax.f32 %v835, 0.0
      %v896 = vmax.f32 %v840, 0.0
      %v897 = vmax.f32 %v843, 0.0
      %v898 = vmax.f32 %v848, 0.0
      %v899 = vmax.f32 %v851, 0.0
      %v900 = vmax.f32 %v856, 0.0
      %v901 = vmax.f32 %v859, 0.0
      %v902 = vmax.f32 %v864, 0.0
      %v903 = vmax.f32 %v867, 0.0
      %v904 = vmax.f32 %v872, 0.0
      %v905 = vmax.f32 %v875, 0.0
      %v906 = vmax.f32 %v880, 0.0
      %v907 = vmax.f32 %v883, 0.0
      %v908 = vmax.f32 %v888, 0.0
      %v909 = vmax.f32 %v891, 0.0
      %v910 = vpack.c.bf16 %v895, %v894
      %v911 = vpack.c.bf16 %v897, %v896
      %v912 = vpack.c.bf16 %v899, %v898
      %v913 = vpack.c.bf16 %v901, %v900
      %v914 = vpack.c.bf16 %v903, %v902
      %v915 = vpack.c.bf16 %v905, %v904
      %v916 = vpack.c.bf16 %v907, %v906
      %v917 = vpack.c.bf16 %v909, %v908
      %v926 = vunpack.c.l.b16 %v910
      %v927 = vunpack.c.h.b16 %v910
      %v928 = vunpack.c.l.b16 %v911
      %v929 = vunpack.c.h.b16 %v911
      %v930 = vunpack.c.l.b16 %v912
      %v931 = vunpack.c.h.b16 %v912
      %v932 = vunpack.c.l.b16 %v913
      %v933 = vunpack.c.h.b16 %v913
      %v934 = vunpack.c.l.b16 %v914
      %v935 = vunpack.c.h.b16 %v914
      %v936 = vunpack.c.l.b16 %v915
      %v937 = vunpack.c.h.b16 %v915
      %v938 = vunpack.c.l.b16 %v916
      %v939 = vunpack.c.h.b16 %v916
      %v940 = vunpack.c.l.b16 %v917
      %v941 = vunpack.c.h.b16 %v917
      %v942 = vpack.c.b16 %v926, %v926
      %v943 = vpack.c.b16 %v927, %v927
      %v944 = vpack.c.b16 %v928, %v928
      %v945 = vpack.c.b16 %v929, %v929
      %v946 = vpack.c.b16 %v930, %v930
      %v947 = vpack.c.b16 %v931, %v931
      %v948 = vpack.c.b16 %v932, %v932
      %v949 = vpack.c.b16 %v933, %v933
      %v950 = vpack.c.b16 %v934, %v934
      %v951 = vpack.c.b16 %v935, %v935
      %v952 = vpack.c.b16 %v936, %v936
      %v953 = vpack.c.b16 %v937, %v937
      %v954 = vpack.c.b16 %v938, %v938
      %v955 = vpack.c.b16 %v939, %v939
      %v956 = vpack.c.b16 %v940, %v940
      %v957 = vpack.c.b16 %v941, %v941
      %vm974 = vcmask 519168
      %975 = vst.msk [vmem:[%s512] sm:$0xf] %vm974, %v942
      %976 = vst.msk [vmem:[%s512 + $0x4] sm:$0xf] %vm974, %v943
      %977 = vst.msk [vmem:[%s512 + $0x8] sm:$0xf] %vm974, %v944
      %978 = vst.msk [vmem:[%s512 + $0xc] sm:$0xf] %vm974, %v945
      %979 = vst.msk [vmem:[%s512 + $0x10] sm:$0xf] %vm974, %v946
      %980 = vst.msk [vmem:[%s512 + $0x14] sm:$0xf] %vm974, %v947
      %981 = vst.msk [vmem:[%s512 + $0x18] sm:$0xf] %vm974, %v948
      %982 = vst.msk [vmem:[%s512 + $0x1c] sm:$0xf] %vm974, %v949
      %983 = vst.msk [vmem:[%s512 + $0x20] sm:$0xf] %vm974, %v950
      %984 = vst.msk [vmem:[%s512 + $0x24] sm:$0xf] %vm974, %v951
      %985 = vst.msk [vmem:[%s512 + $0x28] sm:$0xf] %vm974, %v952
      %986 = vst.msk [vmem:[%s512 + $0x2c] sm:$0xf] %vm974, %v953
      %987 = vst.msk [vmem:[%s512 + $0x30] sm:$0xf] %vm974, %v954
      %988 = vst.msk [vmem:[%s512 + $0x34] sm:$0xf] %vm974, %v955
      %989 = vst.msk [vmem:[%s512 + $0x38] sm:$0xf] %vm974, %v956
      %990 = vst.msk [vmem:[%s512 + $0x3c] sm:$0xf] %vm974, %v957
      %v991 = vld [vmem:[%s5] sm:$0xf]
      %v992 = vld [vmem:[%s5 + $0x4] sm:$0xf]
      %v993 = vld [vmem:[%s5 + $0x8] sm:$0xf]
      %v994 = vld [vmem:[%s5 + $0xc] sm:$0xf]
      %v995 = vld [vmem:[%s5 + $0x10] sm:$0xf]
      %v996 = vld [vmem:[%s5 + $0x14] sm:$0xf]
      %v997 = vld [vmem:[%s5 + $0x18] sm:$0xf]
      %v998 = vld [vmem:[%s5 + $0x1c] sm:$0xf]
      %v999 = vld [vmem:[%s6] sm:$0x1]
      %v1001 = vlaneseq
      %v1002 = vshrl.u32 %v1001, 7
      %v1003 = vsub.s32 0, %v1002
      %v1004 = vrot.slane %v999, %v1003
      %v1014 = vunpack.c.l.b16 %v991
      %v1015 = vunpack.c.l.b16 %v992
      %v1016 = vunpack.c.l.b16 %v993
      %v1017 = vunpack.c.l.b16 %v994
      %v1018 = vunpack.c.l.b16 %v995
      %v1019 = vunpack.c.l.b16 %v996
      %v1020 = vunpack.c.l.b16 %v997
      %v1021 = vunpack.c.l.b16 %v998
      %v1022 = vpack.c.b16 %v1015, %v1014
      %v1023 = vpack.c.b16 %v1017, %v1016
      %v1024 = vpack.c.b16 %v1019, %v1018
      %v1025 = vpack.c.b16 %v1021, %v1020
      %v1031 = vsel %vm772, %v910, 0
      %v1034 = vsel %vm772, %v911, 0
      %v1037 = vsel %vm772, %v912, 0
      %v1040 = vsel %vm772, %v913, 0
      %v1043 = vsel %vm772, %v914, 0
      %v1046 = vsel %vm772, %v915, 0
      %v1049 = vsel %vm772, %v916, 0
      %v1052 = vsel %vm772, %v917, 0
      %1054 = vmatprep.subr.bf16.mxu0 0
      %1055 = vmatpush1.bf16.msra.mxu0 %v1022
      %1056 = vmatprep.subr.bf16.mxu0 0
      %1057 = vmatpush1.bf16.msra.mxu0 %v1023
      %1058 = vmatprep.subr.bf16.mxu0 0
      %1059 = vmatpush1.bf16.msra.mxu0 %v1024
      %1060 = vmatprep.subr.bf16.mxu0 0
      %1061 = vmatpush1.bf16.msra.mxu0 %v1025
      %1062 = vmatprep.subr.bf16.mxu0 0
      %1063 = vmatpush1.bf16.msra.mxu0 0
      %1064 = vmatprep.subr.bf16.mxu0 0
      %1065 = vmatpush1.bf16.msra.mxu0 0
      %1066 = vmatprep.subr.bf16.mxu0 0
      %1067 = vmatpush1.bf16.msra.mxu0 0
      %1068 = vmatprep.subr.bf16.mxu0 0
      %1069 = vmatpush1.bf16.msra.mxu0 0
      %1070 = vmatprep.subr.bf16.mxu0 0
      %1071 = vmatpush1.bf16.msra.mxu0 0
      %1072 = vmatprep.subr.bf16.mxu0 0
      %1073 = vmatpush1.bf16.msra.mxu0 0
      %1074 = vmatprep.subr.bf16.mxu0 0
      %1075 = vmatpush1.bf16.msra.mxu0 0
      %1076 = vmatprep.subr.bf16.mxu0 0
      %1077 = vmatpush1.bf16.msra.mxu0 0
      %1078 = vmatprep.subr.bf16.mxu0 0
      %1079 = vmatpush1.bf16.msra.mxu0 0
      %1080 = vmatprep.subr.bf16.mxu0 0
      %1081 = vmatpush1.bf16.msra.mxu0 0
      %1082 = vmatprep.subr.bf16.mxu0 0
      %1083 = vmatpush1.bf16.msra.mxu0 0
      %1084 = vmatprep.subr.bf16.mxu0 0
      %1085 = vmatpush1.bf16.msra.mxu0 0
      %1086 = vmatprep.mubr.bf16.mxu0 0
      %1087 = vmatmul.mubr.bf16.gmra.mrb[0].mxu0 %v1031
      %v1088 = vpop.f32.mrb[0].mxu0
      %v1089 = vadd.f32 %v1004, %v1088
      %v1090 = vpop.f32.mrb[0].mxu0
      %v1091 = vpop.f32.mrb[0].mxu0
      %v1092 = vadd.f32 %v1004, %v1091
      %v1093 = vpop.f32.mrb[0].mxu0
      %1094 = vmatprep.mubr.bf16.mxu0 0
      %1095 = vmatmul.mubr.bf16.gmra.mrb[0].mxu0 %v1034
      %v1096 = vpop.f32.mrb[0].mxu0
      %v1097 = vadd.f32 %v1004, %v1096
      %v1098 = vpop.f32.mrb[0].mxu0
      %v1099 = vpop.f32.mrb[0].mxu0
      %v1100 = vadd.f32 %v1004, %v1099
      %v1101 = vpop.f32.mrb[0].mxu0
      %1102 = vmatprep.mubr.bf16.mxu0 0
      %1103 = vmatmul.mubr.bf16.gmra.mrb[0].mxu0 %v1037
      %v1104 = vpop.f32.mrb[0].mxu0
      %v1105 = vadd.f32 %v1004, %v1104
      %v1106 = vpop.f32.mrb[0].mxu0
      %v1107 = vpop.f32.mrb[0].mxu0
      %v1108 = vadd.f32 %v1004, %v1107
      %v1109 = vpop.f32.mrb[0].mxu0
      %1110 = vmatprep.mubr.bf16.mxu0 0
      %1111 = vmatmul.mubr.bf16.gmra.mrb[0].mxu0 %v1040
      %v1112 = vpop.f32.mrb[0].mxu0
      %v1113 = vadd.f32 %v1004, %v1112
      %v1114 = vpop.f32.mrb[0].mxu0
      %v1115 = vpop.f32.mrb[0].mxu0
      %v1116 = vadd.f32 %v1004, %v1115
      %v1117 = vpop.f32.mrb[0].mxu0
      %1118 = vmatprep.mubr.bf16.mxu0 0
      %1119 = vmatmul.mubr.bf16.gmra.mrb[0].mxu0 %v1043
      %v1120 = vpop.f32.mrb[0].mxu0
      %v1121 = vadd.f32 %v1004, %v1120
      %v1122 = vpop.f32.mrb[0].mxu0
      %v1123 = vpop.f32.mrb[0].mxu0
      %v1124 = vadd.f32 %v1004, %v1123
      %v1125 = vpop.f32.mrb[0].mxu0
      %1126 = vmatprep.mubr.bf16.mxu0 0
      %1127 = vmatmul.mubr.bf16.gmra.mrb[0].mxu0 %v1046
      %v1128 = vpop.f32.mrb[0].mxu0
      %v1129 = vadd.f32 %v1004, %v1128
      %v1130 = vpop.f32.mrb[0].mxu0
      %v1131 = vpop.f32.mrb[0].mxu0
      %v1132 = vadd.f32 %v1004, %v1131
      %v1133 = vpop.f32.mrb[0].mxu0
      %1134 = vmatprep.mubr.bf16.mxu0 0
      %1135 = vmatmul.mubr.bf16.gmra.mrb[0].mxu0 %v1049
      %v1136 = vpop.f32.mrb[0].mxu0
      %v1137 = vadd.f32 %v1004, %v1136
      %v1138 = vpop.f32.mrb[0].mxu0
      %v1139 = vpop.f32.mrb[0].mxu0
      %v1140 = vadd.f32 %v1004, %v1139
      %v1141 = vpop.f32.mrb[0].mxu0
      %1142 = vmatprep.mubr.bf16.mxu0 0
      %1143 = vmatmul.mubr.bf16.gmra.mrb[0].mxu0 %v1052
      %v1144 = vpop.f32.mrb[0].mxu0
      %v1145 = vadd.f32 %v1004, %v1144
      %v1146 = vpop.f32.mrb[0].mxu0
      %v1147 = vpop.f32.mrb[0].mxu0
      %v1148 = vadd.f32 %v1004, %v1147
      %v1149 = vpop.f32.mrb[0].mxu0
      %1150 = vdwg.mxu0
      %v1151 = vmax.f32 %v1089, 0.0
      %v1152 = vmax.f32 %v1092, 0.0
      %v1153 = vmax.f32 %v1097, 0.0
      %v1154 = vmax.f32 %v1100, 0.0
      %v1155 = vmax.f32 %v1105, 0.0
      %v1156 = vmax.f32 %v1108, 0.0
      %v1157 = vmax.f32 %v1113, 0.0
      %v1158 = vmax.f32 %v1116, 0.0
      %v1159 = vmax.f32 %v1121, 0.0
      %v1160 = vmax.f32 %v1124, 0.0
      %v1161 = vmax.f32 %v1129, 0.0
      %v1162 = vmax.f32 %v1132, 0.0
      %v1163 = vmax.f32 %v1137, 0.0
      %v1164 = vmax.f32 %v1140, 0.0
      %v1165 = vmax.f32 %v1145, 0.0
      %v1166 = vmax.f32 %v1148, 0.0
      %v1167 = vpack.c.bf16 %v1152, %v1151
      %v1168 = vpack.c.bf16 %v1154, %v1153
      %v1169 = vpack.c.bf16 %v1156, %v1155
      %v1170 = vpack.c.bf16 %v1158, %v1157
      %v1171 = vpack.c.bf16 %v1160, %v1159
      %v1172 = vpack.c.bf16 %v1162, %v1161
      %v1173 = vpack.c.bf16 %v1164, %v1163
      %v1174 = vpack.c.bf16 %v1166, %v1165
      %v1175 = vld [vmem:[%s7] sm:$0xf]
      %v1176 = vld [vmem:[%s7 + $0x4] sm:$0xf]
      %v1177 = vld [vmem:[%s7 + $0x8] sm:$0xf]
      %v1178 = vld [vmem:[%s7 + $0xc] sm:$0xf]
      %v1179 = vld [vmem:[%s7 + $0x10] sm:$0xf]
      %v1180 = vld [vmem:[%s7 + $0x14] sm:$0xf]
      %v1181 = vld [vmem:[%s7 + $0x18] sm:$0xf]
      %v1182 = vld [vmem:[%s7 + $0x1c] sm:$0xf]
      %v1183 = vld [vmem:[%s8] sm:$0x1]
      %v1185 = vlaneseq
      %v1186 = vshrl.u32 %v1185, 7
      %v1187 = vsub.s32 0, %v1186
      %v1188 = vrot.slane %v1183, %v1187
      %v1198 = vunpack.c.l.b16 %v1175
      %v1199 = vunpack.c.l.b16 %v1176
      %v1200 = vunpack.c.l.b16 %v1177
      %v1201 = vunpack.c.l.b16 %v1178
      %v1202 = vunpack.c.l.b16 %v1179
      %v1203 = vunpack.c.l.b16 %v1180
      %v1204 = vunpack.c.l.b16 %v1181
      %v1205 = vunpack.c.l.b16 %v1182
      %v1206 = vpack.c.b16 %v1199, %v1198
      %v1207 = vpack.c.b16 %v1201, %v1200
      %v1208 = vpack.c.b16 %v1203, %v1202
      %v1209 = vpack.c.b16 %v1205, %v1204
      %v1215 = vsel %vm772, %v1167, 0
      %v1218 = vsel %vm772, %v1168, 0
      %v1221 = vsel %vm772, %v1169, 0
      %v1224 = vsel %vm772, %v1170, 0
      %v1227 = vsel %vm772, %v1171, 0
      %v1230 = vsel %vm772, %v1172, 0
      %v1233 = vsel %vm772, %v1173, 0
      %v1236 = vsel %vm772, %v1174, 0
      %1238 = vmatprep.subr.bf16.mxu0 0
      %1239 = vmatpush1.bf16.msra.mxu0 %v1206
      %1240 = vmatprep.subr.bf16.mxu0 0
      %1241 = vmatpush1.bf16.msra.mxu0 %v1207
      %1242 = vmatprep.subr.bf16.mxu0 0
      %1243 = vmatpush1.bf16.msra.mxu0 %v1208
      %1244 = vmatprep.subr.bf16.mxu0 0
      %1245 = vmatpush1.bf16.msra.mxu0 %v1209
      %1246 = vmatprep.subr.bf16.mxu0 0
      %1247 = vmatpush1.bf16.msra.mxu0 0
      %1248 = vmatprep.subr.bf16.mxu0 0
      %1249 = vmatpush1.bf16.msra.mxu0 0
      %1250 = vmatprep.subr.bf16.mxu0 0
      %1251 = vmatpush1.bf16.msra.mxu0 0
      %1252 = vmatprep.subr.bf16.mxu0 0
      %1253 = vmatpush1.bf16.msra.mxu0 0
      %1254 = vmatprep.subr.bf16.mxu0 0
      %1255 = vmatpush1.bf16.msra.mxu0 0
      %1256 = vmatprep.subr.bf16.mxu0 0
      %1257 = vmatpush1.bf16.msra.mxu0 0
      %1258 = vmatprep.subr.bf16.mxu0 0
      %1259 = vmatpush1.bf16.msra.mxu0 0
      %1260 = vmatprep.subr.bf16.mxu0 0
      %1261 = vmatpush1.bf16.msra.mxu0 0
      %1262 = vmatprep.subr.bf16.mxu0 0
      %1263 = vmatpush1.bf16.msra.mxu0 0
      %1264 = vmatprep.subr.bf16.mxu0 0
      %1265 = vmatpush1.bf16.msra.mxu0 0
      %1266 = vmatprep.subr.bf16.mxu0 0
      %1267 = vmatpush1.bf16.msra.mxu0 0
      %1268 = vmatprep.subr.bf16.mxu0 0
      %1269 = vmatpush1.bf16.msra.mxu0 0
      %1270 = vmatprep.mubr.bf16.mxu0 0
      %1271 = vmatmul.mubr.bf16.gmra.mrb[0].mxu0 %v1215
      %v1272 = vpop.f32.mrb[0].mxu0
      %v1273 = vadd.f32 %v1188, %v1272
      %v1274 = vpop.f32.mrb[0].mxu0
      %v1275 = vpop.f32.mrb[0].mxu0
      %v1276 = vadd.f32 %v1188, %v1275
      %v1277 = vpop.f32.mrb[0].mxu0
      %1278 = vmatprep.mubr.bf16.mxu0 0
      %1279 = vmatmul.mubr.bf16.gmra.mrb[0].mxu0 %v1218
      %v1280 = vpop.f32.mrb[0].mxu0
      %v1281 = vadd.f32 %v1188, %v1280
      %v1282 = vpop.f32.mrb[0].mxu0
      %v1283 = vpop.f32.mrb[0].mxu0
      %v1284 = vadd.f32 %v1188, %v1283
      %v1285 = vpop.f32.mrb[0].mxu0
      %1286 = vmatprep.mubr.bf16.mxu0 0
      %1287 = vmatmul.mubr.bf16.gmra.mrb[0].mxu0 %v1221
      %v1288 = vpop.f32.mrb[0].mxu0
      %v1289 = vadd.f32 %v1188, %v1288
      %v1290 = vpop.f32.mrb[0].mxu0
      %v1291 = vpop.f32.mrb[0].mxu0
      %v1292 = vadd.f32 %v1188, %v1291
      %v1293 = vpop.f32.mrb[0].mxu0
      %1294 = vmatprep.mubr.bf16.mxu0 0
      %1295 = vmatmul.mubr.bf16.gmra.mrb[0].mxu0 %v1224
      %v1296 = vpop.f32.mrb[0].mxu0
      %v1297 = vadd.f32 %v1188, %v1296
      %v1298 = vpop.f32.mrb[0].mxu0
      %v1299 = vpop.f32.mrb[0].mxu0
      %v1300 = vadd.f32 %v1188, %v1299
      %v1301 = vpop.f32.mrb[0].mxu0
      %1302 = vmatprep.mubr.bf16.mxu0 0
      %1303 = vmatmul.mubr.bf16.gmra.mrb[0].mxu0 %v1227
      %v1304 = vpop.f32.mrb[0].mxu0
      %v1305 = vadd.f32 %v1188, %v1304
      %v1306 = vpop.f32.mrb[0].mxu0
      %v1307 = vpop.f32.mrb[0].mxu0
      %v1308 = vadd.f32 %v1188, %v1307
      %v1309 = vpop.f32.mrb[0].mxu0
      %1310 = vmatprep.mubr.bf16.mxu0 0
      %1311 = vmatmul.mubr.bf16.gmra.mrb[0].mxu0 %v1230
      %v1312 = vpop.f32.mrb[0].mxu0
      %v1313 = vadd.f32 %v1188, %v1312
      %v1314 = vpop.f32.mrb[0].mxu0
      %v1315 = vpop.f32.mrb[0].mxu0
      %v1316 = vadd.f32 %v1188, %v1315
      %v1317 = vpop.f32.mrb[0].mxu0
      %1318 = vmatprep.mubr.bf16.mxu0 0
      %1319 = vmatmul.mubr.bf16.gmra.mrb[0].mxu0 %v1233
      %v1320 = vpop.f32.mrb[0].mxu0
      %v1321 = vadd.f32 %v1188, %v1320
      %v1322 = vpop.f32.mrb[0].mxu0
      %v1323 = vpop.f32.mrb[0].mxu0
      %v1324 = vadd.f32 %v1188, %v1323
      %v1325 = vpop.f32.mrb[0].mxu0
      %1326 = vmatprep.mubr.bf16.mxu0 0
      %1327 = vmatmul.mubr.bf16.gmra.mrb[0].mxu0 %v1236
      %v1328 = vpop.f32.mrb[0].mxu0
      %v1329 = vadd.f32 %v1188, %v1328
      %v1330 = vpop.f32.mrb[0].mxu0
      %v1331 = vpop.f32.mrb[0].mxu0
      %v1332 = vadd.f32 %v1188, %v1331
      %v1333 = vpop.f32.mrb[0].mxu0
      %1334 = vdwg.mxu0
      %v1335 = vmax.f32 %v1273, 0.0
      %v1336 = vmax.f32 %v1276, 0.0
      %v1337 = vmax.f32 %v1281, 0.0
      %v1338 = vmax.f32 %v1284, 0.0
      %v1339 = vmax.f32 %v1289, 0.0
      %v1340 = vmax.f32 %v1292, 0.0
      %v1341 = vmax.f32 %v1297, 0.0
      %v1342 = vmax.f32 %v1300, 0.0
      %v1343 = vmax.f32 %v1305, 0.0
      %v1344 = vmax.f32 %v1308, 0.0
      %v1345 = vmax.f32 %v1313, 0.0
      %v1346 = vmax.f32 %v1316, 0.0
      %v1347 = vmax.f32 %v1321, 0.0
      %v1348 = vmax.f32 %v1324, 0.0
      %v1349 = vmax.f32 %v1329, 0.0
      %v1350 = vmax.f32 %v1332, 0.0
      %v1351 = vpack.c.bf16 %v1336, %v1335
      %v1352 = vpack.c.bf16 %v1338, %v1337
      %v1353 = vpack.c.bf16 %v1340, %v1339
      %v1354 = vpack.c.bf16 %v1342, %v1341
      %v1355 = vpack.c.bf16 %v1344, %v1343
      %v1356 = vpack.c.bf16 %v1346, %v1345
      %v1357 = vpack.c.bf16 %v1348, %v1347
      %v1358 = vpack.c.bf16 %v1350, %v1349
      %v1359 = vld [vmem:[%s9] sm:$0xff]
      %v1360 = vld [vmem:[%s9 + $0x8] sm:$0xff]
      %v1361 = vld [vmem:[%s9 + $0x10] sm:$0xff]
      %v1362 = vld [vmem:[%s9 + $0x18] sm:$0xff]
      %v1363 = vld [vmem:[%s9 + $0x20] sm:$0xff]
      %v1364 = vld [vmem:[%s9 + $0x28] sm:$0xff]
      %v1365 = vld [vmem:[%s9 + $0x30] sm:$0xff]
      %v1366 = vld [vmem:[%s9 + $0x38] sm:$0xff]
      %v1367 = vld [vmem:[%s9 + $0x40] sm:$0xff]
      %v1368 = vld [vmem:[%s9 + $0x48] sm:$0xff]
      %v1369 = vld [vmem:[%s9 + $0x50] sm:$0xff]
      %v1370 = vld [vmem:[%s9 + $0x58] sm:$0xff]
      %v1371 = vld [vmem:[%s9 + $0x60] sm:$0xff]
      %v1372 = vld [vmem:[%s9 + $0x68] sm:$0xff]
      %v1373 = vld [vmem:[%s9 + $0x70] sm:$0xff]
      %v1374 = vld [vmem:[%s9 + $0x78] sm:$0xff]
      %v1375 = vld [vmem:[%s9 + $0x80] sm:$0xff]
      %v1376 = vld [vmem:[%s9 + $0x88] sm:$0xff]
      %v1377 = vld [vmem:[%s9 + $0x90] sm:$0xff]
      %v1378 = vld [vmem:[%s9 + $0x98] sm:$0xff]
      %v1379 = vld [vmem:[%s9 + $0xa0] sm:$0xff]
      %v1380 = vld [vmem:[%s9 + $0xa8] sm:$0xff]
      %v1381 = vld [vmem:[%s9 + $0xb0] sm:$0xff]
      %v1382 = vld [vmem:[%s9 + $0xb8] sm:$0xff]
      %v1383 = vld [vmem:[%s9 + $0xc0] sm:$0xff]
      %v1384 = vld [vmem:[%s9 + $0xc8] sm:$0xff]
      %v1385 = vld [vmem:[%s9 + $0xd0] sm:$0xff]
      %v1386 = vld [vmem:[%s9 + $0xd8] sm:$0xff]
      %v1387 = vld [vmem:[%s9 + $0xe0] sm:$0xff]
      %v1388 = vld [vmem:[%s9 + $0xe8] sm:$0xff]
      %v1389 = vld [vmem:[%s9 + $0xf0] sm:$0xff]
      %v1390 = vld [vmem:[%s9 + $0xf8] sm:$0xff]
      %v1391 = vld [vmem:[%s9 + $0x100] sm:$0xff]
      %v1392 = vld [vmem:[%s9 + $0x108] sm:$0xff]
      %v1393 = vld [vmem:[%s9 + $0x110] sm:$0xff]
      %v1394 = vld [vmem:[%s9 + $0x118] sm:$0xff]
      %v1395 = vld [vmem:[%s9 + $0x120] sm:$0xff]
      %v1396 = vld [vmem:[%s9 + $0x128] sm:$0xff]
      %v1397 = vld [vmem:[%s9 + $0x130] sm:$0xff]
      %v1398 = vld [vmem:[%s9 + $0x138] sm:$0xff]
      %v1399 = vld [vmem:[%s9 + $0x140] sm:$0xff]
      %v1400 = vld [vmem:[%s9 + $0x148] sm:$0xff]
      %v1401 = vld [vmem:[%s9 + $0x150] sm:$0xff]
      %v1402 = vld [vmem:[%s9 + $0x158] sm:$0xff]
      %v1403 = vld [vmem:[%s9 + $0x160] sm:$0xff]
      %v1404 = vld [vmem:[%s9 + $0x168] sm:$0xff]
      %v1405 = vld [vmem:[%s9 + $0x170] sm:$0xff]
      %v1406 = vld [vmem:[%s9 + $0x178] sm:$0xff]
      %v1407 = vld [vmem:[%s9 + $0x180] sm:$0xff]
      %v1408 = vld [vmem:[%s9 + $0x188] sm:$0xff]
      %v1409 = vld [vmem:[%s9 + $0x190] sm:$0xff]
      %v1410 = vld [vmem:[%s9 + $0x198] sm:$0xff]
      %v1411 = vld [vmem:[%s9 + $0x1a0] sm:$0xff]
      %v1412 = vld [vmem:[%s9 + $0x1a8] sm:$0xff]
      %v1413 = vld [vmem:[%s9 + $0x1b0] sm:$0xff]
      %v1414 = vld [vmem:[%s9 + $0x1b8] sm:$0xff]
      %v1415 = vld [vmem:[%s9 + $0x1c0] sm:$0xff]
      %v1416 = vld [vmem:[%s9 + $0x1c8] sm:$0xff]
      %v1417 = vld [vmem:[%s9 + $0x1d0] sm:$0xff]
      %v1418 = vld [vmem:[%s9 + $0x1d8] sm:$0xff]
      %v1419 = vld [vmem:[%s9 + $0x1e0] sm:$0xff]
      %v1420 = vld [vmem:[%s9 + $0x1e8] sm:$0xff]
      %v1421 = vld [vmem:[%s9 + $0x1f0] sm:$0xff]
      %v1422 = vld [vmem:[%s9 + $0x1f8] sm:$0xff]
      %v1487 = vunpack.c.l.b16 %v1359
      %v1488 = vunpack.c.h.b16 %v1359
      %v1489 = vunpack.c.l.b16 %v1360
      %v1490 = vunpack.c.h.b16 %v1360
      %v1491 = vunpack.c.l.b16 %v1361
      %v1492 = vunpack.c.h.b16 %v1361
      %v1493 = vunpack.c.l.b16 %v1362
      %v1494 = vunpack.c.h.b16 %v1362
      %v1495 = vunpack.c.l.b16 %v1363
      %v1496 = vunpack.c.h.b16 %v1363
      %v1497 = vunpack.c.l.b16 %v1364
      %v1498 = vunpack.c.h.b16 %v1364
      %v1499 = vunpack.c.l.b16 %v1365
      %v1500 = vunpack.c.h.b16 %v1365
      %v1501 = vunpack.c.l.b16 %v1366
      %v1502 = vunpack.c.h.b16 %v1366
      %v1503 = vunpack.c.l.b16 %v1367
      %v1504 = vunpack.c.h.b16 %v1367
      %v1505 = vunpack.c.l.b16 %v1368
      %v1506 = vunpack.c.h.b16 %v1368
      %v1507 = vunpack.c.l.b16 %v1369
      %v1508 = vunpack.c.h.b16 %v1369
      %v1509 = vunpack.c.l.b16 %v1370
      %v1510 = vunpack.c.h.b16 %v1370
      %v1511 = vunpack.c.l.b16 %v1371
      %v1512 = vunpack.c.h.b16 %v1371
      %v1513 = vunpack.c.l.b16 %v1372
      %v1514 = vunpack.c.h.b16 %v1372
      %v1515 = vunpack.c.l.b16 %v1373
      %v1516 = vunpack.c.h.b16 %v1373
      %v1517 = vunpack.c.l.b16 %v1374
      %v1518 = vunpack.c.h.b16 %v1374
      %v1519 = vunpack.c.l.b16 %v1375
      %v1520 = vunpack.c.h.b16 %v1375
      %v1521 = vunpack.c.l.b16 %v1376
      %v1522 = vunpack.c.h.b16 %v1376
      %v1523 = vunpack.c.l.b16 %v1377
      %v1524 = vunpack.c.h.b16 %v1377
      %v1525 = vunpack.c.l.b16 %v1378
      %v1526 = vunpack.c.h.b16 %v1378
      %v1527 = vunpack.c.l.b16 %v1379
      %v1528 = vunpack.c.h.b16 %v1379
      %v1529 = vunpack.c.l.b16 %v1380
      %v1530 = vunpack.c.h.b16 %v1380
      %v1531 = vunpack.c.l.b16 %v1381
      %v1532 = vunpack.c.h.b16 %v1381
      %v1533 = vunpack.c.l.b16 %v1382
      %v1534 = vunpack.c.h.b16 %v1382
      %v1535 = vunpack.c.l.b16 %v1383
      %v1536 = vunpack.c.h.b16 %v1383
      %v1537 = vunpack.c.l.b16 %v1384
      %v1538 = vunpack.c.h.b16 %v1384
      %v1539 = vunpack.c.l.b16 %v1385
      %v1540 = vunpack.c.h.b16 %v1385
      %v1541 = vunpack.c.l.b16 %v1386
      %v1542 = vunpack.c.h.b16 %v1386
      %v1543 = vunpack.c.l.b16 %v1387
      %v1544 = vunpack.c.h.b16 %v1387
      %v1545 = vunpack.c.l.b16 %v1388
      %v1546 = vunpack.c.h.b16 %v1388
      %v1547 = vunpack.c.l.b16 %v1389
      %v1548 = vunpack.c.h.b16 %v1389
      %v1549 = vunpack.c.l.b16 %v1390
      %v1550 = vunpack.c.h.b16 %v1390
      %v1551 = vunpack.c.l.b16 %v1391
      %v1552 = vunpack.c.h.b16 %v1391
      %v1553 = vunpack.c.l.b16 %v1392
      %v1554 = vunpack.c.h.b16 %v1392
      %v1555 = vunpack.c.l.b16 %v1393
      %v1556 = vunpack.c.h.b16 %v1393
      %v1557 = vunpack.c.l.b16 %v1394
      %v1558 = vunpack.c.h.b16 %v1394
      %v1559 = vunpack.c.l.b16 %v1395
      %v1560 = vunpack.c.h.b16 %v1395
      %v1561 = vunpack.c.l.b16 %v1396
      %v1562 = vunpack.c.h.b16 %v1396
      %v1563 = vunpack.c.l.b16 %v1397
      %v1564 = vunpack.c.h.b16 %v1397
      %v1565 = vunpack.c.l.b16 %v1398
      %v1566 = vunpack.c.h.b16 %v1398
      %v1567 = vunpack.c.l.b16 %v1399
      %v1568 = vunpack.c.h.b16 %v1399
      %v1569 = vunpack.c.l.b16 %v1400
      %v1570 = vunpack.c.h.b16 %v1400
      %v1571 = vunpack.c.l.b16 %v1401
      %v1572 = vunpack.c.h.b16 %v1401
      %v1573 = vunpack.c.l.b16 %v1402
      %v1574 = vunpack.c.h.b16 %v1402
      %v1575 = vunpack.c.l.b16 %v1403
      %v1576 = vunpack.c.h.b16 %v1403
      %v1577 = vunpack.c.l.b16 %v1404
      %v1578 = vunpack.c.h.b16 %v1404
      %v1579 = vunpack.c.l.b16 %v1405
      %v1580 = vunpack.c.h.b16 %v1405
      %v1581 = vunpack.c.l.b16 %v1406
      %v1582 = vunpack.c.h.b16 %v1406
      %v1583 = vunpack.c.l.b16 %v1407
      %v1584 = vunpack.c.h.b16 %v1407
      %v1585 = vunpack.c.l.b16 %v1408
      %v1586 = vunpack.c.h.b16 %v1408
      %v1587 = vunpack.c.l.b16 %v1409
      %v1588 = vunpack.c.h.b16 %v1409
      %v1589 = vunpack.c.l.b16 %v1410
      %v1590 = vunpack.c.h.b16 %v1410
      %v1591 = vunpack.c.l.b16 %v1411
      %v1592 = vunpack.c.h.b16 %v1411
      %v1593 = vunpack.c.l.b16 %v1412
      %v1594 = vunpack.c.h.b16 %v1412
      %v1595 = vunpack.c.l.b16 %v1413
      %v1596 = vunpack.c.h.b16 %v1413
      %v1597 = vunpack.c.l.b16 %v1414
      %v1598 = vunpack.c.h.b16 %v1414
      %v1599 = vunpack.c.l.b16 %v1415
      %v1600 = vunpack.c.h.b16 %v1415
      %v1601 = vunpack.c.l.b16 %v1416
      %v1602 = vunpack.c.h.b16 %v1416
      %v1603 = vunpack.c.l.b16 %v1417
      %v1604 = vunpack.c.h.b16 %v1417
      %v1605 = vunpack.c.l.b16 %v1418
      %v1606 = vunpack.c.h.b16 %v1418
      %v1607 = vunpack.c.l.b16 %v1419
      %v1608 = vunpack.c.h.b16 %v1419
      %v1609 = vunpack.c.l.b16 %v1420
      %v1610 = vunpack.c.h.b16 %v1420
      %v1611 = vunpack.c.l.b16 %v1421
      %v1612 = vunpack.c.h.b16 %v1421
      %v1613 = vunpack.c.l.b16 %v1422
      %v1614 = vunpack.c.h.b16 %v1422
      %v1615 = vpack.c.b16 %v1495, %v1487
      %v1616 = vpack.c.b16 %v1496, %v1488
      %v1617 = vpack.c.b16 %v1497, %v1489
      %v1618 = vpack.c.b16 %v1498, %v1490
      %v1619 = vpack.c.b16 %v1499, %v1491
      %v1620 = vpack.c.b16 %v1500, %v1492
      %v1621 = vpack.c.b16 %v1501, %v1493
      %v1622 = vpack.c.b16 %v1502, %v1494
      %v1623 = vpack.c.b16 %v1511, %v1503
      %v1624 = vpack.c.b16 %v1512, %v1504
      %v1625 = vpack.c.b16 %v1513, %v1505
      %v1626 = vpack.c.b16 %v1514, %v1506
      %v1627 = vpack.c.b16 %v1515, %v1507
      %v1628 = vpack.c.b16 %v1516, %v1508
      %v1629 = vpack.c.b16 %v1517, %v1509
      %v1630 = vpack.c.b16 %v1518, %v1510
      %v1631 = vpack.c.b16 %v1527, %v1519
      %v1632 = vpack.c.b16 %v1528, %v1520
      %v1633 = vpack.c.b16 %v1529, %v1521
      %v1634 = vpack.c.b16 %v1530, %v1522
      %v1635 = vpack.c.b16 %v1531, %v1523
      %v1636 = vpack.c.b16 %v1532, %v1524
      %v1637 = vpack.c.b16 %v1533, %v1525
      %v1638 = vpack.c.b16 %v1534, %v1526
      %v1639 = vpack.c.b16 %v1543, %v1535
      %v1640 = vpack.c.b16 %v1544, %v1536
      %v1641 = vpack.c.b16 %v1545, %v1537
      %v1642 = vpack.c.b16 %v1546, %v1538
      %v1643 = vpack.c.b16 %v1547, %v1539
      %v1644 = vpack.c.b16 %v1548, %v1540
      %v1645 = vpack.c.b16 %v1549, %v1541
      %v1646 = vpack.c.b16 %v1550, %v1542
      %v1647 = vpack.c.b16 %v1559, %v1551
      %v1648 = vpack.c.b16 %v1560, %v1552
      %v1649 = vpack.c.b16 %v1561, %v1553
      %v1650 = vpack.c.b16 %v1562, %v1554
      %v1651 = vpack.c.b16 %v1563, %v1555
      %v1652 = vpack.c.b16 %v1564, %v1556
      %v1653 = vpack.c.b16 %v1565, %v1557
      %v1654 = vpack.c.b16 %v1566, %v1558
      %v1655 = vpack.c.b16 %v1575, %v1567
      %v1656 = vpack.c.b16 %v1576, %v1568
      %v1657 = vpack.c.b16 %v1577, %v1569
      %v1658 = vpack.c.b16 %v1578, %v1570
      %v1659 = vpack.c.b16 %v1579, %v1571
      %v1660 = vpack.c.b16 %v1580, %v1572
      %v1661 = vpack.c.b16 %v1581, %v1573
      %v1662 = vpack.c.b16 %v1582, %v1574
      %v1663 = vpack.c.b16 %v1591, %v1583
      %v1664 = vpack.c.b16 %v1592, %v1584
      %v1665 = vpack.c.b16 %v1593, %v1585
      %v1666 = vpack.c.b16 %v1594, %v1586
      %v1667 = vpack.c.b16 %v1595, %v1587
      %v1668 = vpack.c.b16 %v1596, %v1588
      %v1669 = vpack.c.b16 %v1597, %v1589
      %v1670 = vpack.c.b16 %v1598, %v1590
      %v1671 = vpack.c.b16 %v1607, %v1599
      %v1672 = vpack.c.b16 %v1608, %v1600
      %v1673 = vpack.c.b16 %v1609, %v1601
      %v1674 = vpack.c.b16 %v1610, %v1602
      %v1675 = vpack.c.b16 %v1611, %v1603
      %v1676 = vpack.c.b16 %v1612, %v1604
      %v1677 = vpack.c.b16 %v1613, %v1605
      %v1678 = vpack.c.b16 %v1614, %v1606
      %1743 = vmatprep.subr.bf16.mxu0 %v1616
      %1744 = vmatpush1.bf16.msra.mxu0 %v1615
      %1745 = vmatprep.subr.bf16.mxu0 %v1624
      %1746 = vmatpush1.bf16.msra.mxu0 %v1623
      %1747 = vmatprep.subr.bf16.mxu0 %v1632
      %1748 = vmatpush1.bf16.msra.mxu0 %v1631
      %1749 = vmatprep.subr.bf16.mxu0 %v1640
      %1750 = vmatpush1.bf16.msra.mxu0 %v1639
      %1751 = vmatprep.subr.bf16.mxu0 %v1648
      %1752 = vmatpush1.bf16.msra.mxu0 %v1647
      %1753 = vmatprep.subr.bf16.mxu0 %v1656
      %1754 = vmatpush1.bf16.msra.mxu0 %v1655
      %1755 = vmatprep.subr.bf16.mxu0 %v1664
      %1756 = vmatpush1.bf16.msra.mxu0 %v1663
      %1757 = vmatprep.subr.bf16.mxu0 %v1672
      %1758 = vmatpush1.bf16.msra.mxu0 %v1671
      %1759 = vmatprep.subr.bf16.mxu0 0
      %1760 = vmatpush1.bf16.msra.mxu0 0
      %1761 = vmatprep.subr.bf16.mxu0 0
      %1762 = vmatpush1.bf16.msra.mxu0 0
      %1763 = vmatprep.subr.bf16.mxu0 0
      %1764 = vmatpush1.bf16.msra.mxu0 0
      %1765 = vmatprep.subr.bf16.mxu0 0
      %1766 = vmatpush1.bf16.msra.mxu0 0
      %1767 = vmatprep.subr.bf16.mxu0 0
      %1768 = vmatpush1.bf16.msra.mxu0 0
      %1769 = vmatprep.subr.bf16.mxu0 0
      %1770 = vmatpush1.bf16.msra.mxu0 0
      %1771 = vmatprep.subr.bf16.mxu0 0
      %1772 = vmatpush1.bf16.msra.mxu0 0
      %1773 = vmatprep.subr.bf16.mxu0 0
      %1774 = vmatpush1.bf16.msra.mxu0 0
      %1775 = vmatprep.mubr.bf16.mxu0 0
      %1776 = vmatmul.mubr.bf16.gmra.mrb[0].mxu0 %v1351
      %v1777 = vpop.f32.mrb[0].mxu0
      %v1778 = vadd.f32 0.0, %v1777
      %v1779 = vpop.f32.mrb[0].mxu0
      %v1780 = vadd.f32 0.0, %v1779
      %v1781 = vpop.f32.mrb[0].mxu0
      %v1782 = vadd.f32 0.0, %v1781
      %v1783 = vpop.f32.mrb[0].mxu0
      %v1784 = vadd.f32 0.0, %v1783
      %1785 = vmatprep.mubr.bf16.mxu0 0
      %1786 = vmatmul.mubr.bf16.gmra.mrb[0].mxu0 %v1352
      %v1787 = vpop.f32.mrb[0].mxu0
      %v1788 = vadd.f32 0.0, %v1787
      %v1789 = vpop.f32.mrb[0].mxu0
      %v1790 = vadd.f32 0.0, %v1789
      %v1791 = vpop.f32.mrb[0].mxu0
      %v1792 = vadd.f32 0.0, %v1791
      %v1793 = vpop.f32.mrb[0].mxu0
      %v1794 = vadd.f32 0.0, %v1793
      %1795 = vmatprep.mubr.bf16.mxu0 0
      %1796 = vmatmul.mubr.bf16.gmra.mrb[0].mxu0 %v1353
      %v1797 = vpop.f32.mrb[0].mxu0
      %v1798 = vadd.f32 0.0, %v1797
      %v1799 = vpop.f32.mrb[0].mxu0
      %v1800 = vadd.f32 0.0, %v1799
      %v1801 = vpop.f32.mrb[0].mxu0
      %v1802 = vadd.f32 0.0, %v1801
      %v1803 = vpop.f32.mrb[0].mxu0
      %v1804 = vadd.f32 0.0, %v1803
      %1805 = vmatprep.mubr.bf16.mxu0 0
      %1806 = vmatmul.mubr.bf16.gmra.mrb[0].mxu0 %v1354
      %v1807 = vpop.f32.mrb[0].mxu0
      %v1808 = vadd.f32 0.0, %v1807
      %v1809 = vpop.f32.mrb[0].mxu0
      %v1810 = vadd.f32 0.0, %v1809
      %v1811 = vpop.f32.mrb[0].mxu0
      %v1812 = vadd.f32 0.0, %v1811
      %v1813 = vpop.f32.mrb[0].mxu0
      %v1814 = vadd.f32 0.0, %v1813
      %1815 = vmatprep.mubr.bf16.mxu0 0
      %1816 = vmatmul.mubr.bf16.gmra.mrb[0].mxu0 %v1355
      %v1817 = vpop.f32.mrb[0].mxu0
      %v1818 = vadd.f32 0.0, %v1817
      %v1819 = vpop.f32.mrb[0].mxu0
      %v1820 = vadd.f32 0.0, %v1819
      %v1821 = vpop.f32.mrb[0].mxu0
      %v1822 = vadd.f32 0.0, %v1821
      %v1823 = vpop.f32.mrb[0].mxu0
      %v1824 = vadd.f32 0.0, %v1823
      %1825 = vmatprep.mubr.bf16.mxu0 0
      %1826 = vmatmul.mubr.bf16.gmra.mrb[0].mxu0 %v1356
      %v1827 = vpop.f32.mrb[0].mxu0
      %v1828 = vadd.f32 0.0, %v1827
      %v1829 = vpop.f32.mrb[0].mxu0
      %v1830 = vadd.f32 0.0, %v1829
      %v1831 = vpop.f32.mrb[0].mxu0
      %v1832 = vadd.f32 0.0, %v1831
      %v1833 = vpop.f32.mrb[0].mxu0
      %v1834 = vadd.f32 0.0, %v1833
      %1835 = vmatprep.mubr.bf16.mxu0 0
      %1836 = vmatmul.mubr.bf16.gmra.mrb[0].mxu0 %v1357
      %v1837 = vpop.f32.mrb[0].mxu0
      %v1838 = vadd.f32 0.0, %v1837
      %v1839 = vpop.f32.mrb[0].mxu0
      %v1840 = vadd.f32 0.0, %v1839
      %v1841 = vpop.f32.mrb[0].mxu0
      %v1842 = vadd.f32 0.0, %v1841
      %v1843 = vpop.f32.mrb[0].mxu0
      %v1844 = vadd.f32 0.0, %v1843
      %1845 = vmatprep.mubr.bf16.mxu0 0
      %1846 = vmatmul.mubr.bf16.gmra.mrb[0].mxu0 %v1358
      %v1847 = vpop.f32.mrb[0].mxu0
      %v1848 = vadd.f32 0.0, %v1847
      %v1849 = vpop.f32.mrb[0].mxu0
      %v1850 = vadd.f32 0.0, %v1849
      %v1851 = vpop.f32.mrb[0].mxu0
      %v1852 = vadd.f32 0.0, %v1851
      %v1853 = vpop.f32.mrb[0].mxu0
      %v1854 = vadd.f32 0.0, %v1853
      %1855 = vdwg.mxu0
      %1856 = vmatprep.subr.bf16.mxu0 %v1618
      %1857 = vmatpush1.bf16.msra.mxu0 %v1617
      %1858 = vmatprep.subr.bf16.mxu0 %v1626
      %1859 = vmatpush1.bf16.msra.mxu0 %v1625
      %1860 = vmatprep.subr.bf16.mxu0 %v1634
      %1861 = vmatpush1.bf16.msra.mxu0 %v1633
      %1862 = vmatprep.subr.bf16.mxu0 %v1642
      %1863 = vmatpush1.bf16.msra.mxu0 %v1641
      %1864 = vmatprep.subr.bf16.mxu0 %v1650
      %1865 = vmatpush1.bf16.msra.mxu0 %v1649
      %1866 = vmatprep.subr.bf16.mxu0 %v1658
      %1867 = vmatpush1.bf16.msra.mxu0 %v1657
      %1868 = vmatprep.subr.bf16.mxu0 %v1666
      %1869 = vmatpush1.bf16.msra.mxu0 %v1665
      %1870 = vmatprep.subr.bf16.mxu0 %v1674
      %1871 = vmatpush1.bf16.msra.mxu0 %v1673
      %1872 = vmatprep.subr.bf16.mxu0 0
      %1873 = vmatpush1.bf16.msra.mxu0 0
      %1874 = vmatprep.subr.bf16.mxu0 0
      %1875 = vmatpush1.bf16.msra.mxu0 0
      %1876 = vmatprep.subr.bf16.mxu0 0
      %1877 = vmatpush1.bf16.msra.mxu0 0
      %1878 = vmatprep.subr.bf16.mxu0 0
      %1879 = vmatpush1.bf16.msra.mxu0 0
      %1880 = vmatprep.subr.bf16.mxu0 0
      %1881 = vmatpush1.bf16.msra.mxu0 0
      %1882 = vmatprep.subr.bf16.mxu0 0
      %1883 = vmatpush1.bf16.msra.mxu0 0
      %1884 = vmatprep.subr.bf16.mxu0 0
      %1885 = vmatpush1.bf16.msra.mxu0 0
      %1886 = vmatprep.subr.bf16.mxu0 0
      %1887 = vmatpush1.bf16.msra.mxu0 0
      %1888 = vmatprep.mubr.bf16.mxu0 0
      %1889 = vmatmul.mubr.bf16.gmra.mrb[0].mxu0 %v1351
      %v1890 = vpop.f32.mrb[0].mxu0
      %v1891 = vadd.f32 0.0, %v1890
      %v1892 = vpop.f32.mrb[0].mxu0
      %v1893 = vadd.f32 0.0, %v1892
      %v1894 = vpop.f32.mrb[0].mxu0
      %v1895 = vadd.f32 0.0, %v1894
      %v1896 = vpop.f32.mrb[0].mxu0
      %v1897 = vadd.f32 0.0, %v1896
      %1898 = vmatprep.mubr.bf16.mxu0 0
      %1899 = vmatmul.mubr.bf16.gmra.mrb[0].mxu0 %v1352
      %v1900 = vpop.f32.mrb[0].mxu0
      %v1901 = vadd.f32 0.0, %v1900
      %v1902 = vpop.f32.mrb[0].mxu0
      %v1903 = vadd.f32 0.0, %v1902
      %v1904 = vpop.f32.mrb[0].mxu0
      %v1905 = vadd.f32 0.0, %v1904
      %v1906 = vpop.f32.mrb[0].mxu0
      %v1907 = vadd.f32 0.0, %v1906
      %1908 = vmatprep.mubr.bf16.mxu0 0
      %1909 = vmatmul.mubr.bf16.gmra.mrb[0].mxu0 %v1353
      %v1910 = vpop.f32.mrb[0].mxu0
      %v1911 = vadd.f32 0.0, %v1910
      %v1912 = vpop.f32.mrb[0].mxu0
      %v1913 = vadd.f32 0.0, %v1912
      %v1914 = vpop.f32.mrb[0].mxu0
      %v1915 = vadd.f32 0.0, %v1914
      %v1916 = vpop.f32.mrb[0].mxu0
      %v1917 = vadd.f32 0.0, %v1916
      %1918 = vmatprep.mubr.bf16.mxu0 0
      %1919 = vmatmul.mubr.bf16.gmra.mrb[0].mxu0 %v1354
      %v1920 = vpop.f32.mrb[0].mxu0
      %v1921 = vadd.f32 0.0, %v1920
      %v1922 = vpop.f32.mrb[0].mxu0
      %v1923 = vadd.f32 0.0, %v1922
      %v1924 = vpop.f32.mrb[0].mxu0
      %v1925 = vadd.f32 0.0, %v1924
      %v1926 = vpop.f32.mrb[0].mxu0
      %v1927 = vadd.f32 0.0, %v1926
      %1928 = vmatprep.mubr.bf16.mxu0 0
      %1929 = vmatmul.mubr.bf16.gmra.mrb[0].mxu0 %v1355
      %v1930 = vpop.f32.mrb[0].mxu0
      %v1931 = vadd.f32 0.0, %v1930
      %v1932 = vpop.f32.mrb[0].mxu0
      %v1933 = vadd.f32 0.0, %v1932
      %v1934 = vpop.f32.mrb[0].mxu0
      %v1935 = vadd.f32 0.0, %v1934
      %v1936 = vpop.f32.mrb[0].mxu0
      %v1937 = vadd.f32 0.0, %v1936
      %1938 = vmatprep.mubr.bf16.mxu0 0
      %1939 = vmatmul.mubr.bf16.gmra.mrb[0].mxu0 %v1356
      %v1940 = vpop.f32.mrb[0].mxu0
      %v1941 = vadd.f32 0.0, %v1940
      %v1942 = vpop.f32.mrb[0].mxu0
      %v1943 = vadd.f32 0.0, %v1942
      %v1944 = vpop.f32.mrb[0].mxu0
      %v1945 = vadd.f32 0.0, %v1944
      %v1946 = vpop.f32.mrb[0].mxu0
      %v1947 = vadd.f32 0.0, %v1946
      %1948 = vmatprep.mubr.bf16.mxu0 0
      %1949 = vmatmul.mubr.bf16.gmra.mrb[0].mxu0 %v1357
      %v1950 = vpop.f32.mrb[0].mxu0
      %v1951 = vadd.f32 0.0, %v1950
      %v1952 = vpop.f32.mrb[0].mxu0
      %v1953 = vadd.f32 0.0, %v1952
      %v1954 = vpop.f32.mrb[0].mxu0
      %v1955 = vadd.f32 0.0, %v1954
      %v1956 = vpop.f32.mrb[0].mxu0
      %v1957 = vadd.f32 0.0, %v1956
      %1958 = vmatprep.mubr.bf16.mxu0 0
      %1959 = vmatmul.mubr.bf16.gmra.mrb[0].mxu0 %v1358
      %v1960 = vpop.f32.mrb[0].mxu0
      %v1961 = vadd.f32 0.0, %v1960
      %v1962 = vpop.f32.mrb[0].mxu0
      %v1963 = vadd.f32 0.0, %v1962
      %v1964 = vpop.f32.mrb[0].mxu0
      %v1965 = vadd.f32 0.0, %v1964
      %v1966 = vpop.f32.mrb[0].mxu0
      %v1967 = vadd.f32 0.0, %v1966
      %1968 = vdwg.mxu0
      %1969 = vmatprep.subr.bf16.mxu0 %v1620
      %1970 = vmatpush1.bf16.msra.mxu0 %v1619
      %1971 = vmatprep.subr.bf16.mxu0 %v1628
      %1972 = vmatpush1.bf16.msra.mxu0 %v1627
      %1973 = vmatprep.subr.bf16.mxu0 %v1636
      %1974 = vmatpush1.bf16.msra.mxu0 %v1635
      %1975 = vmatprep.subr.bf16.mxu0 %v1644
      %1976 = vmatpush1.bf16.msra.mxu0 %v1643
      %1977 = vmatprep.subr.bf16.mxu0 %v1652
      %1978 = vmatpush1.bf16.msra.mxu0 %v1651
      %1979 = vmatprep.subr.bf16.mxu0 %v1660
      %1980 = vmatpush1.bf16.msra.mxu0 %v1659
      %1981 = vmatprep.subr.bf16.mxu0 %v1668
      %1982 = vmatpush1.bf16.msra.mxu0 %v1667
      %1983 = vmatprep.subr.bf16.mxu0 %v1676
      %1984 = vmatpush1.bf16.msra.mxu0 %v1675
      %1985 = vmatprep.subr.bf16.mxu0 0
      %1986 = vmatpush1.bf16.msra.mxu0 0
      %1987 = vmatprep.subr.bf16.mxu0 0
      %1988 = vmatpush1.bf16.msra.mxu0 0
      %1989 = vmatprep.subr.bf16.mxu0 0
      %1990 = vmatpush1.bf16.msra.mxu0 0
      %1991 = vmatprep.subr.bf16.mxu0 0
      %1992 = vmatpush1.bf16.msra.mxu0 0
      %1993 = vmatprep.subr.bf16.mxu0 0
      %1994 = vmatpush1.bf16.msra.mxu0 0
      %1995 = vmatprep.subr.bf16.mxu0 0
      %1996 = vmatpush1.bf16.msra.mxu0 0
      %1997 = vmatprep.subr.bf16.mxu0 0
      %1998 = vmatpush1.bf16.msra.mxu0 0
      %1999 = vmatprep.subr.bf16.mxu0 0
      %2000 = vmatpush1.bf16.msra.mxu0 0
      %2001 = vmatprep.mubr.bf16.mxu0 0
      %2002 = vmatmul.mubr.bf16.gmra.mrb[0].mxu0 %v1351
      %v2003 = vpop.f32.mrb[0].mxu0
      %v2004 = vadd.f32 0.0, %v2003
      %v2005 = vpop.f32.mrb[0].mxu0
      %v2006 = vadd.f32 0.0, %v2005
      %v2007 = vpop.f32.mrb[0].mxu0
      %v2008 = vadd.f32 0.0, %v2007
      %v2009 = vpop.f32.mrb[0].mxu0
      %v2010 = vadd.f32 0.0, %v2009
      %2011 = vmatprep.mubr.bf16.mxu0 0
      %2012 = vmatmul.mubr.bf16.gmra.mrb[0].mxu0 %v1352
      %v2013 = vpop.f32.mrb[0].mxu0
      %v2014 = vadd.f32 0.0, %v2013
      %v2015 = vpop.f32.mrb[0].mxu0
      %v2016 = vadd.f32 0.0, %v2015
      %v2017 = vpop.f32.mrb[0].mxu0
      %v2018 = vadd.f32 0.0, %v2017
      %v2019 = vpop.f32.mrb[0].mxu0
      %v2020 = vadd.f32 0.0, %v2019
      %2021 = vmatprep.mubr.bf16.mxu0 0
      %2022 = vmatmul.mubr.bf16.gmra.mrb[0].mxu0 %v1353
      %v2023 = vpop.f32.mrb[0].mxu0
      %v2024 = vadd.f32 0.0, %v2023
      %v2025 = vpop.f32.mrb[0].mxu0
      %v2026 = vadd.f32 0.0, %v2025
      %v2027 = vpop.f32.mrb[0].mxu0
      %v2028 = vadd.f32 0.0, %v2027
      %v2029 = vpop.f32.mrb[0].mxu0
      %v2030 = vadd.f32 0.0, %v2029
      %2031 = vmatprep.mubr.bf16.mxu0 0
      %2032 = vmatmul.mubr.bf16.gmra.mrb[0].mxu0 %v1354
      %v2033 = vpop.f32.mrb[0].mxu0
      %v2034 = vadd.f32 0.0, %v2033
      %v2035 = vpop.f32.mrb[0].mxu0
      %v2036 = vadd.f32 0.0, %v2035
      %v2037 = vpop.f32.mrb[0].mxu0
      %v2038 = vadd.f32 0.0, %v2037
      %v2039 = vpop.f32.mrb[0].mxu0
      %v2040 = vadd.f32 0.0, %v2039
      %2041 = vmatprep.mubr.bf16.mxu0 0
      %2042 = vmatmul.mubr.bf16.gmra.mrb[0].mxu0 %v1355
      %v2043 = vpop.f32.mrb[0].mxu0
      %v2044 = vadd.f32 0.0, %v2043
      %v2045 = vpop.f32.mrb[0].mxu0
      %v2046 = vadd.f32 0.0, %v2045
      %v2047 = vpop.f32.mrb[0].mxu0
      %v2048 = vadd.f32 0.0, %v2047
      %v2049 = vpop.f32.mrb[0].mxu0
      %v2050 = vadd.f32 0.0, %v2049
      %2051 = vmatprep.mubr.bf16.mxu0 0
      %2052 = vmatmul.mubr.bf16.gmra.mrb[0].mxu0 %v1356
      %v2053 = vpop.f32.mrb[0].mxu0
      %v2054 = vadd.f32 0.0, %v2053
      %v2055 = vpop.f32.mrb[0].mxu0
      %v2056 = vadd.f32 0.0, %v2055
      %v2057 = vpop.f32.mrb[0].mxu0
      %v2058 = vadd.f32 0.0, %v2057
      %v2059 = vpop.f32.mrb[0].mxu0
      %v2060 = vadd.f32 0.0, %v2059
      %2061 = vmatprep.mubr.bf16.mxu0 0
      %2062 = vmatmul.mubr.bf16.gmra.mrb[0].mxu0 %v1357
      %v2063 = vpop.f32.mrb[0].mxu0
      %v2064 = vadd.f32 0.0, %v2063
      %v2065 = vpop.f32.mrb[0].mxu0
      %v2066 = vadd.f32 0.0, %v2065
      %v2067 = vpop.f32.mrb[0].mxu0
      %v2068 = vadd.f32 0.0, %v2067
      %v2069 = vpop.f32.mrb[0].mxu0
      %v2070 = vadd.f32 0.0, %v2069
      %2071 = vmatprep.mubr.bf16.mxu0 0
      %2072 = vmatmul.mubr.bf16.gmra.mrb[0].mxu0 %v1358
      %v2073 = vpop.f32.mrb[0].mxu0
      %v2074 = vadd.f32 0.0, %v2073
      %v2075 = vpop.f32.mrb[0].mxu0
      %v2076 = vadd.f32 0.0, %v2075
      %v2077 = vpop.f32.mrb[0].mxu0
      %v2078 = vadd.f32 0.0, %v2077
      %v2079 = vpop.f32.mrb[0].mxu0
      %v2080 = vadd.f32 0.0, %v2079
      %2081 = vdwg.mxu0
      %2082 = vmatprep.subr.bf16.mxu0 %v1622
      %2083 = vmatpush1.bf16.msra.mxu0 %v1621
      %2084 = vmatprep.subr.bf16.mxu0 %v1630
      %2085 = vmatpush1.bf16.msra.mxu0 %v1629
      %2086 = vmatprep.subr.bf16.mxu0 %v1638
      %2087 = vmatpush1.bf16.msra.mxu0 %v1637
      %2088 = vmatprep.subr.bf16.mxu0 %v1646
      %2089 = vmatpush1.bf16.msra.mxu0 %v1645
      %2090 = vmatprep.subr.bf16.mxu0 %v1654
      %2091 = vmatpush1.bf16.msra.mxu0 %v1653
      %2092 = vmatprep.subr.bf16.mxu0 %v1662
      %2093 = vmatpush1.bf16.msra.mxu0 %v1661
      %2094 = vmatprep.subr.bf16.mxu0 %v1670
      %2095 = vmatpush1.bf16.msra.mxu0 %v1669
      %2096 = vmatprep.subr.bf16.mxu0 %v1678
      %2097 = vmatpush1.bf16.msra.mxu0 %v1677
      %2098 = vmatprep.subr.bf16.mxu0 0
      %2099 = vmatpush1.bf16.msra.mxu0 0
      %2100 = vmatprep.subr.bf16.mxu0 0
      %2101 = vmatpush1.bf16.msra.mxu0 0
      %2102 = vmatprep.subr.bf16.mxu0 0
      %2103 = vmatpush1.bf16.msra.mxu0 0
      %2104 = vmatprep.subr.bf16.mxu0 0
      %2105 = vmatpush1.bf16.msra.mxu0 0
      %2106 = vmatprep.subr.bf16.mxu0 0
      %2107 = vmatpush1.bf16.msra.mxu0 0
      %2108 = vmatprep.subr.bf16.mxu0 0
      %2109 = vmatpush1.bf16.msra.mxu0 0
      %2110 = vmatprep.subr.bf16.mxu0 0
      %2111 = vmatpush1.bf16.msra.mxu0 0
      %2112 = vmatprep.subr.bf16.mxu0 0
      %2113 = vmatpush1.bf16.msra.mxu0 0
      %2114 = vmatprep.mubr.bf16.mxu0 0
      %2115 = vmatmul.mubr.bf16.gmra.mrb[0].mxu0 %v1351
      %v2116 = vpop.f32.mrb[0].mxu0
      %v2117 = vadd.f32 0.0, %v2116
      %v2118 = vpop.f32.mrb[0].mxu0
      %v2119 = vadd.f32 0.0, %v2118
      %v2120 = vpop.f32.mrb[0].mxu0
      %v2121 = vadd.f32 0.0, %v2120
      %v2122 = vpop.f32.mrb[0].mxu0
      %v2123 = vadd.f32 0.0, %v2122
      %2124 = vmatprep.mubr.bf16.mxu0 0
      %2125 = vmatmul.mubr.bf16.gmra.mrb[0].mxu0 %v1352
      %v2126 = vpop.f32.mrb[0].mxu0
      %v2127 = vadd.f32 0.0, %v2126
      %v2128 = vpop.f32.mrb[0].mxu0
      %v2129 = vadd.f32 0.0, %v2128
      %v2130 = vpop.f32.mrb[0].mxu0
      %v2131 = vadd.f32 0.0, %v2130
      %v2132 = vpop.f32.mrb[0].mxu0
      %v2133 = vadd.f32 0.0, %v2132
      %2134 = vmatprep.mubr.bf16.mxu0 0
      %2135 = vmatmul.mubr.bf16.gmra.mrb[0].mxu0 %v1353
      %v2136 = vpop.f32.mrb[0].mxu0
      %v2137 = vadd.f32 0.0, %v2136
      %v2138 = vpop.f32.mrb[0].mxu0
      %v2139 = vadd.f32 0.0, %v2138
      %v2140 = vpop.f32.mrb[0].mxu0
      %v2141 = vadd.f32 0.0, %v2140
      %v2142 = vpop.f32.mrb[0].mxu0
      %v2143 = vadd.f32 0.0, %v2142
      %2144 = vmatprep.mubr.bf16.mxu0 0
      %2145 = vmatmul.mubr.bf16.gmra.mrb[0].mxu0 %v1354
      %v2146 = vpop.f32.mrb[0].mxu0
      %v2147 = vadd.f32 0.0, %v2146
      %v2148 = vpop.f32.mrb[0].mxu0
      %v2149 = vadd.f32 0.0, %v2148
      %v2150 = vpop.f32.mrb[0].mxu0
      %v2151 = vadd.f32 0.0, %v2150
      %v2152 = vpop.f32.mrb[0].mxu0
      %v2153 = vadd.f32 0.0, %v2152
      %2154 = vmatprep.mubr.bf16.mxu0 0
      %2155 = vmatmul.mubr.bf16.gmra.mrb[0].mxu0 %v1355
      %v2156 = vpop.f32.mrb[0].mxu0
      %v2157 = vadd.f32 0.0, %v2156
      %v2158 = vpop.f32.mrb[0].mxu0
      %v2159 = vadd.f32 0.0, %v2158
      %v2160 = vpop.f32.mrb[0].mxu0
      %v2161 = vadd.f32 0.0, %v2160
      %v2162 = vpop.f32.mrb[0].mxu0
      %v2163 = vadd.f32 0.0, %v2162
      %2164 = vmatprep.mubr.bf16.mxu0 0
      %2165 = vmatmul.mubr.bf16.gmra.mrb[0].mxu0 %v1356
      %v2166 = vpop.f32.mrb[0].mxu0
      %v2167 = vadd.f32 0.0, %v2166
      %v2168 = vpop.f32.mrb[0].mxu0
      %v2169 = vadd.f32 0.0, %v2168
      %v2170 = vpop.f32.mrb[0].mxu0
      %v2171 = vadd.f32 0.0, %v2170
      %v2172 = vpop.f32.mrb[0].mxu0
      %v2173 = vadd.f32 0.0, %v2172
      %2174 = vmatprep.mubr.bf16.mxu0 0
      %2175 = vmatmul.mubr.bf16.gmra.mrb[0].mxu0 %v1357
      %v2176 = vpop.f32.mrb[0].mxu0
      %v2177 = vadd.f32 0.0, %v2176
      %v2178 = vpop.f32.mrb[0].mxu0
      %v2179 = vadd.f32 0.0, %v2178
      %v2180 = vpop.f32.mrb[0].mxu0
      %v2181 = vadd.f32 0.0, %v2180
      %v2182 = vpop.f32.mrb[0].mxu0
      %v2183 = vadd.f32 0.0, %v2182
      %2184 = vmatprep.mubr.bf16.mxu0 0
      %2185 = vmatmul.mubr.bf16.gmra.mrb[0].mxu0 %v1358
      %v2186 = vpop.f32.mrb[0].mxu0
      %v2187 = vadd.f32 0.0, %v2186
      %v2188 = vpop.f32.mrb[0].mxu0
      %v2189 = vadd.f32 0.0, %v2188
      %v2190 = vpop.f32.mrb[0].mxu0
      %v2191 = vadd.f32 0.0, %v2190
      %v2192 = vpop.f32.mrb[0].mxu0
      %v2193 = vadd.f32 0.0, %v2192
      %2194 = vdwg.mxu0
      %v2195 = vmax.f32 %v1778, %v1782
      %v2196 = vmax.f32 %v2195, %v1788
      %v2197 = vmax.f32 %v2196, %v1792
      %v2198 = vmax.f32 %v2197, %v1798
      %v2199 = vmax.f32 %v2198, %v1802
      %v2200 = vmax.f32 %v2199, %v1808
      %v2201 = vmax.f32 %v2200, %v1812
      %v2202 = vmax.f32 %v2201, %v1818
      %v2203 = vmax.f32 %v2202, %v1822
      %v2204 = vmax.f32 %v2203, %v1828
      %v2205 = vmax.f32 %v2204, %v1832
      %v2206 = vmax.f32 %v2205, %v1838
      %v2207 = vmax.f32 %v2206, %v1842
      %v2208 = vmax.f32 %v2207, %v1848
      %v2209 = vmax.f32 %v2208, %v1852
      %v2210 = vrot.slane %v2209, 4
      %v2211 = vmax.f32 %v2209, %v2210
      %v2212 = vrot.slane %v2211, 2
      %v2213 = vmax.f32 %v2211, %v2212
      %v2214 = vrot.slane %v2213, 1
      %v2215 = vmax.f32 %v2213, %v2214
      %v2216 = vmax.f32 %v1780, %v1784
      %v2217 = vmax.f32 %v2216, %v1790
      %v2218 = vmax.f32 %v2217, %v1794
      %v2219 = vmax.f32 %v2218, %v1800
      %v2220 = vmax.f32 %v2219, %v1804
      %v2221 = vmax.f32 %v2220, %v1810
      %v2222 = vmax.f32 %v2221, %v1814
      %v2223 = vmax.f32 %v2222, %v1820
      %v2224 = vmax.f32 %v2223, %v1824
      %v2225 = vmax.f32 %v2224, %v1830
      %v2226 = vmax.f32 %v2225, %v1834
      %v2227 = vmax.f32 %v2226, %v1840
      %v2228 = vmax.f32 %v2227, %v1844
      %v2229 = vmax.f32 %v2228, %v1850
      %v2230 = vmax.f32 %v2229, %v1854
      %v2231 = vrot.slane %v2230, 4
      %v2232 = vmax.f32 %v2230, %v2231
      %v2233 = vrot.slane %v2232, 2
      %v2234 = vmax.f32 %v2232, %v2233
      %v2235 = vrot.slane %v2234, 1
      %v2236 = vmax.f32 %v2234, %v2235
      %v2237 = vmax.f32 %v1891, %v1895
      %v2238 = vmax.f32 %v2237, %v1901
      %v2239 = vmax.f32 %v2238, %v1905
      %v2240 = vmax.f32 %v2239, %v1911
      %v2241 = vmax.f32 %v2240, %v1915
      %v2242 = vmax.f32 %v2241, %v1921
      %v2243 = vmax.f32 %v2242, %v1925
      %v2244 = vmax.f32 %v2243, %v1931
      %v2245 = vmax.f32 %v2244, %v1935
      %v2246 = vmax.f32 %v2245, %v1941
      %v2247 = vmax.f32 %v2246, %v1945
      %v2248 = vmax.f32 %v2247, %v1951
      %v2249 = vmax.f32 %v2248, %v1955
      %v2250 = vmax.f32 %v2249, %v1961
      %v2251 = vmax.f32 %v2250, %v1965
      %v2252 = vrot.slane %v2251, 4
      %v2253 = vmax.f32 %v2251, %v2252
      %v2254 = vrot.slane %v2253, 2
      %v2255 = vmax.f32 %v2253, %v2254
      %v2256 = vrot.slane %v2255, 1
      %v2257 = vmax.f32 %v2255, %v2256
      %v2258 = vmax.f32 %v1893, %v1897
      %v2259 = vmax.f32 %v2258, %v1903
      %v2260 = vmax.f32 %v2259, %v1907
      %v2261 = vmax.f32 %v2260, %v1913
      %v2262 = vmax.f32 %v2261, %v1917
      %v2263 = vmax.f32 %v2262, %v1923
      %v2264 = vmax.f32 %v2263, %v1927
      %v2265 = vmax.f32 %v2264, %v1933
      %v2266 = vmax.f32 %v2265, %v1937
      %v2267 = vmax.f32 %v2266, %v1943
      %v2268 = vmax.f32 %v2267, %v1947
      %v2269 = vmax.f32 %v2268, %v1953
      %v2270 = vmax.f32 %v2269, %v1957
      %v2271 = vmax.f32 %v2270, %v1963
      %v2272 = vmax.f32 %v2271, %v1967
      %v2273 = vrot.slane %v2272, 4
      %v2274 = vmax.f32 %v2272, %v2273
      %v2275 = vrot.slane %v2274, 2
      %v2276 = vmax.f32 %v2274, %v2275
      %v2277 = vrot.slane %v2276, 1
      %v2278 = vmax.f32 %v2276, %v2277
      %v2279 = vmax.f32 %v2004, %v2008
      %v2280 = vmax.f32 %v2279, %v2014
      %v2281 = vmax.f32 %v2280, %v2018
      %v2282 = vmax.f32 %v2281, %v2024
      %v2283 = vmax.f32 %v2282, %v2028
      %v2284 = vmax.f32 %v2283, %v2034
      %v2285 = vmax.f32 %v2284, %v2038
      %v2286 = vmax.f32 %v2285, %v2044
      %v2287 = vmax.f32 %v2286, %v2048
      %v2288 = vmax.f32 %v2287, %v2054
      %v2289 = vmax.f32 %v2288, %v2058
      %v2290 = vmax.f32 %v2289, %v2064
      %v2291 = vmax.f32 %v2290, %v2068
      %v2292 = vmax.f32 %v2291, %v2074
      %v2293 = vmax.f32 %v2292, %v2078
      %v2294 = vrot.slane %v2293, 4
      %v2295 = vmax.f32 %v2293, %v2294
      %v2296 = vrot.slane %v2295, 2
      %v2297 = vmax.f32 %v2295, %v2296
      %v2298 = vrot.slane %v2297, 1
      %v2299 = vmax.f32 %v2297, %v2298
      %v2300 = vmax.f32 %v2006, %v2010
      %v2301 = vmax.f32 %v2300, %v2016
      %v2302 = vmax.f32 %v2301, %v2020
      %v2303 = vmax.f32 %v2302, %v2026
      %v2304 = vmax.f32 %v2303, %v2030
      %v2305 = vmax.f32 %v2304, %v2036
      %v2306 = vmax.f32 %v2305, %v2040
      %v2307 = vmax.f32 %v2306, %v2046
      %v2308 = vmax.f32 %v2307, %v2050
      %v2309 = vmax.f32 %v2308, %v2056
      %v2310 = vmax.f32 %v2309, %v2060
      %v2311 = vmax.f32 %v2310, %v2066
      %v2312 = vmax.f32 %v2311, %v2070
      %v2313 = vmax.f32 %v2312, %v2076
      %v2314 = vmax.f32 %v2313, %v2080
      %v2315 = vrot.slane %v2314, 4
      %v2316 = vmax.f32 %v2314, %v2315
      %v2317 = vrot.slane %v2316, 2
      %v2318 = vmax.f32 %v2316, %v2317
      %v2319 = vrot.slane %v2318, 1
      %v2320 = vmax.f32 %v2318, %v2319
      %v2321 = vmax.f32 %v2117, %v2121
      %v2322 = vmax.f32 %v2321, %v2127
      %v2323 = vmax.f32 %v2322, %v2131
      %v2324 = vmax.f32 %v2323, %v2137
      %v2325 = vmax.f32 %v2324, %v2141
      %v2326 = vmax.f32 %v2325, %v2147
      %v2327 = vmax.f32 %v2326, %v2151
      %v2328 = vmax.f32 %v2327, %v2157
      %v2329 = vmax.f32 %v2328, %v2161
      %v2330 = vmax.f32 %v2329, %v2167
      %v2331 = vmax.f32 %v2330, %v2171
      %v2332 = vmax.f32 %v2331, %v2177
      %v2333 = vmax.f32 %v2332, %v2181
      %v2334 = vmax.f32 %v2333, %v2187
      %v2335 = vmax.f32 %v2334, %v2191
      %v2336 = vrot.slane %v2335, 4
      %v2337 = vmax.f32 %v2335, %v2336
      %v2338 = vrot.slane %v2337, 2
      %v2339 = vmax.f32 %v2337, %v2338
      %v2340 = vrot.slane %v2339, 1
      %v2341 = vmax.f32 %v2339, %v2340
      %v2342 = vmax.f32 %v2119, %v2123
      %v2343 = vmax.f32 %v2342, %v2129
      %v2344 = vmax.f32 %v2343, %v2133
      %v2345 = vmax.f32 %v2344, %v2139
      %v2346 = vmax.f32 %v2345, %v2143
      %v2347 = vmax.f32 %v2346, %v2149
      %v2348 = vmax.f32 %v2347, %v2153
      %v2349 = vmax.f32 %v2348, %v2159
      %v2350 = vmax.f32 %v2349, %v2163
      %v2351 = vmax.f32 %v2350, %v2169
      %v2352 = vmax.f32 %v2351, %v2173
      %v2353 = vmax.f32 %v2352, %v2179
      %v2354 = vmax.f32 %v2353, %v2183
      %v2355 = vmax.f32 %v2354, %v2189
      %v2356 = vmax.f32 %v2355, %v2193
      %v2357 = vrot.slane %v2356, 4
      %v2358 = vmax.f32 %v2356, %v2357
      %v2359 = vrot.slane %v2358, 2
      %v2360 = vmax.f32 %v2358, %v2359
      %v2361 = vrot.slane %v2360, 1
      %v2362 = vmax.f32 %v2360, %v2361
      %p2363 = scmp.eq.s32.totalorder %s31, 0
      // Predicated region
      $region73: #{pn_forward.2} parent=71 // pred_check
        %p2364 = pneg %p2363
      $region74: #{pn_forward.2} parent=71 // pred_check_branch
        %2366 = sbr.rel (%p2364) target = $region76
      $region75: #{pn_forward.2} parent=71 // pred_region
        %v2375 = vcombine.low %v2215, %v2236
        %v2376 = vcombine.low %v2257, %v2278
        %v2377 = vcombine.low %v2299, %v2320
        %v2378 = vcombine.low %v2341, %v2362
        %v2380 = vunpack.c.l.s4 1966171168
        %v2381 = vunpack.c.0.s8 %v2380
        %v2382 = vlaneseq
        %v2383 = vshrl.u32 %v2382, 7
        %v2384 = vsub.s32 %v2381, %v2383
        %v2385 = vrot.slane %v2375, %v2384
        %v2387 = vunpack.c.l.s4 1966171168
        %v2388 = vunpack.c.0.s8 %v2387
        %v2389 = vlaneseq
        %v2390 = vshrl.u32 %v2389, 7
        %v2391 = vsub.s32 %v2388, %v2390
        %v2392 = vrot.slane %v2376, %v2391
        %v2394 = vunpack.c.l.s4 1966171168
        %v2395 = vunpack.c.0.s8 %v2394
        %v2396 = vlaneseq
        %v2397 = vshrl.u32 %v2396, 7
        %v2398 = vsub.s32 %v2395, %v2397
        %v2399 = vrot.slane %v2377, %v2398
        %v2401 = vunpack.c.l.s4 1966171168
        %v2402 = vunpack.c.0.s8 %v2401
        %v2403 = vlaneseq
        %v2404 = vshrl.u32 %v2403, 7
        %v2405 = vsub.s32 %v2402, %v2404
        %v2406 = vrot.slane %v2378, %v2405
        %v2407 = vcombine.low %v2385, %v2392
        %v2408 = vcombine.low %v2399, %v2406
        %v2410 = vunpack.c.l.s4 1966171168
        %v2411 = vunpack.c.0.s8 %v2410
        %v2412 = vlaneseq
        %v2413 = vshrl.u32 %v2412, 7
        %v2414 = vsub.s32 %v2411, %v2413
        %v2415 = vrot.slane %v2407, %v2414
        %v2417 = vunpack.c.l.s4 1966171168
        %v2418 = vunpack.c.0.s8 %v2417
        %v2419 = vlaneseq
        %v2420 = vshrl.u32 %v2419, 7
        %v2421 = vsub.s32 %v2418, %v2420
        %v2422 = vrot.slane %v2408, %v2421
        %v2423 = vcombine.low %v2415, %v2422
        %2425 = vst [vmem:[#allocation2] sm:$0xff] %v2423
      $region76: #{pn_forward.2} parent=71 // pred_fallthru
        _
      %p2426 = scmp.gt.s32.totalorder %s31, 0
      // Predicated region
      $region77: #{pn_forward.2} parent=71 // pred_check
        %p2427 = pneg %p2426
      $region78: #{pn_forward.2} parent=71 // pred_check_branch
        %2429 = sbr.rel (%p2427) target = $region80
      $region79: #{pn_forward.2} parent=71 // pred_region
        %v2430 = vld [vmem:[#allocation2] sm:$0xff]
        %v2439 = vcombine.low %v2215, %v2236
        %v2440 = vcombine.low %v2257, %v2278
        %v2441 = vcombine.low %v2299, %v2320
        %v2442 = vcombine.low %v2341, %v2362
        %v2444 = vunpack.c.l.s4 1966171168
        %v2445 = vunpack.c.0.s8 %v2444
        %v2446 = vlaneseq
        %v2447 = vshrl.u32 %v2446, 7
        %v2448 = vsub.s32 %v2445, %v2447
        %v2449 = vrot.slane %v2439, %v2448
        %v2451 = vunpack.c.l.s4 1966171168
        %v2452 = vunpack.c.0.s8 %v2451
        %v2453 = vlaneseq
        %v2454 = vshrl.u32 %v2453, 7
        %v2455 = vsub.s32 %v2452, %v2454
        %v2456 = vrot.slane %v2440, %v2455
        %v2458 = vunpack.c.l.s4 1966171168
        %v2459 = vunpack.c.0.s8 %v2458
        %v2460 = vlaneseq
        %v2461 = vshrl.u32 %v2460, 7
        %v2462 = vsub.s32 %v2459, %v2461
        %v2463 = vrot.slane %v2441, %v2462
        %v2465 = vunpack.c.l.s4 1966171168
        %v2466 = vunpack.c.0.s8 %v2465
        %v2467 = vlaneseq
        %v2468 = vshrl.u32 %v2467, 7
        %v2469 = vsub.s32 %v2466, %v2468
        %v2470 = vrot.slane %v2442, %v2469
        %v2471 = vcombine.low %v2449, %v2456
        %v2472 = vcombine.low %v2463, %v2470
        %v2474 = vunpack.c.l.s4 1966171168
        %v2475 = vunpack.c.0.s8 %v2474
        %v2476 = vlaneseq
        %v2477 = vshrl.u32 %v2476, 7
        %v2478 = vsub.s32 %v2475, %v2477
        %v2479 = vrot.slane %v2471, %v2478
        %v2481 = vunpack.c.l.s4 1966171168
        %v2482 = vunpack.c.0.s8 %v2481
        %v2483 = vlaneseq
        %v2484 = vshrl.u32 %v2483, 7
        %v2485 = vsub.s32 %v2482, %v2484
        %v2486 = vrot.slane %v2472, %v2485
        %v2487 = vcombine.low %v2479, %v2486
        %v2489 = vmax.f32 %v2430, %v2487
        %2490 = vst [vmem:[#allocation2] sm:$0xff] %v2489
      $region80: #{pn_forward.2} parent=71 // pred_fallthru
        _
      // Predicated region
      $region81: #{pn_forward.2} parent=71 // pred_check
        %p2491 = pneg %p2363
      $region82: #{pn_forward.2} parent=71 // pred_check_branch
        %2493 = sbr.rel (%p2491) target = $region84
      $region83: #{pn_forward.2} parent=71 // pred_region
        %v2494 = vld [vmem:[#allocation2] sm:$0xff]
        %v2495 = vld [vmem:[%s10] sm:$0xff]
        %v2496 = vadd.f32 %v2494, %v2495
        %v2498 = vlaneseq
        %v2499 = vshrl.u32 %v2498, 7
        %v2500 = vsub.s32 0, %v2499
        %v2501 = vrot.slane %v2496, %v2500
        %v2502 = vlaneseq
        %v2503 = vshrl.u32 %v2502, 7
        %v2504 = vsub.s32 1, %v2503
        %v2505 = vrot.slane %v2496, %v2504
        %v2506 = vlaneseq
        %v2507 = vshrl.u32 %v2506, 7
        %v2508 = vsub.s32 2, %v2507
        %v2509 = vrot.slane %v2496, %v2508
        %v2510 = vlaneseq
        %v2511 = vshrl.u32 %v2510, 7
        %v2512 = vsub.s32 3, %v2511
        %v2513 = vrot.slane %v2496, %v2512
        %v2514 = vlaneseq
        %v2515 = vshrl.u32 %v2514, 7
        %v2516 = vsub.s32 4, %v2515
        %v2517 = vrot.slane %v2496, %v2516
        %v2518 = vlaneseq
        %v2519 = vshrl.u32 %v2518, 7
        %v2520 = vsub.s32 5, %v2519
        %v2521 = vrot.slane %v2496, %v2520
        %v2522 = vlaneseq
        %v2523 = vshrl.u32 %v2522, 7
        %v2524 = vsub.s32 6, %v2523
        %v2525 = vrot.slane %v2496, %v2524
        %v2526 = vlaneseq
        %v2527 = vshrl.u32 %v2526, 7
        %v2528 = vsub.s32 7, %v2527
        %v2529 = vrot.slane %v2496, %v2528
        %v2538 = vpack.c.bf16 %v2501, %v2501
        %v2539 = vpack.c.bf16 %v2505, %v2505
        %v2540 = vpack.c.bf16 %v2509, %v2509
        %v2541 = vpack.c.bf16 %v2513, %v2513
        %v2542 = vpack.c.bf16 %v2517, %v2517
        %v2543 = vpack.c.bf16 %v2521, %v2521
        %v2544 = vpack.c.bf16 %v2525, %v2525
        %v2545 = vpack.c.bf16 %v2529, %v2529
        %v2546 = vld [vmem:[%s11] sm:$0xff]
        %v2547 = vld [vmem:[%s11 + $0x8] sm:$0xff]
        %v2548 = vld [vmem:[%s11 + $0x10] sm:$0xff]
        %v2549 = vld [vmem:[%s11 + $0x18] sm:$0xff]
        %v2550 = vld [vmem:[%s11 + $0x20] sm:$0xff]
        %v2551 = vld [vmem:[%s11 + $0x28] sm:$0xff]
        %v2552 = vld [vmem:[%s11 + $0x30] sm:$0xff]
        %v2553 = vld [vmem:[%s11 + $0x38] sm:$0xff]
        %v2554 = vld [vmem:[%s11 + $0x40] sm:$0xff]
        %v2555 = vld [vmem:[%s11 + $0x48] sm:$0xff]
        %v2556 = vld [vmem:[%s11 + $0x50] sm:$0xff]
        %v2557 = vld [vmem:[%s11 + $0x58] sm:$0xff]
        %v2558 = vld [vmem:[%s11 + $0x60] sm:$0xff]
        %v2559 = vld [vmem:[%s11 + $0x68] sm:$0xff]
        %v2560 = vld [vmem:[%s11 + $0x70] sm:$0xff]
        %v2561 = vld [vmem:[%s11 + $0x78] sm:$0xff]
        %v2562 = vld [vmem:[%s11 + $0x80] sm:$0xff]
        %v2563 = vld [vmem:[%s11 + $0x88] sm:$0xff]
        %v2564 = vld [vmem:[%s11 + $0x90] sm:$0xff]
        %v2565 = vld [vmem:[%s11 + $0x98] sm:$0xff]
        %v2566 = vld [vmem:[%s11 + $0xa0] sm:$0xff]
        %v2567 = vld [vmem:[%s11 + $0xa8] sm:$0xff]
        %v2568 = vld [vmem:[%s11 + $0xb0] sm:$0xff]
        %v2569 = vld [vmem:[%s11 + $0xb8] sm:$0xff]
        %v2570 = vld [vmem:[%s11 + $0xc0] sm:$0xff]
        %v2571 = vld [vmem:[%s11 + $0xc8] sm:$0xff]
        %v2572 = vld [vmem:[%s11 + $0xd0] sm:$0xff]
        %v2573 = vld [vmem:[%s11 + $0xd8] sm:$0xff]
        %v2574 = vld [vmem:[%s11 + $0xe0] sm:$0xff]
        %v2575 = vld [vmem:[%s11 + $0xe8] sm:$0xff]
        %v2576 = vld [vmem:[%s11 + $0xf0] sm:$0xff]
        %v2577 = vld [vmem:[%s11 + $0xf8] sm:$0xff]
        %v2578 = vld [vmem:[%s11 + $0x100] sm:$0xff]
        %v2579 = vld [vmem:[%s11 + $0x108] sm:$0xff]
        %v2580 = vld [vmem:[%s11 + $0x110] sm:$0xff]
        %v2581 = vld [vmem:[%s11 + $0x118] sm:$0xff]
        %v2582 = vld [vmem:[%s11 + $0x120] sm:$0xff]
        %v2583 = vld [vmem:[%s11 + $0x128] sm:$0xff]
        %v2584 = vld [vmem:[%s11 + $0x130] sm:$0xff]
        %v2585 = vld [vmem:[%s11 + $0x138] sm:$0xff]
        %v2586 = vld [vmem:[%s11 + $0x140] sm:$0xff]
        %v2587 = vld [vmem:[%s11 + $0x148] sm:$0xff]
        %v2588 = vld [vmem:[%s11 + $0x150] sm:$0xff]
        %v2589 = vld [vmem:[%s11 + $0x158] sm:$0xff]
        %v2590 = vld [vmem:[%s11 + $0x160] sm:$0xff]
        %v2591 = vld [vmem:[%s11 + $0x168] sm:$0xff]
        %v2592 = vld [vmem:[%s11 + $0x170] sm:$0xff]
        %v2593 = vld [vmem:[%s11 + $0x178] sm:$0xff]
        %v2594 = vld [vmem:[%s11 + $0x180] sm:$0xff]
        %v2595 = vld [vmem:[%s11 + $0x188] sm:$0xff]
        %v2596 = vld [vmem:[%s11 + $0x190] sm:$0xff]
        %v2597 = vld [vmem:[%s11 + $0x198] sm:$0xff]
        %v2598 = vld [vmem:[%s11 + $0x1a0] sm:$0xff]
        %v2599 = vld [vmem:[%s11 + $0x1a8] sm:$0xff]
        %v2600 = vld [vmem:[%s11 + $0x1b0] sm:$0xff]
        %v2601 = vld [vmem:[%s11 + $0x1b8] sm:$0xff]
        %v2602 = vld [vmem:[%s11 + $0x1c0] sm:$0xff]
        %v2603 = vld [vmem:[%s11 + $0x1c8] sm:$0xff]
        %v2604 = vld [vmem:[%s11 + $0x1d0] sm:$0xff]
        %v2605 = vld [vmem:[%s11 + $0x1d8] sm:$0xff]
        %v2606 = vld [vmem:[%s11 + $0x1e0] sm:$0xff]
        %v2607 = vld [vmem:[%s11 + $0x1e8] sm:$0xff]
        %v2608 = vld [vmem:[%s11 + $0x1f0] sm:$0xff]
        %v2609 = vld [vmem:[%s11 + $0x1f8] sm:$0xff]
        %v2610 = vld [vmem:[%s11 + $0x200] sm:$0xff]
        %v2611 = vld [vmem:[%s11 + $0x208] sm:$0xff]
        %v2612 = vld [vmem:[%s11 + $0x210] sm:$0xff]
        %v2613 = vld [vmem:[%s11 + $0x218] sm:$0xff]
        %v2614 = vld [vmem:[%s11 + $0x220] sm:$0xff]
        %v2615 = vld [vmem:[%s11 + $0x228] sm:$0xff]
        %v2616 = vld [vmem:[%s11 + $0x230] sm:$0xff]
        %v2617 = vld [vmem:[%s11 + $0x238] sm:$0xff]
        %v2618 = vld [vmem:[%s11 + $0x240] sm:$0xff]
        %v2619 = vld [vmem:[%s11 + $0x248] sm:$0xff]
        %v2620 = vld [vmem:[%s11 + $0x250] sm:$0xff]
        %v2621 = vld [vmem:[%s11 + $0x258] sm:$0xff]
        %v2622 = vld [vmem:[%s11 + $0x260] sm:$0xff]
        %v2623 = vld [vmem:[%s11 + $0x268] sm:$0xff]
        %v2624 = vld [vmem:[%s11 + $0x270] sm:$0xff]
        %v2625 = vld [vmem:[%s11 + $0x278] sm:$0xff]
        %v2626 = vld [vmem:[%s11 + $0x280] sm:$0xff]
        %v2627 = vld [vmem:[%s11 + $0x288] sm:$0xff]
        %v2628 = vld [vmem:[%s11 + $0x290] sm:$0xff]
        %v2629 = vld [vmem:[%s11 + $0x298] sm:$0xff]
        %v2630 = vld [vmem:[%s11 + $0x2a0] sm:$0xff]
        %v2631 = vld [vmem:[%s11 + $0x2a8] sm:$0xff]
        %v2632 = vld [vmem:[%s11 + $0x2b0] sm:$0xff]
        %v2633 = vld [vmem:[%s11 + $0x2b8] sm:$0xff]
        %v2634 = vld [vmem:[%s11 + $0x2c0] sm:$0xff]
        %v2635 = vld [vmem:[%s11 + $0x2c8] sm:$0xff]
        %v2636 = vld [vmem:[%s11 + $0x2d0] sm:$0xff]
        %v2637 = vld [vmem:[%s11 + $0x2d8] sm:$0xff]
        %v2638 = vld [vmem:[%s11 + $0x2e0] sm:$0xff]
        %v2639 = vld [vmem:[%s11 + $0x2e8] sm:$0xff]
        %v2640 = vld [vmem:[%s11 + $0x2f0] sm:$0xff]
        %v2641 = vld [vmem:[%s11 + $0x2f8] sm:$0xff]
        %v2642 = vld [vmem:[%s11 + $0x300] sm:$0xff]
        %v2643 = vld [vmem:[%s11 + $0x308] sm:$0xff]
        %v2644 = vld [vmem:[%s11 + $0x310] sm:$0xff]
        %v2645 = vld [vmem:[%s11 + $0x318] sm:$0xff]
        %v2646 = vld [vmem:[%s11 + $0x320] sm:$0xff]
        %v2647 = vld [vmem:[%s11 + $0x328] sm:$0xff]
        %v2648 = vld [vmem:[%s11 + $0x330] sm:$0xff]
        %v2649 = vld [vmem:[%s11 + $0x338] sm:$0xff]
        %v2650 = vld [vmem:[%s11 + $0x340] sm:$0xff]
        %v2651 = vld [vmem:[%s11 + $0x348] sm:$0xff]
        %v2652 = vld [vmem:[%s11 + $0x350] sm:$0xff]
        %v2653 = vld [vmem:[%s11 + $0x358] sm:$0xff]
        %v2654 = vld [vmem:[%s11 + $0x360] sm:$0xff]
        %v2655 = vld [vmem:[%s11 + $0x368] sm:$0xff]
        %v2656 = vld [vmem:[%s11 + $0x370] sm:$0xff]
        %v2657 = vld [vmem:[%s11 + $0x378] sm:$0xff]
        %v2658 = vld [vmem:[%s11 + $0x380] sm:$0xff]
        %v2659 = vld [vmem:[%s11 + $0x388] sm:$0xff]
        %v2660 = vld [vmem:[%s11 + $0x390] sm:$0xff]
        %v2661 = vld [vmem:[%s11 + $0x398] sm:$0xff]
        %v2662 = vld [vmem:[%s11 + $0x3a0] sm:$0xff]
        %v2663 = vld [vmem:[%s11 + $0x3a8] sm:$0xff]
        %v2664 = vld [vmem:[%s11 + $0x3b0] sm:$0xff]
        %v2665 = vld [vmem:[%s11 + $0x3b8] sm:$0xff]
        %v2666 = vld [vmem:[%s11 + $0x3c0] sm:$0xff]
        %v2667 = vld [vmem:[%s11 + $0x3c8] sm:$0xff]
        %v2668 = vld [vmem:[%s11 + $0x3d0] sm:$0xff]
        %v2669 = vld [vmem:[%s11 + $0x3d8] sm:$0xff]
        %v2670 = vld [vmem:[%s11 + $0x3e0] sm:$0xff]
        %v2671 = vld [vmem:[%s11 + $0x3e8] sm:$0xff]
        %v2672 = vld [vmem:[%s11 + $0x3f0] sm:$0xff]
        %v2673 = vld [vmem:[%s11 + $0x3f8] sm:$0xff]
        %v2674 = vld [vmem:[%s12] sm:$0x3]
        %v2803 = vunpack.c.l.b16 %v2546
        %v2804 = vunpack.c.h.b16 %v2546
        %v2805 = vunpack.c.l.b16 %v2547
        %v2806 = vunpack.c.h.b16 %v2547
        %v2807 = vunpack.c.l.b16 %v2548
        %v2808 = vunpack.c.h.b16 %v2548
        %v2809 = vunpack.c.l.b16 %v2549
        %v2810 = vunpack.c.h.b16 %v2549
        %v2811 = vunpack.c.l.b16 %v2550
        %v2812 = vunpack.c.h.b16 %v2550
        %v2813 = vunpack.c.l.b16 %v2551
        %v2814 = vunpack.c.h.b16 %v2551
        %v2815 = vunpack.c.l.b16 %v2552
        %v2816 = vunpack.c.h.b16 %v2552
        %v2817 = vunpack.c.l.b16 %v2553
        %v2818 = vunpack.c.h.b16 %v2553
        %v2819 = vunpack.c.l.b16 %v2554
        %v2820 = vunpack.c.h.b16 %v2554
        %v2821 = vunpack.c.l.b16 %v2555
        %v2822 = vunpack.c.h.b16 %v2555
        %v2823 = vunpack.c.l.b16 %v2556
        %v2824 = vunpack.c.h.b16 %v2556
        %v2825 = vunpack.c.l.b16 %v2557
        %v2826 = vunpack.c.h.b16 %v2557
        %v2827 = vunpack.c.l.b16 %v2558
        %v2828 = vunpack.c.h.b16 %v2558
        %v2829 = vunpack.c.l.b16 %v2559
        %v2830 = vunpack.c.h.b16 %v2559
        %v2831 = vunpack.c.l.b16 %v2560
        %v2832 = vunpack.c.h.b16 %v2560
        %v2833 = vunpack.c.l.b16 %v2561
        %v2834 = vunpack.c.h.b16 %v2561
        %v2835 = vunpack.c.l.b16 %v2562
        %v2836 = vunpack.c.h.b16 %v2562
        %v2837 = vunpack.c.l.b16 %v2563
        %v2838 = vunpack.c.h.b16 %v2563
        %v2839 = vunpack.c.l.b16 %v2564
        %v2840 = vunpack.c.h.b16 %v2564
        %v2841 = vunpack.c.l.b16 %v2565
        %v2842 = vunpack.c.h.b16 %v2565
        %v2843 = vunpack.c.l.b16 %v2566
        %v2844 = vunpack.c.h.b16 %v2566
        %v2845 = vunpack.c.l.b16 %v2567
        %v2846 = vunpack.c.h.b16 %v2567
        %v2847 = vunpack.c.l.b16 %v2568
        %v2848 = vunpack.c.h.b16 %v2568
        %v2849 = vunpack.c.l.b16 %v2569
        %v2850 = vunpack.c.h.b16 %v2569
        %v2851 = vunpack.c.l.b16 %v2570
        %v2852 = vunpack.c.h.b16 %v2570
        %v2853 = vunpack.c.l.b16 %v2571
        %v2854 = vunpack.c.h.b16 %v2571
        %v2855 = vunpack.c.l.b16 %v2572
        %v2856 = vunpack.c.h.b16 %v2572
        %v2857 = vunpack.c.l.b16 %v2573
        %v2858 = vunpack.c.h.b16 %v2573
        %v2859 = vunpack.c.l.b16 %v2574
        %v2860 = vunpack.c.h.b16 %v2574
        %v2861 = vunpack.c.l.b16 %v2575
        %v2862 = vunpack.c.h.b16 %v2575
        %v2863 = vunpack.c.l.b16 %v2576
        %v2864 = vunpack.c.h.b16 %v2576
        %v2865 = vunpack.c.l.b16 %v2577
        %v2866 = vunpack.c.h.b16 %v2577
        %v2867 = vunpack.c.l.b16 %v2578
        %v2868 = vunpack.c.h.b16 %v2578
        %v2869 = vunpack.c.l.b16 %v2579
        %v2870 = vunpack.c.h.b16 %v2579
        %v2871 = vunpack.c.l.b16 %v2580
        %v2872 = vunpack.c.h.b16 %v2580
        %v2873 = vunpack.c.l.b16 %v2581
        %v2874 = vunpack.c.h.b16 %v2581
        %v2875 = vunpack.c.l.b16 %v2582
        %v2876 = vunpack.c.h.b16 %v2582
        %v2877 = vunpack.c.l.b16 %v2583
        %v2878 = vunpack.c.h.b16 %v2583
        %v2879 = vunpack.c.l.b16 %v2584
        %v2880 = vunpack.c.h.b16 %v2584
        %v2881 = vunpack.c.l.b16 %v2585
        %v2882 = vunpack.c.h.b16 %v2585
        %v2883 = vunpack.c.l.b16 %v2586
        %v2884 = vunpack.c.h.b16 %v2586
        %v2885 = vunpack.c.l.b16 %v2587
        %v2886 = vunpack.c.h.b16 %v2587
        %v2887 = vunpack.c.l.b16 %v2588
        %v2888 = vunpack.c.h.b16 %v2588
        %v2889 = vunpack.c.l.b16 %v2589
        %v2890 = vunpack.c.h.b16 %v2589
        %v2891 = vunpack.c.l.b16 %v2590
        %v2892 = vunpack.c.h.b16 %v2590
        %v2893 = vunpack.c.l.b16 %v2591
        %v2894 = vunpack.c.h.b16 %v2591
        %v2895 = vunpack.c.l.b16 %v2592
        %v2896 = vunpack.c.h.b16 %v2592
        %v2897 = vunpack.c.l.b16 %v2593
        %v2898 = vunpack.c.h.b16 %v2593
        %v2899 = vunpack.c.l.b16 %v2594
        %v2900 = vunpack.c.h.b16 %v2594
        %v2901 = vunpack.c.l.b16 %v2595
        %v2902 = vunpack.c.h.b16 %v2595
        %v2903 = vunpack.c.l.b16 %v2596
        %v2904 = vunpack.c.h.b16 %v2596
        %v2905 = vunpack.c.l.b16 %v2597
        %v2906 = vunpack.c.h.b16 %v2597
        %v2907 = vunpack.c.l.b16 %v2598
        %v2908 = vunpack.c.h.b16 %v2598
        %v2909 = vunpack.c.l.b16 %v2599
        %v2910 = vunpack.c.h.b16 %v2599
        %v2911 = vunpack.c.l.b16 %v2600
        %v2912 = vunpack.c.h.b16 %v2600
        %v2913 = vunpack.c.l.b16 %v2601
        %v2914 = vunpack.c.h.b16 %v2601
        %v2915 = vunpack.c.l.b16 %v2602
        %v2916 = vunpack.c.h.b16 %v2602
        %v2917 = vunpack.c.l.b16 %v2603
        %v2918 = vunpack.c.h.b16 %v2603
        %v2919 = vunpack.c.l.b16 %v2604
        %v2920 = vunpack.c.h.b16 %v2604
        %v2921 = vunpack.c.l.b16 %v2605
        %v2922 = vunpack.c.h.b16 %v2605
        %v2923 = vunpack.c.l.b16 %v2606
        %v2924 = vunpack.c.h.b16 %v2606
        %v2925 = vunpack.c.l.b16 %v2607
        %v2926 = vunpack.c.h.b16 %v2607
        %v2927 = vunpack.c.l.b16 %v2608
        %v2928 = vunpack.c.h.b16 %v2608
        %v2929 = vunpack.c.l.b16 %v2609
        %v2930 = vunpack.c.h.b16 %v2609
        %v2931 = vunpack.c.l.b16 %v2610
        %v2932 = vunpack.c.h.b16 %v2610
        %v2933 = vunpack.c.l.b16 %v2611
        %v2934 = vunpack.c.h.b16 %v2611
        %v2935 = vunpack.c.l.b16 %v2612
        %v2936 = vunpack.c.h.b16 %v2612
        %v2937 = vunpack.c.l.b16 %v2613
        %v2938 = vunpack.c.h.b16 %v2613
        %v2939 = vunpack.c.l.b16 %v2614
        %v2940 = vunpack.c.h.b16 %v2614
        %v2941 = vunpack.c.l.b16 %v2615
        %v2942 = vunpack.c.h.b16 %v2615
        %v2943 = vunpack.c.l.b16 %v2616
        %v2944 = vunpack.c.h.b16 %v2616
        %v2945 = vunpack.c.l.b16 %v2617
        %v2946 = vunpack.c.h.b16 %v2617
        %v2947 = vunpack.c.l.b16 %v2618
        %v2948 = vunpack.c.h.b16 %v2618
        %v2949 = vunpack.c.l.b16 %v2619
        %v2950 = vunpack.c.h.b16 %v2619
        %v2951 = vunpack.c.l.b16 %v2620
        %v2952 = vunpack.c.h.b16 %v2620
        %v2953 = vunpack.c.l.b16 %v2621
        %v2954 = vunpack.c.h.b16 %v2621
        %v2955 = vunpack.c.l.b16 %v2622
        %v2956 = vunpack.c.h.b16 %v2622
        %v2957 = vunpack.c.l.b16 %v2623
        %v2958 = vunpack.c.h.b16 %v2623
        %v2959 = vunpack.c.l.b16 %v2624
        %v2960 = vunpack.c.h.b16 %v2624
        %v2961 = vunpack.c.l.b16 %v2625
        %v2962 = vunpack.c.h.b16 %v2625
        %v2963 = vunpack.c.l.b16 %v2626
        %v2964 = vunpack.c.h.b16 %v2626
        %v2965 = vunpack.c.l.b16 %v2627
        %v2966 = vunpack.c.h.b16 %v2627
        %v2967 = vunpack.c.l.b16 %v2628
        %v2968 = vunpack.c.h.b16 %v2628
        %v2969 = vunpack.c.l.b16 %v2629
        %v2970 = vunpack.c.h.b16 %v2629
        %v2971 = vunpack.c.l.b16 %v2630
        %v2972 = vunpack.c.h.b16 %v2630
        %v2973 = vunpack.c.l.b16 %v2631
        %v2974 = vunpack.c.h.b16 %v2631
        %v2975 = vunpack.c.l.b16 %v2632
        %v2976 = vunpack.c.h.b16 %v2632
        %v2977 = vunpack.c.l.b16 %v2633
        %v2978 = vunpack.c.h.b16 %v2633
        %v2979 = vunpack.c.l.b16 %v2634
        %v2980 = vunpack.c.h.b16 %v2634
        %v2981 = vunpack.c.l.b16 %v2635
        %v2982 = vunpack.c.h.b16 %v2635
        %v2983 = vunpack.c.l.b16 %v2636
        %v2984 = vunpack.c.h.b16 %v2636
        %v2985 = vunpack.c.l.b16 %v2637
        %v2986 = vunpack.c.h.b16 %v2637
        %v2987 = vunpack.c.l.b16 %v2638
        %v2988 = vunpack.c.h.b16 %v2638
        %v2989 = vunpack.c.l.b16 %v2639
        %v2990 = vunpack.c.h.b16 %v2639
        %v2991 = vunpack.c.l.b16 %v2640
        %v2992 = vunpack.c.h.b16 %v2640
        %v2993 = vunpack.c.l.b16 %v2641
        %v2994 = vunpack.c.h.b16 %v2641
        %v2995 = vunpack.c.l.b16 %v2642
        %v2996 = vunpack.c.h.b16 %v2642
        %v2997 = vunpack.c.l.b16 %v2643
        %v2998 = vunpack.c.h.b16 %v2643
        %v2999 = vunpack.c.l.b16 %v2644
        %v3000 = vunpack.c.h.b16 %v2644
        %v3001 = vunpack.c.l.b16 %v2645
        %v3002 = vunpack.c.h.b16 %v2645
        %v3003 = vunpack.c.l.b16 %v2646
        %v3004 = vunpack.c.h.b16 %v2646
        %v3005 = vunpack.c.l.b16 %v2647
        %v3006 = vunpack.c.h.b16 %v2647
        %v3007 = vunpack.c.l.b16 %v2648
        %v3008 = vunpack.c.h.b16 %v2648
        %v3009 = vunpack.c.l.b16 %v2649
        %v3010 = vunpack.c.h.b16 %v2649
        %v3011 = vunpack.c.l.b16 %v2650
        %v3012 = vunpack.c.h.b16 %v2650
        %v3013 = vunpack.c.l.b16 %v2651
        %v3014 = vunpack.c.h.b16 %v2651
        %v3015 = vunpack.c.l.b16 %v2652
        %v3016 = vunpack.c.h.b16 %v2652
        %v3017 = vunpack.c.l.b16 %v2653
        %v3018 = vunpack.c.h.b16 %v2653
        %v3019 = vunpack.c.l.b16 %v2654
        %v3020 = vunpack.c.h.b16 %v2654
        %v3021 = vunpack.c.l.b16 %v2655
        %v3022 = vunpack.c.h.b16 %v2655
        %v3023 = vunpack.c.l.b16 %v2656
        %v3024 = vunpack.c.h.b16 %v2656
        %v3025 = vunpack.c.l.b16 %v2657
        %v3026 = vunpack.c.h.b16 %v2657
        %v3027 = vunpack.c.l.b16 %v2658
        %v3028 = vunpack.c.h.b16 %v2658
        %v3029 = vunpack.c.l.b16 %v2659
        %v3030 = vunpack.c.h.b16 %v2659
        %v3031 = vunpack.c.l.b16 %v2660
        %v3032 = vunpack.c.h.b16 %v2660
        %v3033 = vunpack.c.l.b16 %v2661
        %v3034 = vunpack.c.h.b16 %v2661
        %v3035 = vunpack.c.l.b16 %v2662
        %v3036 = vunpack.c.h.b16 %v2662
        %v3037 = vunpack.c.l.b16 %v2663
        %v3038 = vunpack.c.h.b16 %v2663
        %v3039 = vunpack.c.l.b16 %v2664
        %v3040 = vunpack.c.h.b16 %v2664
        %v3041 = vunpack.c.l.b16 %v2665
        %v3042 = vunpack.c.h.b16 %v2665
        %v3043 = vunpack.c.l.b16 %v2666
        %v3044 = vunpack.c.h.b16 %v2666
        %v3045 = vunpack.c.l.b16 %v2667
        %v3046 = vunpack.c.h.b16 %v2667
        %v3047 = vunpack.c.l.b16 %v2668
        %v3048 = vunpack.c.h.b16 %v2668
        %v3049 = vunpack.c.l.b16 %v2669
        %v3050 = vunpack.c.h.b16 %v2669
        %v3051 = vunpack.c.l.b16 %v2670
        %v3052 = vunpack.c.h.b16 %v2670
        %v3053 = vunpack.c.l.b16 %v2671
        %v3054 = vunpack.c.h.b16 %v2671
        %v3055 = vunpack.c.l.b16 %v2672
        %v3056 = vunpack.c.h.b16 %v2672
        %v3057 = vunpack.c.l.b16 %v2673
        %v3058 = vunpack.c.h.b16 %v2673
        %v3059 = vpack.c.b16 %v2805, %v2803
        %v3060 = vpack.c.b16 %v2806, %v2804
        %v3061 = vpack.c.b16 %v2809, %v2807
        %v3062 = vpack.c.b16 %v2810, %v2808
        %v3063 = vpack.c.b16 %v2813, %v2811
        %v3064 = vpack.c.b16 %v2814, %v2812
        %v3065 = vpack.c.b16 %v2817, %v2815
        %v3066 = vpack.c.b16 %v2818, %v2816
        %v3067 = vpack.c.b16 %v2821, %v2819
        %v3068 = vpack.c.b16 %v2822, %v2820
        %v3069 = vpack.c.b16 %v2825, %v2823
        %v3070 = vpack.c.b16 %v2826, %v2824
        %v3071 = vpack.c.b16 %v2829, %v2827
        %v3072 = vpack.c.b16 %v2830, %v2828
        %v3073 = vpack.c.b16 %v2833, %v2831
        %v3074 = vpack.c.b16 %v2834, %v2832
        %v3075 = vpack.c.b16 %v2837, %v2835
        %v3076 = vpack.c.b16 %v2838, %v2836
        %v3077 = vpack.c.b16 %v2841, %v2839
        %v3078 = vpack.c.b16 %v2842, %v2840
        %v3079 = vpack.c.b16 %v2845, %v2843
        %v3080 = vpack.c.b16 %v2846, %v2844
        %v3081 = vpack.c.b16 %v2849, %v2847
        %v3082 = vpack.c.b16 %v2850, %v2848
        %v3083 = vpack.c.b16 %v2853, %v2851
        %v3084 = vpack.c.b16 %v2854, %v2852
        %v3085 = vpack.c.b16 %v2857, %v2855
        %v3086 = vpack.c.b16 %v2858, %v2856
        %v3087 = vpack.c.b16 %v2861, %v2859
        %v3088 = vpack.c.b16 %v2862, %v2860
        %v3089 = vpack.c.b16 %v2865, %v2863
        %v3090 = vpack.c.b16 %v2866, %v2864
        %v3091 = vpack.c.b16 %v2869, %v2867
        %v3092 = vpack.c.b16 %v2870, %v2868
        %v3093 = vpack.c.b16 %v2873, %v2871
        %v3094 = vpack.c.b16 %v2874, %v2872
        %v3095 = vpack.c.b16 %v2877, %v2875
        %v3096 = vpack.c.b16 %v2878, %v2876
        %v3097 = vpack.c.b16 %v2881, %v2879
        %v3098 = vpack.c.b16 %v2882, %v2880
        %v3099 = vpack.c.b16 %v2885, %v2883
        %v3100 = vpack.c.b16 %v2886, %v2884
        %v3101 = vpack.c.b16 %v2889, %v2887
        %v3102 = vpack.c.b16 %v2890, %v2888
        %v3103 = vpack.c.b16 %v2893, %v2891
        %v3104 = vpack.c.b16 %v2894, %v2892
        %v3105 = vpack.c.b16 %v2897, %v2895
        %v3106 = vpack.c.b16 %v2898, %v2896
        %v3107 = vpack.c.b16 %v2901, %v2899
        %v3108 = vpack.c.b16 %v2902, %v2900
        %v3109 = vpack.c.b16 %v2905, %v2903
        %v3110 = vpack.c.b16 %v2906, %v2904
        %v3111 = vpack.c.b16 %v2909, %v2907
        %v3112 = vpack.c.b16 %v2910, %v2908
        %v3113 = vpack.c.b16 %v2913, %v2911
        %v3114 = vpack.c.b16 %v2914, %v2912
        %v3115 = vpack.c.b16 %v2917, %v2915
        %v3116 = vpack.c.b16 %v2918, %v2916
        %v3117 = vpack.c.b16 %v2921, %v2919
        %v3118 = vpack.c.b16 %v2922, %v2920
        %v3119 = vpack.c.b16 %v2925, %v2923
        %v3120 = vpack.c.b16 %v2926, %v2924
        %v3121 = vpack.c.b16 %v2929, %v2927
        %v3122 = vpack.c.b16 %v2930, %v2928
        %v3123 = vpack.c.b16 %v2933, %v2931
        %v3124 = vpack.c.b16 %v2934, %v2932
        %v3125 = vpack.c.b16 %v2937, %v2935
        %v3126 = vpack.c.b16 %v2938, %v2936
        %v3127 = vpack.c.b16 %v2941, %v2939
        %v3128 = vpack.c.b16 %v2942, %v2940
        %v3129 = vpack.c.b16 %v2945, %v2943
        %v3130 = vpack.c.b16 %v2946, %v2944
        %v3131 = vpack.c.b16 %v2949, %v2947
        %v3132 = vpack.c.b16 %v2950, %v2948
        %v3133 = vpack.c.b16 %v2953, %v2951
        %v3134 = vpack.c.b16 %v2954, %v2952
        %v3135 = vpack.c.b16 %v2957, %v2955
        %v3136 = vpack.c.b16 %v2958, %v2956
        %v3137 = vpack.c.b16 %v2961, %v2959
        %v3138 = vpack.c.b16 %v2962, %v2960
        %v3139 = vpack.c.b16 %v2965, %v2963
        %v3140 = vpack.c.b16 %v2966, %v2964
        %v3141 = vpack.c.b16 %v2969, %v2967
        %v3142 = vpack.c.b16 %v2970, %v2968
        %v3143 = vpack.c.b16 %v2973, %v2971
        %v3144 = vpack.c.b16 %v2974, %v2972
        %v3145 = vpack.c.b16 %v2977, %v2975
        %v3146 = vpack.c.b16 %v2978, %v2976
        %v3147 = vpack.c.b16 %v2981, %v2979
        %v3148 = vpack.c.b16 %v2982, %v2980
        %v3149 = vpack.c.b16 %v2985, %v2983
        %v3150 = vpack.c.b16 %v2986, %v2984
        %v3151 = vpack.c.b16 %v2989, %v2987
        %v3152 = vpack.c.b16 %v2990, %v2988
        %v3153 = vpack.c.b16 %v2993, %v2991
        %v3154 = vpack.c.b16 %v2994, %v2992
        %v3155 = vpack.c.b16 %v2997, %v2995
        %v3156 = vpack.c.b16 %v2998, %v2996
        %v3157 = vpack.c.b16 %v3001, %v2999
        %v3158 = vpack.c.b16 %v3002, %v3000
        %v3159 = vpack.c.b16 %v3005, %v3003
        %v3160 = vpack.c.b16 %v3006, %v3004
        %v3161 = vpack.c.b16 %v3009, %v3007
        %v3162 = vpack.c.b16 %v3010, %v3008
        %v3163 = vpack.c.b16 %v3013, %v3011
        %v3164 = vpack.c.b16 %v3014, %v3012
        %v3165 = vpack.c.b16 %v3017, %v3015
        %v3166 = vpack.c.b16 %v3018, %v3016
        %v3167 = vpack.c.b16 %v3021, %v3019
        %v3168 = vpack.c.b16 %v3022, %v3020
        %v3169 = vpack.c.b16 %v3025, %v3023
        %v3170 = vpack.c.b16 %v3026, %v3024
        %v3171 = vpack.c.b16 %v3029, %v3027
        %v3172 = vpack.c.b16 %v3030, %v3028
        %v3173 = vpack.c.b16 %v3033, %v3031
        %v3174 = vpack.c.b16 %v3034, %v3032
        %v3175 = vpack.c.b16 %v3037, %v3035
        %v3176 = vpack.c.b16 %v3038, %v3036
        %v3177 = vpack.c.b16 %v3041, %v3039
        %v3178 = vpack.c.b16 %v3042, %v3040
        %v3179 = vpack.c.b16 %v3045, %v3043
        %v3180 = vpack.c.b16 %v3046, %v3044
        %v3181 = vpack.c.b16 %v3049, %v3047
        %v3182 = vpack.c.b16 %v3050, %v3048
        %v3183 = vpack.c.b16 %v3053, %v3051
        %v3184 = vpack.c.b16 %v3054, %v3052
        %v3185 = vpack.c.b16 %v3057, %v3055
        %v3186 = vpack.c.b16 %v3058, %v3056
        %v3316 = vlaneseq
        %v3317 = vshrl.u32 %v3316, 7
        %v3318 = vsub.s32 0, %v3317
        %v3319 = vrot.slane %v2674, %v3318
        %v3320 = vlaneseq
        %v3321 = vshrl.u32 %v3320, 7
        %v3322 = vsub.s32 1, %v3321
        %v3323 = vrot.slane %v2674, %v3322
        %3326 = vmatprep.subr.bf16.mxu0 %v3060
        %3327 = vmatpush1.bf16.msra.mxu0 %v3059
        %3328 = vmatprep.subr.bf16.mxu0 %v3062
        %3329 = vmatpush1.bf16.msra.mxu0 %v3061
        %3330 = vmatprep.subr.bf16.mxu0 %v3064
        %3331 = vmatpush1.bf16.msra.mxu0 %v3063
        %3332 = vmatprep.subr.bf16.mxu0 %v3066
        %3333 = vmatpush1.bf16.msra.mxu0 %v3065
        %3334 = vmatprep.subr.bf16.mxu0 %v3068
        %3335 = vmatpush1.bf16.msra.mxu0 %v3067
        %3336 = vmatprep.subr.bf16.mxu0 %v3070
        %3337 = vmatpush1.bf16.msra.mxu0 %v3069
        %3338 = vmatprep.subr.bf16.mxu0 %v3072
        %3339 = vmatpush1.bf16.msra.mxu0 %v3071
        %3340 = vmatprep.subr.bf16.mxu0 %v3074
        %3341 = vmatpush1.bf16.msra.mxu0 %v3073
        %3342 = vmatprep.subr.bf16.mxu0 %v3076
        %3343 = vmatpush1.bf16.msra.mxu0 %v3075
        %3344 = vmatprep.subr.bf16.mxu0 %v3078
        %3345 = vmatpush1.bf16.msra.mxu0 %v3077
        %3346 = vmatprep.subr.bf16.mxu0 %v3080
        %3347 = vmatpush1.bf16.msra.mxu0 %v3079
        %3348 = vmatprep.subr.bf16.mxu0 %v3082
        %3349 = vmatpush1.bf16.msra.mxu0 %v3081
        %3350 = vmatprep.subr.bf16.mxu0 %v3084
        %3351 = vmatpush1.bf16.msra.mxu0 %v3083
        %3352 = vmatprep.subr.bf16.mxu0 %v3086
        %3353 = vmatpush1.bf16.msra.mxu0 %v3085
        %3354 = vmatprep.subr.bf16.mxu0 %v3088
        %3355 = vmatpush1.bf16.msra.mxu0 %v3087
        %3356 = vmatprep.subr.bf16.mxu0 %v3090
        %3357 = vmatpush1.bf16.msra.mxu0 %v3089
        %3358 = vmatprep.mubr.bf16.mxu0 %v2539
        %3359 = vmatmul.mubr.bf16.gmra.mrb[0].mxu0 %v2538
        %v3360 = vpop.f32.mrb[0].mxu0
        %v3361 = vadd.f32 %v3319, %v3360
        %v3362 = vpop.f32.mrb[0].mxu0
        %v3363 = vadd.f32 %v3323, %v3362
        %v3364 = vpop.f32.mrb[0].mxu0
        %v3365 = vpop.f32.mrb[0].mxu0
        %3366 = vdwg.mxu0
        %3367 = vmatprep.subr.bf16.mxu0 %v3092
        %3368 = vmatpush1.bf16.msra.mxu0 %v3091
        %3369 = vmatprep.subr.bf16.mxu0 %v3094
        %3370 = vmatpush1.bf16.msra.mxu0 %v3093
        %3371 = vmatprep.subr.bf16.mxu0 %v3096
        %3372 = vmatpush1.bf16.msra.mxu0 %v3095
        %3373 = vmatprep.subr.bf16.mxu0 %v3098
        %3374 = vmatpush1.bf16.msra.mxu0 %v3097
        %3375 = vmatprep.subr.bf16.mxu0 %v3100
        %3376 = vmatpush1.bf16.msra.mxu0 %v3099
        %3377 = vmatprep.subr.bf16.mxu0 %v3102
        %3378 = vmatpush1.bf16.msra.mxu0 %v3101
        %3379 = vmatprep.subr.bf16.mxu0 %v3104
        %3380 = vmatpush1.bf16.msra.mxu0 %v3103
        %3381 = vmatprep.subr.bf16.mxu0 %v3106
        %3382 = vmatpush1.bf16.msra.mxu0 %v3105
        %3383 = vmatprep.subr.bf16.mxu0 %v3108
        %3384 = vmatpush1.bf16.msra.mxu0 %v3107
        %3385 = vmatprep.subr.bf16.mxu0 %v3110
        %3386 = vmatpush1.bf16.msra.mxu0 %v3109
        %3387 = vmatprep.subr.bf16.mxu0 %v3112
        %3388 = vmatpush1.bf16.msra.mxu0 %v3111
        %3389 = vmatprep.subr.bf16.mxu0 %v3114
        %3390 = vmatpush1.bf16.msra.mxu0 %v3113
        %3391 = vmatprep.subr.bf16.mxu0 %v3116
        %3392 = vmatpush1.bf16.msra.mxu0 %v3115
        %3393 = vmatprep.subr.bf16.mxu0 %v3118
        %3394 = vmatpush1.bf16.msra.mxu0 %v3117
        %3395 = vmatprep.subr.bf16.mxu0 %v3120
        %3396 = vmatpush1.bf16.msra.mxu0 %v3119
        %3397 = vmatprep.subr.bf16.mxu0 %v3122
        %3398 = vmatpush1.bf16.msra.mxu0 %v3121
        %3399 = vmatprep.mubr.bf16.mxu0 %v2541
        %3400 = vmatmul.mubr.bf16.gmra.mrb[0].mxu0 %v2540
        %v3401 = vpop.f32.mrb[0].mxu0
        %v3402 = vadd.f32 %v3361, %v3401
        %v3403 = vpop.f32.mrb[0].mxu0
        %v3404 = vadd.f32 %v3363, %v3403
        %v3405 = vpop.f32.mrb[0].mxu0
        %v3406 = vpop.f32.mrb[0].mxu0
        %3407 = vdwg.mxu0
        %3408 = vmatprep.subr.bf16.mxu0 %v3124
        %3409 = vmatpush1.bf16.msra.mxu0 %v3123
        %3410 = vmatprep.subr.bf16.mxu0 %v3126
        %3411 = vmatpush1.bf16.msra.mxu0 %v3125
        %3412 = vmatprep.subr.bf16.mxu0 %v3128
        %3413 = vmatpush1.bf16.msra.mxu0 %v3127
        %3414 = vmatprep.subr.bf16.mxu0 %v3130
        %3415 = vmatpush1.bf16.msra.mxu0 %v3129
        %3416 = vmatprep.subr.bf16.mxu0 %v3132
        %3417 = vmatpush1.bf16.msra.mxu0 %v3131
        %3418 = vmatprep.subr.bf16.mxu0 %v3134
        %3419 = vmatpush1.bf16.msra.mxu0 %v3133
        %3420 = vmatprep.subr.bf16.mxu0 %v3136
        %3421 = vmatpush1.bf16.msra.mxu0 %v3135
        %3422 = vmatprep.subr.bf16.mxu0 %v3138
        %3423 = vmatpush1.bf16.msra.mxu0 %v3137
        %3424 = vmatprep.subr.bf16.mxu0 %v3140
        %3425 = vmatpush1.bf16.msra.mxu0 %v3139
        %3426 = vmatprep.subr.bf16.mxu0 %v3142
        %3427 = vmatpush1.bf16.msra.mxu0 %v3141
        %3428 = vmatprep.subr.bf16.mxu0 %v3144
        %3429 = vmatpush1.bf16.msra.mxu0 %v3143
        %3430 = vmatprep.subr.bf16.mxu0 %v3146
        %3431 = vmatpush1.bf16.msra.mxu0 %v3145
        %3432 = vmatprep.subr.bf16.mxu0 %v3148
        %3433 = vmatpush1.bf16.msra.mxu0 %v3147
        %3434 = vmatprep.subr.bf16.mxu0 %v3150
        %3435 = vmatpush1.bf16.msra.mxu0 %v3149
        %3436 = vmatprep.subr.bf16.mxu0 %v3152
        %3437 = vmatpush1.bf16.msra.mxu0 %v3151
        %3438 = vmatprep.subr.bf16.mxu0 %v3154
        %3439 = vmatpush1.bf16.msra.mxu0 %v3153
        %3440 = vmatprep.mubr.bf16.mxu0 %v2543
        %3441 = vmatmul.mubr.bf16.gmra.mrb[0].mxu0 %v2542
        %v3442 = vpop.f32.mrb[0].mxu0
        %v3443 = vadd.f32 %v3402, %v3442
        %v3444 = vpop.f32.mrb[0].mxu0
        %v3445 = vadd.f32 %v3404, %v3444
        %v3446 = vpop.f32.mrb[0].mxu0
        %v3447 = vpop.f32.mrb[0].mxu0
        %3448 = vdwg.mxu0
        %3449 = vmatprep.subr.bf16.mxu0 %v3156
        %3450 = vmatpush1.bf16.msra.mxu0 %v3155
        %3451 = vmatprep.subr.bf16.mxu0 %v3158
        %3452 = vmatpush1.bf16.msra.mxu0 %v3157
        %3453 = vmatprep.subr.bf16.mxu0 %v3160
        %3454 = vmatpush1.bf16.msra.mxu0 %v3159
        %3455 = vmatprep.subr.bf16.mxu0 %v3162
        %3456 = vmatpush1.bf16.msra.mxu0 %v3161
        %3457 = vmatprep.subr.bf16.mxu0 %v3164
        %3458 = vmatpush1.bf16.msra.mxu0 %v3163
        %3459 = vmatprep.subr.bf16.mxu0 %v3166
        %3460 = vmatpush1.bf16.msra.mxu0 %v3165
        %3461 = vmatprep.subr.bf16.mxu0 %v3168
        %3462 = vmatpush1.bf16.msra.mxu0 %v3167
        %3463 = vmatprep.subr.bf16.mxu0 %v3170
        %3464 = vmatpush1.bf16.msra.mxu0 %v3169
        %3465 = vmatprep.subr.bf16.mxu0 %v3172
        %3466 = vmatpush1.bf16.msra.mxu0 %v3171
        %3467 = vmatprep.subr.bf16.mxu0 %v3174
        %3468 = vmatpush1.bf16.msra.mxu0 %v3173
        %3469 = vmatprep.subr.bf16.mxu0 %v3176
        %3470 = vmatpush1.bf16.msra.mxu0 %v3175
        %3471 = vmatprep.subr.bf16.mxu0 %v3178
        %3472 = vmatpush1.bf16.msra.mxu0 %v3177
        %3473 = vmatprep.subr.bf16.mxu0 %v3180
        %3474 = vmatpush1.bf16.msra.mxu0 %v3179
        %3475 = vmatprep.subr.bf16.mxu0 %v3182
        %3476 = vmatpush1.bf16.msra.mxu0 %v3181
        %3477 = vmatprep.subr.bf16.mxu0 %v3184
        %3478 = vmatpush1.bf16.msra.mxu0 %v3183
        %3479 = vmatprep.subr.bf16.mxu0 %v3186
        %3480 = vmatpush1.bf16.msra.mxu0 %v3185
        %3481 = vmatprep.mubr.bf16.mxu0 %v2545
        %3482 = vmatmul.mubr.bf16.gmra.mrb[0].mxu0 %v2544
        %v3483 = vpop.f32.mrb[0].mxu0
        %v3484 = vadd.f32 %v3443, %v3483
        %v3485 = vpop.f32.mrb[0].mxu0
        %v3486 = vadd.f32 %v3445, %v3485
        %v3487 = vpop.f32.mrb[0].mxu0
        %v3488 = vpop.f32.mrb[0].mxu0
        %3489 = vdwg.mxu0
        %v3492 = vcombine.low %v3484, %v3486
        %v3494 = vunpack.c.l.s4 1966171168
        %v3495 = vunpack.c.0.s8 %v3494
        %v3496 = vlaneseq
        %v3497 = vshrl.u32 %v3496, 7
        %v3498 = vsub.s32 %v3495, %v3497
        %v3499 = vrot.slane %v3492, %v3498
        %v3501 = vunpack.c.l.s4 1966171168
        %v3502 = vunpack.c.0.s8 %v3501
        %v3503 = vlaneseq
        %v3504 = vshrl.u32 %v3503, 7
        %v3505 = vsub.s32 %v3502, %v3504
        %v3506 = vrot.slane %v3499, %v3505
        %v3508 = vlaneseq
        %vm3509 = vcmp.ge.s32.totalorder %v3508, 0
        %vm3510 = vcmp.lt.s32.totalorder %v3508, 256
        %vm3511 = vmand %vm3509, %vm3510
        %3512 = vst.msk [vmem:[%s517] sm:$0x3] %vm3511, %v3506
      $region84: #{pn_forward.2} parent=71 // pred_fallthru
        _
      %s3513 = smul.u32 16, %s31
      %p3514 = scmp.lt.s32.totalorder %s30, 1
      %s3515 = scalar_select %p3514, %s30, 1
      %p3516 = scmp.lt.s32.totalorder %s3513, 15
      %s3517 = scalar_select %p3516, %s3513, 15
      %s3518 = smul.addr %s3515, 16
      %s3519 = sadd.s32 %s3517, %s3518
      %s3520 = smul.addr %s3519, 4
      %s3521 = scalar_lea.vmem %s13, %s3520
      %p3522 = scmp.lt.s32.totalorder %s30, 1
      %s3523 = scalar_select %p3522, %s30, 1
      %s3524 = smul.addr %s3523, 2
      %s3525 = scalar_lea.vmem %s14, %s3524
      // Predicated region
      $region85: #{pn_forward.2} parent=71 // pred_check
        %p3526 = pneg %p338
      $region86: #{pn_forward.2} parent=71 // pred_check_branch
        %3528 = sbr.rel (%p3526) target = $region88
      $region87: #{pn_forward.2} parent=71 // pred_region
        %s3529 = smul.u32 16, %s31
      $region88: #{pn_forward.2} parent=71 // pred_fallthru
        _
      // Predicated region
      $region89: #{pn_forward.2} parent=71 // pred_check
        %p3530 = pneg %p364
      $region90: #{pn_forward.2} parent=71 // pred_check_branch
        %3532 = sbr.rel (%p3530) target = $region92
      $region91: #{pn_forward.2} parent=71 // pred_region
        _
      $region92: #{pn_forward.2} parent=71 // pred_fallthru
        _
    $region72: #{pn_forward.2} parent=5 // pred_fallthru
      _
    %p3533 = scmp.le.s32.totalorder 2, %s21
    // Predicated region
    $region93: #{pn_forward.2} parent=5 // pred_check
      %p3534 = pneg %p3533
    $region94: #{pn_forward.2} parent=5 // pred_check_branch
      %3536 = sbr.rel (%p3534) target = $region96
    $region95: #{pn_forward.2} parent=5 // pred_region
      %s3537 = ssub.s32 %s21, 2
      // Predicated region
      $region97: #{pn_forward.2} parent=95 // pred_check
        %p3538 = pneg %p344
      $region98: #{pn_forward.2} parent=95 // pred_check_branch
        %3540 = sbr.rel (%p3538) target = $region100
      $region99: #{pn_forward.2} parent=95 // pred_region
        %s3541 = smul.u32 16, %s33
        %p3542 = scmp.lt.s32.totalorder %s32, 1
        %s3543 = scalar_select %p3542, %s32, 1
        %p3544 = scmp.lt.s32.totalorder %s3541, 15
        %s3545 = scalar_select %p3544, %s3541, 15
        %s3546 = smul.addr %s3543, 16
        %s3547 = sadd.s32 %s3545, %s3546
        %s3548 = smul.addr %s3547, 4
        %s3549 = scalar_lea.vmem %s13, %s3548
      $region100: #{pn_forward.2} parent=95 // pred_fallthru
        _
      // Predicated region
      $region101: #{pn_forward.2} parent=95 // pred_check
        %p3550 = pneg %p370
      $region102: #{pn_forward.2} parent=95 // pred_check_branch
        %3552 = sbr.rel (%p3550) target = $region104
      $region103: #{pn_forward.2} parent=95 // pred_region
        %p3553 = scmp.lt.s32.totalorder %s32, 1
        %s3554 = scalar_select %p3553, %s32, 1
        %s3555 = smul.addr %s3554, 2
        %s3556 = scalar_lea.vmem %s14, %s3555
      $region104: #{pn_forward.2} parent=95 // pred_fallthru
        _
    $region96: #{pn_forward.2} parent=5 // pred_fallthru
      _
  $region6: #{pn_forward.2} parent=0 // loop_footer
    %s25 = sadd.s32 1, %s21
  $region7: #{pn_forward.2} parent=0 // loop_footer_branch
    %20 = sbr.rel target = $region3
  $region8: #{pn_forward.2} parent=0 // loop_exit
    _

</llo_original>
